<compile_context>
chip_gen: v6e
topology: v6e:2x2x1
jax: 0.10.0
libtpu: 0.0.40
codegen_flags: <defaults>
</compile_context>

<pallas_src>
import numpy as np
import jax
import jax.numpy as jnp
from jax import lax
from jax.experimental import pallas as pl
from jax.experimental.pallas import tpu as pltpu


# ----------------------------- Pallas kernel -----------------------------

def _gates(g, c, H):
    """Gate math with columns permuted to [i, f, o, g] (done in the wrapper)."""
    sg = jax.nn.sigmoid(g[:, 0:3 * H])        # one contiguous EUP push (i, f, o)
    gg = jnp.tanh(g[:, 3 * H:4 * H])          # tanh only on the g gate
    i = sg[:, 0:H]
    f = sg[:, H:2 * H]
    o = sg[:, 2 * H:3 * H]
    c_new = f * c + i * gg
    h_new = o * jnp.tanh(c_new)
    return h_new, c_new


def _fused_bistep(gxf, gxb, hf, cf, hb, cb, whh_blk, H):
    """One fused fwd+bwd LSTM step: a single MXU push for both directions.

    whh_blk is blockdiag(whh_fwd, whh_bwd) of shape (2H, 8H); gxf/gxb are the
    precomputed (hoisted) input projections at this step's fwd/bwd time indices.
    """
    hcat = jnp.concatenate([hf, hb], axis=-1).astype(whh_blk.dtype)      # (Bt, 2H)
    g = jnp.dot(hcat, whh_blk, preferred_element_type=jnp.float32)       # (Bt, 8H)
    hf, cf = _gates(g[:, 0:4 * H] + gxf, cf, H)
    hb, cb = _gates(g[:, 4 * H:8 * H] + gxb, cb, H)
    return hf, cf, hb, cb


def bilstm_kernel(lengths_ref, x_ref,
                  wih1f_ref, wih1r_ref, b1f_ref, b1r_ref, whh1_ref,
                  wih2ft_ref, wih2fb_ref, wih2rt_ref, wih2rb_ref,
                  b2f_ref, b2r_ref, whh2_ref,
                  w1a_ref, w1b_ref, bfc1_ref, w2_ref, bfc2_ref,
                  out_ref,
                  gx1f_ref, gx1b_ref, out1f_ref, out1b_ref, gx2f_ref, gx2b_ref):
    T, Bt, E = x_ref.shape
    H = whh1_ref.shape[0] // 2
    H2 = whh2_ref.shape[0] // 2
    unroll = min(8, T)      # cap unroll: full unroll only for short sequences

    # ---- phase 0: hoisted LSTM1 input projections (dense MXU, both directions) ----
    x2d = x_ref[...].reshape(T * Bt, E)
    gx1f = jnp.dot(x2d, wih1f_ref[...], preferred_element_type=jnp.float32) + b1f_ref[...]
    gx1b = jnp.dot(x2d, wih1r_ref[...], preferred_element_type=jnp.float32) + b1r_ref[...]
    gx1f_ref[...] = gx1f.reshape(T, Bt, 4 * H).astype(gx1f_ref.dtype)
    gx1b_ref[...] = gx1b.reshape(T, Bt, 4 * H).astype(gx1b_ref.dtype)

    lens = lengths_ref[...]                      # (Bt, 1) int32, loaded once
    whh1 = whh1_ref[...]                         # (2H, 8H) block-diagonal
    whh2 = whh2_ref[...]                         # (2H2, 8H2) block-diagonal

    zH = jnp.zeros((Bt, H), jnp.float32)
    zH2 = jnp.zeros((Bt, H2), jnp.float32)

    # ---- phase 1: LSTM1 recurrence, fwd+bwd fused into one matmul per step ----
    def body1(s, carry):
        hf, cf, hb, cb = carry
        tb = T - 1 - s
        hf, cf, hb, cb = _fused_bistep(gx1f_ref[s], gx1b_ref[tb],
                                       hf, cf, hb, cb, whh1, H)
        out1f_ref[s] = hf.astype(out1f_ref.dtype)     # full-row, per-direction store
        out1b_ref[tb] = hb.astype(out1b_ref.dtype)
        return hf, cf, hb, cb

    lax.fori_loop(0, T, body1, (zH, zH, zH, zH), unroll=unroll)

    # ---- phase 2: hoisted LSTM2 input projections (split weights -> no concat) ----
    o1f = out1f_ref[...].reshape(T * Bt, H).astype(wih2ft_ref.dtype)
    o1b = out1b_ref[...].reshape(T * Bt, H).astype(wih2ft_ref.dtype)
    gx2f = (jnp.dot(o1f, wih2ft_ref[...], preferred_element_type=jnp.float32)
            + jnp.dot(o1b, wih2fb_ref[...], preferred_element_type=jnp.float32)
            + b2f_ref[...])
    gx2b = (jnp.dot(o1f, wih2rt_ref[...], preferred_element_type=jnp.float32)
            + jnp.dot(o1b, wih2rb_ref[...], preferred_element_type=jnp.float32)
            + b2r_ref[...])
    gx2f_ref[...] = gx2f.reshape(T, Bt, 4 * H2).astype(gx2f_ref.dtype)
    gx2b_ref[...] = gx2b.reshape(T, Bt, 4 * H2).astype(gx2b_ref.dtype)

    # ---- phase 3: LSTM2 recurrence with packed-sequence masking ----
    def body2(s, carry):
        hf, cf, last_h, hb, cb = carry
        tb = T - 1 - s
        hfn, cfn, hbn, cbn = _fused_bistep(gx2f_ref[s], gx2b_ref[tb],
                                           hf, cf, hb, cb, whh2, H2)
        # forward: capture hidden state at t = len - 1
        last_h = jnp.where(s < lens, hfn, last_h)
        # backward: state pinned to zero for t >= len (packed-sequence start)
        mb = tb < lens
        hb = jnp.where(mb, hbn, 0.0)
        cb = jnp.where(mb, cbn, 0.0)
        return hfn, cfn, last_h, hb, cb

    _, _, hn_fwd, hn_bwd, _ = lax.fori_loop(
        0, T, body2, (zH2, zH2, zH2, zH2, zH2), unroll=unroll)

    # ---- phase 4: MLP head  fc1 -> relu -> fc2 -> softmax (last dim) ----
    z = (jnp.dot(hn_fwd, w1a_ref[...], preferred_element_type=jnp.float32)
         + jnp.dot(hn_bwd, w1b_ref[...], preferred_element_type=jnp.float32)
         + bfc1_ref[...])
    z = jnp.maximum(z, 0.0)
    logits = jnp.dot(z, w2_ref[...], preferred_element_type=jnp.float32) + bfc2_ref[...]
    mx = jnp.max(logits, axis=-1, keepdims=True)
    e = jnp.exp(logits - mx)
    out_ref[...] = e * pl.reciprocal(jnp.sum(e, axis=-1, keepdims=True), approx=True)


# ----------------------------- Wrapper -----------------------------

def _rup(n, m):
    return (n + m - 1) // m * m


def _reorder_ifgo_to_ifog(w, H):
    """Permute gate columns from PyTorch [i, f, g, o] order to [i, f, o, g]."""
    return jnp.concatenate(
        [w[..., 0:2 * H], w[..., 3 * H:4 * H], w[..., 2 * H:3 * H]], axis=-1)


def _blockdiag(a, b):
    top = jnp.concatenate([a, jnp.zeros((a.shape[0], b.shape[1]), a.dtype)], axis=1)
    bot = jnp.concatenate([jnp.zeros((b.shape[0], a.shape[1]), b.dtype), b], axis=1)
    return jnp.concatenate([top, bot], axis=0)


def my_bilstm_forward(x, lengths, params, *, use_bf16_matmul=True,
                      bf16_scratch=False, b_tile=None):
    """x: (T, B, E) f32, lengths: (B,) int. Returns (B, n_tags) softmax probs.

    use_bf16_matmul: cast all MXU operands (x, W_ih, W_hh, h carries, out1) to bf16;
      accumulation and recurrence state stay f32 (v6e/v7x MXU-native path).
    bf16_scratch: also store gx/out1 VMEM scratch in bf16 (halves the VMEM footprint
      and vld bandwidth; mainly for v7x's 64 MiB VMEM at large tiles).
    """
    T, B, E = x.shape
    H = params["whh1f"].shape[0]
    H2 = params["whh2f"].shape[0]
    NT = params["w2"].shape[1]

    mat_dt = jnp.bfloat16 if use_bf16_matmul else jnp.float32
    scratch_dt = jnp.bfloat16 if bf16_scratch else jnp.float32

    # Batch tiling: big tiles fill the MXU rows on the latency-critical recurrence
    # matmul; keep >= 2 parallel tiles when the batch allows (v7x has 2 TensorCores).
    if b_tile is None:
        b8 = _rup(max(B, 1), 8)
        b_tile = min(128, b8)
        if b8 >= 16:
            b_tile = min(b_tile, _rup(pl.cdiv(b8, 2), 8))
    B_pad = _rup(_rup(B, 8), b_tile)
    nb = B_pad // b_tile

    x_pad = jnp.pad(x, ((0, 0), (0, B_pad - B), (0, 0))).astype(mat_dt)
    len_pad = jnp.pad(lengths.astype(jnp.int32), (0, B_pad - B))[:, None]  # (B_pad, 1)

    # Gate columns permuted to [i, f, o, g]; W_hh merged per layer into a
    # block-diagonal (2H, 8H) matrix so fwd+bwd share one MXU push per step.
    wih1f = _reorder_ifgo_to_ifog(params["wih1f"], H).astype(mat_dt)
    wih1r = _reorder_ifgo_to_ifog(params["wih1r"], H).astype(mat_dt)
    b1f = _reorder_ifgo_to_ifog(params["b1f"], H)
    b1r = _reorder_ifgo_to_ifog(params["b1r"], H)
    whh1 = _blockdiag(_reorder_ifgo_to_ifog(params["whh1f"], H),
                      _reorder_ifgo_to_ifog(params["whh1r"], H)).astype(mat_dt)

    wih2f = _reorder_ifgo_to_ifog(params["wih2f"], H2)
    wih2r = _reorder_ifgo_to_ifog(params["wih2r"], H2)
    wih2ft = wih2f[:H].astype(mat_dt)     # rows multiplying out1_fwd
    wih2fb = wih2f[H:].astype(mat_dt)     # rows multiplying out1_bwd
    wih2rt = wih2r[:H].astype(mat_dt)
    wih2rb = wih2r[H:].astype(mat_dt)
    b2f = _reorder_ifgo_to_ifog(params["b2f"], H2)
    b2r = _reorder_ifgo_to_ifog(params["b2r"], H2)
    whh2 = _blockdiag(_reorder_ifgo_to_ifog(params["whh2f"], H2),
                      _reorder_ifgo_to_ifog(params["whh2r"], H2)).astype(mat_dt)

    weights = [wih1f, wih1r, b1f, b1r, whh1,
               wih2ft, wih2fb, wih2rt, wih2rb, b2f, b2r, whh2,
               params["w1a"], params["w1b"], params["bfc1"],
               params["w2"], params["bfc2"]]

    def full_spec(a):
        return pl.BlockSpec(a.shape, lambda i: (0,) * a.ndim)

    grid_spec = pltpu.PrefetchScalarGridSpec(
        num_scalar_prefetch=0,
        grid=(nb,),
        in_specs=[pl.BlockSpec((b_tile, 1), lambda i: (i, 0)),            # lengths
                  pl.BlockSpec((T, b_tile, E), lambda i: (0, i, 0)),      # x
                  *[full_spec(w) for w in weights]],
        out_specs=pl.BlockSpec((b_tile, NT), lambda i: (i, 0)),
        scratch_shapes=[
            pltpu.VMEM((T, b_tile, 4 * H), scratch_dt),    # gx1 fwd
            pltpu.VMEM((T, b_tile, 4 * H), scratch_dt),    # gx1 bwd
            pltpu.VMEM((T, b_tile, H), scratch_dt),        # out1 fwd
            pltpu.VMEM((T, b_tile, H), scratch_dt),        # out1 bwd
            pltpu.VMEM((T, b_tile, 4 * H2), scratch_dt),   # gx2 fwd
            pltpu.VMEM((T, b_tile, 4 * H2), scratch_dt),   # gx2 bwd
        ],
    )

    # Advisory cost estimate for the XLA scheduler.
    flops = int(2 * T * B_pad * (E * 8 * H + 2 * H * 8 * H2)        # hoisted projections
                + 2 * T * B_pad * (2 * H * 8 * H + 2 * H2 * 8 * H2)  # recurrence matmuls
                + 2 * B_pad * (2 * H2 * H2 + H2 * NT))               # head
    transcendentals = int(T * B_pad * 10 * (H + H2) + B_pad * NT)
    in_isz = jnp.dtype(mat_dt).itemsize
    bytes_accessed = int(x_pad.size * in_isz
                         + sum(int(np.prod(w.shape)) * 4 for w in weights)
                         + B_pad * NT * 4 + B_pad * 4)

    # VMEM budget: raise the scoped limit only when the footprint needs it
    # (v7x has 64 MiB physical; leave headroom).
    scratch_bytes = (T * b_tile * (8 * H + 2 * H + 8 * H2)
                     * jnp.dtype(scratch_dt).itemsize)
    vmem_need = scratch_bytes + 2 * T * b_tile * E * in_isz + bytes_accessed
    vmem_limit = None
    if vmem_need > (24 << 20):
        vmem_limit = int(min(vmem_need + (8 << 20), 56 << 20))

    out = pl.pallas_call(
        bilstm_kernel,
        out_shape=jax.ShapeDtypeStruct((B_pad, NT), jnp.float32),
        grid_spec=grid_spec,
        compiler_params=pltpu.CompilerParams(
            dimension_semantics=("parallel",),          # batch tiles split across TCs
            vmem_limit_bytes=vmem_limit),
        cost_estimate=pl.CostEstimate(flops=flops,
                                      transcendentals=transcendentals,
                                      bytes_accessed=bytes_accessed),
    )(len_pad, x_pad, *weights)
    return out[:B]


# ----------------------------- numpy reference -----------------------------

def _sig(x):
    return 1.0 / (1.0 + np.exp(-x))


def _cell_ref(x_t, h, c, w_ih, w_hh, b):
    g = x_t @ w_ih + h @ w_hh + b
    Hd = h.shape[-1]
    i = _sig(g[:, :Hd]); f = _sig(g[:, Hd:2 * Hd])
    gg = np.tanh(g[:, 2 * Hd:3 * Hd]); o = _sig(g[:, 3 * Hd:])
    c = f * c + i * gg
    h = o * np.tanh(c)
    return h, c


def reference_forward(x, lengths, p):
    p = {k: np.asarray(v, np.float64) for k, v in p.items()}
    x = np.asarray(x, np.float64); lengths = np.asarray(lengths)
    T, B, E = x.shape
    H = p["whh1f"].shape[0]; H2 = p["whh2f"].shape[0]

    h = c = np.zeros((B, H)); outf = []
    for t in range(T):
        h, c = _cell_ref(x[t], h, c, p["wih1f"], p["whh1f"], p["b1f"])
        outf.append(h)
    h = c = np.zeros((B, H)); outb = [None] * T
    for t in range(T - 1, -1, -1):
        h, c = _cell_ref(x[t], h, c, p["wih1r"], p["whh1r"], p["b1r"])
        outb[t] = h

    h = c = np.zeros((B, H2)); hn_fwd = np.zeros((B, H2))
    for t in range(T):
        xt = np.concatenate([outf[t], outb[t]], axis=-1)
        h, c = _cell_ref(xt, h, c, p["wih2f"], p["whh2f"], p["b2f"])
        m = (t < lengths)[:, None]
        hn_fwd = np.where(m, h, hn_fwd)
    h = c = np.zeros((B, H2))
    for t in range(T - 1, -1, -1):
        xt = np.concatenate([outf[t], outb[t]], axis=-1)
        hh, cc = _cell_ref(xt, h, c, p["wih2r"], p["whh2r"], p["b2r"])
        m = (t < lengths)[:, None]
        h = np.where(m, hh, 0.0); c = np.where(m, cc, 0.0)
    hn_bwd = h

    hidden = np.concatenate([hn_fwd, hn_bwd], axis=-1)
    w1 = np.concatenate([p["w1a"], p["w1b"]], axis=0)
    z = np.maximum(hidden @ w1 + p["bfc1"], 0.0)
    logits = z @ p["w2"] + p["bfc2"]
    e = np.exp(logits - logits.max(-1, keepdims=True))
    return e / e.sum(-1, keepdims=True)


# ----------------------------- main -----------------------------

if __name__ == "__main__":
    # Small shapes consistent with the module: embedding_dim=E, hidden_dim=H, n_tags=3.
    T, B, E, H, NT = 8, 4, 64, 32, 3
    H2 = H // 2

    key = jax.random.PRNGKey(0)
    ks = iter(jax.random.split(key, 32))

    def nrm(shape, scale=0.1):
        return jax.random.normal(next(ks), shape, dtype=jnp.float32) * scale

    params = {
        # LSTM1 (input E, hidden H), weights pre-transposed to x @ W form, gates [i,f,g,o]
        "wih1f": nrm((E, 4 * H)), "b1f": nrm((1, 4 * H)), "whh1f": nrm((H, 4 * H)),
        "wih1r": nrm((E, 4 * H)), "b1r": nrm((1, 4 * H)), "whh1r": nrm((H, 4 * H)),
        # LSTM2 (input 2H, hidden H/2)
        "wih2f": nrm((2 * H, 4 * H2)), "b2f": nrm((1, 4 * H2)), "whh2f": nrm((H2, 4 * H2)),
        "wih2r": nrm((2 * H, 4 * H2)), "b2r": nrm((1, 4 * H2)), "whh2r": nrm((H2, 4 * H2)),
        # fc1 (H -> H/2): weight split into halves matching cat(hn_fwd, hn_bwd)
        "w1a": nrm((H2, H2)), "w1b": nrm((H2, H2)), "bfc1": nrm((1, H2)),
        # fc2 (H/2 -> n_tags)
        "w2": nrm((H2, NT)), "bfc2": nrm((1, NT)),
    }

    x = jax.random.normal(next(ks), (T, B, E), dtype=jnp.float32)
    lengths = jnp.array([8, 5, 3, 6], dtype=jnp.int32)

    ref = reference_forward(np.asarray(x), np.asarray(lengths), params)

    # Exact-dtype path (f32 MXU operands): tight tolerance.
    out_f32 = jax.block_until_ready(
        my_bilstm_forward(x, lengths, params, use_bf16_matmul=False))
    np.testing.assert_allclose(np.asarray(out_f32), ref, atol=2e-3, rtol=2e-3)

    # Default bf16 MXU-operand path (v6e/v7x-native): loose tolerance.
    out_bf16 = jax.block_until_ready(my_bilstm_forward(x, lengths, params))
    np.testing.assert_allclose(np.asarray(out_bf16), ref, atol=5e-2, rtol=5e-2)

    print("KERNEL_OK")
</pallas_src>

<mosaic_0001>
module attributes {stable_mosaic.version = 11 : i64} {
  func.func @bilstm_kernel(%arg0: i32, %arg1: memref<8x1xi32, #tpu.memory_space<vmem>>, %arg2: memref<8x8x64xf32, #tpu.memory_space<vmem>>, %arg3: memref<64x128xf32, #tpu.memory_space<vmem>>, %arg4: memref<64x128xf32, #tpu.memory_space<vmem>>, %arg5: memref<1x128xf32, #tpu.memory_space<vmem>>, %arg6: memref<1x128xf32, #tpu.memory_space<vmem>>, %arg7: memref<64x256xf32, #tpu.memory_space<vmem>>, %arg8: memref<32x64xf32, #tpu.memory_space<vmem>>, %arg9: memref<32x64xf32, #tpu.memory_space<vmem>>, %arg10: memref<32x64xf32, #tpu.memory_space<vmem>>, %arg11: memref<32x64xf32, #tpu.memory_space<vmem>>, %arg12: memref<1x64xf32, #tpu.memory_space<vmem>>, %arg13: memref<1x64xf32, #tpu.memory_space<vmem>>, %arg14: memref<32x128xf32, #tpu.memory_space<vmem>>, %arg15: memref<16x16xf32, #tpu.memory_space<vmem>>, %arg16: memref<16x16xf32, #tpu.memory_space<vmem>>, %arg17: memref<1x16xf32, #tpu.memory_space<vmem>>, %arg18: memref<16x3xf32, #tpu.memory_space<vmem>>, %arg19: memref<1x3xf32, #tpu.memory_space<vmem>>, %arg20: memref<8x3xf32, #tpu.memory_space<vmem>>, %arg21: memref<8x8x128xf32, #tpu.memory_space<vmem>>, %arg22: memref<8x8x128xf32, #tpu.memory_space<vmem>>, %arg23: memref<8x8x32xf32, #tpu.memory_space<vmem>>, %arg24: memref<8x8x32xf32, #tpu.memory_space<vmem>>, %arg25: memref<8x8x64xf32, #tpu.memory_space<vmem>>, %arg26: memref<8x8x64xf32, #tpu.memory_space<vmem>>) attributes {dimension_semantics = [#tpu.dimension_semantics<parallel>], iteration_bounds = array<i64: 1>, scalar_prefetch = 0 : i64, scratch_operands = 6 : i64, tpu.core_type = #tpu.core_type<tc>, window_params = [{transform_indices = @transform_0, window_bounds = array<i64: 8, 1>}, {transform_indices = @transform_1, window_bounds = array<i64: 8, 8, 64>}, {pipeline_mode = #tpu.pipeline_mode<synchronous>, transform_indices = @transform_2, window_bounds = array<i64: 64, 128>}, {pipeline_mode = #tpu.pipeline_mode<synchronous>, transform_indices = @transform_3, window_bounds = array<i64: 64, 128>}, {pipeline_mode = #tpu.pipeline_mode<synchronous>, transform_indices = @transform_4, window_bounds = array<i64: 1, 128>}, {pipeline_mode = #tpu.pipeline_mode<synchronous>, transform_indices = @transform_5, window_bounds = array<i64: 1, 128>}, {pipeline_mode = #tpu.pipeline_mode<synchronous>, transform_indices = @transform_6, window_bounds = array<i64: 64, 256>}, {pipeline_mode = #tpu.pipeline_mode<synchronous>, transform_indices = @transform_7, window_bounds = array<i64: 32, 64>}, {pipeline_mode = #tpu.pipeline_mode<synchronous>, transform_indices = @transform_8, window_bounds = array<i64: 32, 64>}, {pipeline_mode = #tpu.pipeline_mode<synchronous>, transform_indices = @transform_9, window_bounds = array<i64: 32, 64>}, {pipeline_mode = #tpu.pipeline_mode<synchronous>, transform_indices = @transform_10, window_bounds = array<i64: 32, 64>}, {pipeline_mode = #tpu.pipeline_mode<synchronous>, transform_indices = @transform_11, window_bounds = array<i64: 1, 64>}, {pipeline_mode = #tpu.pipeline_mode<synchronous>, transform_indices = @transform_12, window_bounds = array<i64: 1, 64>}, {pipeline_mode = #tpu.pipeline_mode<synchronous>, transform_indices = @transform_13, window_bounds = array<i64: 32, 128>}, {pipeline_mode = #tpu.pipeline_mode<synchronous>, transform_indices = @transform_14, window_bounds = array<i64: 16, 16>}, {pipeline_mode = #tpu.pipeline_mode<synchronous>, transform_indices = @transform_15, window_bounds = array<i64: 16, 16>}, {pipeline_mode = #tpu.pipeline_mode<synchronous>, transform_indices = @transform_16, window_bounds = array<i64: 1, 16>}, {pipeline_mode = #tpu.pipeline_mode<synchronous>, transform_indices = @transform_17, window_bounds = array<i64: 16, 3>}, {pipeline_mode = #tpu.pipeline_mode<synchronous>, transform_indices = @transform_18, window_bounds = array<i64: 1, 3>}, {transform_indices = @transform_19, window_bounds = array<i64: 8, 3>}]} {
    %c0 = arith.constant 0 : index
    %c0_0 = arith.constant 0 : index
    %c0_1 = arith.constant 0 : index
    %0 = vector.load %arg2[%c0, %c0_0, %c0_1] : memref<8x8x64xf32, #tpu.memory_space<vmem>>, vector<8x8x64xf32>
    %1 = vector.shape_cast %0 : vector<8x8x64xf32> to vector<64x64xf32>
    %c0_2 = arith.constant 0 : index
    %c0_3 = arith.constant 0 : index
    %2 = vector.load %arg3[%c0_2, %c0_3] : memref<64x128xf32, #tpu.memory_space<vmem>>, vector<64x128xf32>
    %cst = arith.constant dense<0.000000e+00> : vector<64x128xf32>
    %3 = tpu.matmul %1, %2, %cst {dimension_numbers = #tpu.dot_dimension_numbers<[1], [0], [0], [1], [0, 0, 1, 1], [], []>} : vector<64x64xf32>, vector<64x128xf32>, vector<64x128xf32> -> vector<64x128xf32>
    %c0_4 = arith.constant 0 : index
    %c0_5 = arith.constant 0 : index
    %4 = vector.load %arg5[%c0_4, %c0_5] : memref<1x128xf32, #tpu.memory_space<vmem>>, vector<1x128xf32>
    %5 = vector.broadcast %4 : vector<1x128xf32> to vector<64x128xf32>
    %6 = arith.addf %3, %5 : vector<64x128xf32>
    %c0_6 = arith.constant 0 : index
    %c0_7 = arith.constant 0 : index
    %7 = vector.load %arg4[%c0_6, %c0_7] : memref<64x128xf32, #tpu.memory_space<vmem>>, vector<64x128xf32>
    %cst_8 = arith.constant dense<0.000000e+00> : vector<64x128xf32>
    %8 = tpu.matmul %1, %7, %cst_8 {dimension_numbers = #tpu.dot_dimension_numbers<[1], [0], [0], [1], [0, 0, 1, 1], [], []>} : vector<64x64xf32>, vector<64x128xf32>, vector<64x128xf32> -> vector<64x128xf32>
    %c0_9 = arith.constant 0 : index
    %c0_10 = arith.constant 0 : index
    %9 = vector.load %arg6[%c0_9, %c0_10] : memref<1x128xf32, #tpu.memory_space<vmem>>, vector<1x128xf32>
    %10 = vector.broadcast %9 : vector<1x128xf32> to vector<64x128xf32>
    %11 = arith.addf %8, %10 : vector<64x128xf32>
    %12 = vector.shape_cast %6 : vector<64x128xf32> to vector<8x8x128xf32>
    %c0_11 = arith.constant 0 : index
    %c0_12 = arith.constant 0 : index
    %c0_13 = arith.constant 0 : index
    %13 = vector.load %arg21[%c0_11, %c0_12, %c0_13] : memref<8x8x128xf32, #tpu.memory_space<vmem>>, vector<8x8x128xf32>
    tpu.vector_store %arg21[%c0_11, %c0_12, %c0_13], %12 {strides = array<i32>} : memref<8x8x128xf32, #tpu.memory_space<vmem>>, vector<8x8x128xf32>,
    %14 = vector.shape_cast %11 : vector<64x128xf32> to vector<8x8x128xf32>
    %c0_14 = arith.constant 0 : index
    %c0_15 = arith.constant 0 : index
    %c0_16 = arith.constant 0 : index
    %15 = vector.load %arg22[%c0_14, %c0_15, %c0_16] : memref<8x8x128xf32, #tpu.memory_space<vmem>>, vector<8x8x128xf32>
    tpu.vector_store %arg22[%c0_14, %c0_15, %c0_16], %14 {strides = array<i32>} : memref<8x8x128xf32, #tpu.memory_space<vmem>>, vector<8x8x128xf32>,
    %c0_17 = arith.constant 0 : index
    %c0_18 = arith.constant 0 : index
    %16 = vector.load %arg1[%c0_17, %c0_18] : memref<8x1xi32, #tpu.memory_space<vmem>>, vector<8x1xi32>
    %c0_19 = arith.constant 0 : index
    %c0_20 = arith.constant 0 : index
    %17 = vector.load %arg7[%c0_19, %c0_20] : memref<64x256xf32, #tpu.memory_space<vmem>>, vector<64x256xf32>
    %c0_21 = arith.constant 0 : index
    %c0_22 = arith.constant 0 : index
    %18 = vector.load %arg14[%c0_21, %c0_22] : memref<32x128xf32, #tpu.memory_space<vmem>>, vector<32x128xf32>
    %cst_23 = arith.constant 0.000000e+00 : f32
    %19 = vector.broadcast %cst_23 : f32 to vector<8x32xf32>
    %cst_24 = arith.constant 0.000000e+00 : f32
    %20 = vector.broadcast %cst_24 : f32 to vector<8x16xf32>
    %c0_i32 = arith.constant 0 : i32
    %c7_i32 = arith.constant 7 : i32
    %21 = arith.subi %c7_i32, %c0_i32 : i32
    %22 = arith.index_cast %c0_i32 : i32 to index
    %c0_25 = arith.constant 0 : index
    %c0_26 = arith.constant 0 : index
    %23 = vector.load %arg21[%22, %c0_25, %c0_26] : memref<8x8x128xf32, #tpu.memory_space<vmem>>, vector<1x8x128xf32>
    %24 = vector.shape_cast %23 : vector<1x8x128xf32> to vector<8x128xf32>
    %25 = arith.index_cast %21 : i32 to index
    %c0_27 = arith.constant 0 : index
    %c0_28 = arith.constant 0 : index
    %26 = vector.load %arg22[%25, %c0_27, %c0_28] : memref<8x8x128xf32, #tpu.memory_space<vmem>>, vector<1x8x128xf32>
    %27 = vector.shape_cast %26 : vector<1x8x128xf32> to vector<8x128xf32>
    %28 = tpu.concatenate %19, %19 in 1 : vector<8x32xf32>, vector<8x32xf32> -> vector<8x64xf32>
    %cst_29 = arith.constant dense<0.000000e+00> : vector<8x256xf32>
    %29 = tpu.matmul %28, %17, %cst_29 {dimension_numbers = #tpu.dot_dimension_numbers<[1], [0], [0], [1], [0, 0, 1, 1], [], []>} : vector<8x64xf32>, vector<64x256xf32>, vector<8x256xf32> -> vector<8x256xf32>
    %30 = vector.extract_strided_slice %29 {offsets = [0, 0], sizes = [8, 128], strides = [1, 1]} : vector<8x256xf32> to vector<8x128xf32>
    %31 = arith.addf %30, %24 : vector<8x128xf32>
    %32 = vector.extract_strided_slice %31 {offsets = [0, 0], sizes = [8, 96], strides = [1, 1]} : vector<8x128xf32> to vector<8x96xf32>
    %33 = arith.negf %32 : vector<8x96xf32>
    %34 = math.exp %33 : vector<8x96xf32>
    %cst_30 = arith.constant 1.000000e+00 : f32
    %35 = vector.broadcast %cst_30 : f32 to vector<8x96xf32>
    %36 = arith.addf %35, %34 : vector<8x96xf32>
    %37 = arith.divf %35, %36 : vector<8x96xf32>
    %38 = vector.extract_strided_slice %31 {offsets = [0, 96], sizes = [8, 32], strides = [1, 1]} : vector<8x128xf32> to vector<8x32xf32>
    %39 = math.tanh %38 : vector<8x32xf32>
    %40 = vector.extract_strided_slice %37 {offsets = [0, 0], sizes = [8, 32], strides = [1, 1]} : vector<8x96xf32> to vector<8x32xf32>
    %41 = vector.extract_strided_slice %37 {offsets = [0, 32], sizes = [8, 32], strides = [1, 1]} : vector<8x96xf32> to vector<8x32xf32>
    %42 = vector.extract_strided_slice %37 {offsets = [0, 64], sizes = [8, 32], strides = [1, 1]} : vector<8x96xf32> to vector<8x32xf32>
    %43 = arith.mulf %41, %19 : vector<8x32xf32>
    %44 = arith.mulf %40, %39 : vector<8x32xf32>
    %45 = arith.addf %43, %44 : vector<8x32xf32>
    %46 = math.tanh %45 : vector<8x32xf32>
    %47 = arith.mulf %42, %46 : vector<8x32xf32>
    %48 = vector.extract_strided_slice %29 {offsets = [0, 128], sizes = [8, 128], strides = [1, 1]} : vector<8x256xf32> to vector<8x128xf32>
    %49 = arith.addf %48, %27 : vector<8x128xf32>
    %50 = vector.extract_strided_slice %49 {offsets = [0, 0], sizes = [8, 96], strides = [1, 1]} : vector<8x128xf32> to vector<8x96xf32>
    %51 = arith.negf %50 : vector<8x96xf32>
    %52 = math.exp %51 : vector<8x96xf32>
    %cst_31 = arith.constant 1.000000e+00 : f32
    %53 = vector.broadcast %cst_31 : f32 to vector<8x96xf32>
    %54 = arith.addf %53, %52 : vector<8x96xf32>
    %55 = arith.divf %53, %54 : vector<8x96xf32>
    %56 = vector.extract_strided_slice %49 {offsets = [0, 96], sizes = [8, 32], strides = [1, 1]} : vector<8x128xf32> to vector<8x32xf32>
    %57 = math.tanh %56 : vector<8x32xf32>
    %58 = vector.extract_strided_slice %55 {offsets = [0, 0], sizes = [8, 32], strides = [1, 1]} : vector<8x96xf32> to vector<8x32xf32>
    %59 = vector.extract_strided_slice %55 {offsets = [0, 32], sizes = [8, 32], strides = [1, 1]} : vector<8x96xf32> to vector<8x32xf32>
    %60 = vector.extract_strided_slice %55 {offsets = [0, 64], sizes = [8, 32], strides = [1, 1]} : vector<8x96xf32> to vector<8x32xf32>
    %61 = arith.mulf %59, %19 : vector<8x32xf32>
    %62 = arith.mulf %58, %57 : vector<8x32xf32>
    %63 = arith.addf %61, %62 : vector<8x32xf32>
    %64 = math.tanh %63 : vector<8x32xf32>
    %65 = arith.mulf %60, %64 : vector<8x32xf32>
    %66 = arith.index_cast %c0_i32 : i32 to index
    %c0_32 = arith.constant 0 : index
    %c0_33 = arith.constant 0 : index
    %67 = vector.load %arg23[%66, %c0_32, %c0_33] : memref<8x8x32xf32, #tpu.memory_space<vmem>>, vector<1x8x32xf32>
    %68 = vector.shape_cast %67 : vector<1x8x32xf32> to vector<8x32xf32>
    %69 = vector.shape_cast %47 : vector<8x32xf32> to vector<1x8x32xf32>
    tpu.vector_store %arg23[%66, %c0_32, %c0_33], %69 {strides = array<i32>} : memref<8x8x32xf32, #tpu.memory_space<vmem>>, vector<1x8x32xf32>,
    %70 = arith.index_cast %21 : i32 to index
    %c0_34 = arith.constant 0 : index
    %c0_35 = arith.constant 0 : index
    %71 = vector.load %arg24[%70, %c0_34, %c0_35] : memref<8x8x32xf32, #tpu.memory_space<vmem>>, vector<1x8x32xf32>
    %72 = vector.shape_cast %71 : vector<1x8x32xf32> to vector<8x32xf32>
    %73 = vector.shape_cast %65 : vector<8x32xf32> to vector<1x8x32xf32>
    tpu.vector_store %arg24[%70, %c0_34, %c0_35], %73 {strides = array<i32>} : memref<8x8x32xf32, #tpu.memory_space<vmem>>, vector<1x8x32xf32>,
    %c1_i32 = arith.constant 1 : i32
    %c7_i32_36 = arith.constant 7 : i32
    %74 = arith.subi %c7_i32_36, %c1_i32 : i32
    %75 = arith.index_cast %c1_i32 : i32 to index
    %c0_37 = arith.constant 0 : index
    %c0_38 = arith.constant 0 : index
    %76 = vector.load %arg21[%75, %c0_37, %c0_38] : memref<8x8x128xf32, #tpu.memory_space<vmem>>, vector<1x8x128xf32>
    %77 = vector.shape_cast %76 : vector<1x8x128xf32> to vector<8x128xf32>
    %78 = arith.index_cast %74 : i32 to index
    %c0_39 = arith.constant 0 : index
    %c0_40 = arith.constant 0 : index
    %79 = vector.load %arg22[%78, %c0_39, %c0_40] : memref<8x8x128xf32, #tpu.memory_space<vmem>>, vector<1x8x128xf32>
    %80 = vector.shape_cast %79 : vector<1x8x128xf32> to vector<8x128xf32>
    %81 = tpu.concatenate %47, %65 in 1 : vector<8x32xf32>, vector<8x32xf32> -> vector<8x64xf32>
    %cst_41 = arith.constant dense<0.000000e+00> : vector<8x256xf32>
    %82 = tpu.matmul %81, %17, %cst_41 {dimension_numbers = #tpu.dot_dimension_numbers<[1], [0], [0], [1], [0, 0, 1, 1], [], []>} : vector<8x64xf32>, vector<64x256xf32>, vector<8x256xf32> -> vector<8x256xf32>
    %83 = vector.extract_strided_slice %82 {offsets = [0, 0], sizes = [8, 128], strides = [1, 1]} : vector<8x256xf32> to vector<8x128xf32>
    %84 = arith.addf %83, %77 : vector<8x128xf32>
    %85 = vector.extract_strided_slice %84 {offsets = [0, 0], sizes = [8, 96], strides = [1, 1]} : vector<8x128xf32> to vector<8x96xf32>
    %86 = arith.negf %85 : vector<8x96xf32>
    %87 = math.exp %86 : vector<8x96xf32>
    %cst_42 = arith.constant 1.000000e+00 : f32
    %88 = vector.broadcast %cst_42 : f32 to vector<8x96xf32>
    %89 = arith.addf %88, %87 : vector<8x96xf32>
    %90 = arith.divf %88, %89 : vector<8x96xf32>
    %91 = vector.extract_strided_slice %84 {offsets = [0, 96], sizes = [8, 32], strides = [1, 1]} : vector<8x128xf32> to vector<8x32xf32>
    %92 = math.tanh %91 : vector<8x32xf32>
    %93 = vector.extract_strided_slice %90 {offsets = [0, 0], sizes = [8, 32], strides = [1, 1]} : vector<8x96xf32> to vector<8x32xf32>
    %94 = vector.extract_strided_slice %90 {offsets = [0, 32], sizes = [8, 32], strides = [1, 1]} : vector<8x96xf32> to vector<8x32xf32>
    %95 = vector.extract_strided_slice %90 {offsets = [0, 64], sizes = [8, 32], strides = [1, 1]} : vector<8x96xf32> to vector<8x32xf32>
    %96 = arith.mulf %94, %45 : vector<8x32xf32>
    %97 = arith.mulf %93, %92 : vector<8x32xf32>
    %98 = arith.addf %96, %97 : vector<8x32xf32>
    %99 = math.tanh %98 : vector<8x32xf32>
    %100 = arith.mulf %95, %99 : vector<8x32xf32>
    %101 = vector.extract_strided_slice %82 {offsets = [0, 128], sizes = [8, 128], strides = [1, 1]} : vector<8x256xf32> to vector<8x128xf32>
    %102 = arith.addf %101, %80 : vector<8x128xf32>
    %103 = vector.extract_strided_slice %102 {offsets = [0, 0], sizes = [8, 96], strides = [1, 1]} : vector<8x128xf32> to vector<8x96xf32>
    %104 = arith.negf %103 : vector<8x96xf32>
    %105 = math.exp %104 : vector<8x96xf32>
    %cst_43 = arith.constant 1.000000e+00 : f32
    %106 = vector.broadcast %cst_43 : f32 to vector<8x96xf32>
    %107 = arith.addf %106, %105 : vector<8x96xf32>
    %108 = arith.divf %106, %107 : vector<8x96xf32>
    %109 = vector.extract_strided_slice %102 {offsets = [0, 96], sizes = [8, 32], strides = [1, 1]} : vector<8x128xf32> to vector<8x32xf32>
    %110 = math.tanh %109 : vector<8x32xf32>
    %111 = vector.extract_strided_slice %108 {offsets = [0, 0], sizes = [8, 32], strides = [1, 1]} : vector<8x96xf32> to vector<8x32xf32>
    %112 = vector.extract_strided_slice %108 {offsets = [0, 32], sizes = [8, 32], strides = [1, 1]} : vector<8x96xf32> to vector<8x32xf32>
    %113 = vector.extract_strided_slice %108 {offsets = [0, 64], sizes = [8, 32], strides = [1, 1]} : vector<8x96xf32> to vector<8x32xf32>
    %114 = arith.mulf %112, %63 : vector<8x32xf32>
    %115 = arith.mulf %111, %110 : vector<8x32xf32>
    %116 = arith.addf %114, %115 : vector<8x32xf32>
    %117 = math.tanh %116 : vector<8x32xf32>
    %118 = arith.mulf %113, %117 : vector<8x32xf32>
    %119 = arith.index_cast %c1_i32 : i32 to index
    %c0_44 = arith.constant 0 : index
    %c0_45 = arith.constant 0 : index
    %120 = vector.load %arg23[%119, %c0_44, %c0_45] : memref<8x8x32xf32, #tpu.memory_space<vmem>>, vector<1x8x32xf32>
    %121 = vector.shape_cast %120 : vector<1x8x32xf32> to vector<8x32xf32>
    %122 = vector.shape_cast %100 : vector<8x32xf32> to vector<1x8x32xf32>
    tpu.vector_store %arg23[%119, %c0_44, %c0_45], %122 {strides = array<i32>} : memref<8x8x32xf32, #tpu.memory_space<vmem>>, vector<1x8x32xf32>,
    %123 = arith.index_cast %74 : i32 to index
    %c0_46 = arith.constant 0 : index
    %c0_47 = arith.constant 0 : index
    %124 = vector.load %arg24[%123, %c0_46, %c0_47] : memref<8x8x32xf32, #tpu.memory_space<vmem>>, vector<1x8x32xf32>
    %125 = vector.shape_cast %124 : vector<1x8x32xf32> to vector<8x32xf32>
    %126 = vector.shape_cast %118 : vector<8x32xf32> to vector<1x8x32xf32>
    tpu.vector_store %arg24[%123, %c0_46, %c0_47], %126 {strides = array<i32>} : memref<8x8x32xf32, #tpu.memory_space<vmem>>, vector<1x8x32xf32>,
    %c2_i32 = arith.constant 2 : i32
    %c7_i32_48 = arith.constant 7 : i32
    %127 = arith.subi %c7_i32_48, %c2_i32 : i32
    %128 = arith.index_cast %c2_i32 : i32 to index
    %c0_49 = arith.constant 0 : index
    %c0_50 = arith.constant 0 : index
    %129 = vector.load %arg21[%128, %c0_49, %c0_50] : memref<8x8x128xf32, #tpu.memory_space<vmem>>, vector<1x8x128xf32>
    %130 = vector.shape_cast %129 : vector<1x8x128xf32> to vector<8x128xf32>
    %131 = arith.index_cast %127 : i32 to index
    %c0_51 = arith.constant 0 : index
    %c0_52 = arith.constant 0 : index
    %132 = vector.load %arg22[%131, %c0_51, %c0_52] : memref<8x8x128xf32, #tpu.memory_space<vmem>>, vector<1x8x128xf32>
    %133 = vector.shape_cast %132 : vector<1x8x128xf32> to vector<8x128xf32>
    %134 = tpu.concatenate %100, %118 in 1 : vector<8x32xf32>, vector<8x32xf32> -> vector<8x64xf32>
    %cst_53 = arith.constant dense<0.000000e+00> : vector<8x256xf32>
    %135 = tpu.matmul %134, %17, %cst_53 {dimension_numbers = #tpu.dot_dimension_numbers<[1], [0], [0], [1], [0, 0, 1, 1], [], []>} : vector<8x64xf32>, vector<64x256xf32>, vector<8x256xf32> -> vector<8x256xf32>
    %136 = vector.extract_strided_slice %135 {offsets = [0, 0], sizes = [8, 128], strides = [1, 1]} : vector<8x256xf32> to vector<8x128xf32>
    %137 = arith.addf %136, %130 : vector<8x128xf32>
    %138 = vector.extract_strided_slice %137 {offsets = [0, 0], sizes = [8, 96], strides = [1, 1]} : vector<8x128xf32> to vector<8x96xf32>
    %139 = arith.negf %138 : vector<8x96xf32>
    %140 = math.exp %139 : vector<8x96xf32>
    %cst_54 = arith.constant 1.000000e+00 : f32
    %141 = vector.broadcast %cst_54 : f32 to vector<8x96xf32>
    %142 = arith.addf %141, %140 : vector<8x96xf32>
    %143 = arith.divf %141, %142 : vector<8x96xf32>
    %144 = vector.extract_strided_slice %137 {offsets = [0, 96], sizes = [8, 32], strides = [1, 1]} : vector<8x128xf32> to vector<8x32xf32>
    %145 = math.tanh %144 : vector<8x32xf32>
    %146 = vector.extract_strided_slice %143 {offsets = [0, 0], sizes = [8, 32], strides = [1, 1]} : vector<8x96xf32> to vector<8x32xf32>
    %147 = vector.extract_strided_slice %143 {offsets = [0, 32], sizes = [8, 32], strides = [1, 1]} : vector<8x96xf32> to vector<8x32xf32>
    %148 = vector.extract_strided_slice %143 {offsets = [0, 64], sizes = [8, 32], strides = [1, 1]} : vector<8x96xf32> to vector<8x32xf32>
    %149 = arith.mulf %147, %98 : vector<8x32xf32>
    %150 = arith.mulf %146, %145 : vector<8x32xf32>
    %151 = arith.addf %149, %150 : vector<8x32xf32>
    %152 = math.tanh %151 : vector<8x32xf32>
    %153 = arith.mulf %148, %152 : vector<8x32xf32>
    %154 = vector.extract_strided_slice %135 {offsets = [0, 128], sizes = [8, 128], strides = [1, 1]} : vector<8x256xf32> to vector<8x128xf32>
    %155 = arith.addf %154, %133 : vector<8x128xf32>
    %156 = vector.extract_strided_slice %155 {offsets = [0, 0], sizes = [8, 96], strides = [1, 1]} : vector<8x128xf32> to vector<8x96xf32>
    %157 = arith.negf %156 : vector<8x96xf32>
    %158 = math.exp %157 : vector<8x96xf32>
    %cst_55 = arith.constant 1.000000e+00 : f32
    %159 = vector.broadcast %cst_55 : f32 to vector<8x96xf32>
    %160 = arith.addf %159, %158 : vector<8x96xf32>
    %161 = arith.divf %159, %160 : vector<8x96xf32>
    %162 = vector.extract_strided_slice %155 {offsets = [0, 96], sizes = [8, 32], strides = [1, 1]} : vector<8x128xf32> to vector<8x32xf32>
    %163 = math.tanh %162 : vector<8x32xf32>
    %164 = vector.extract_strided_slice %161 {offsets = [0, 0], sizes = [8, 32], strides = [1, 1]} : vector<8x96xf32> to vector<8x32xf32>
    %165 = vector.extract_strided_slice %161 {offsets = [0, 32], sizes = [8, 32], strides = [1, 1]} : vector<8x96xf32> to vector<8x32xf32>
    %166 = vector.extract_strided_slice %161 {offsets = [0, 64], sizes = [8, 32], strides = [1, 1]} : vector<8x96xf32> to vector<8x32xf32>
    %167 = arith.mulf %165, %116 : vector<8x32xf32>
    %168 = arith.mulf %164, %163 : vector<8x32xf32>
    %169 = arith.addf %167, %168 : vector<8x32xf32>
    %170 = math.tanh %169 : vector<8x32xf32>
    %171 = arith.mulf %166, %170 : vector<8x32xf32>
    %172 = arith.index_cast %c2_i32 : i32 to index
    %c0_56 = arith.constant 0 : index
    %c0_57 = arith.constant 0 : index
    %173 = vector.load %arg23[%172, %c0_56, %c0_57] : memref<8x8x32xf32, #tpu.memory_space<vmem>>, vector<1x8x32xf32>
    %174 = vector.shape_cast %173 : vector<1x8x32xf32> to vector<8x32xf32>
    %175 = vector.shape_cast %153 : vector<8x32xf32> to vector<1x8x32xf32>
    tpu.vector_store %arg23[%172, %c0_56, %c0_57], %175 {strides = array<i32>} : memref<8x8x32xf32, #tpu.memory_space<vmem>>, vector<1x8x32xf32>,
    %176 = arith.index_cast %127 : i32 to index
    %c0_58 = arith.constant 0 : index
    %c0_59 = arith.constant 0 : index
    %177 = vector.load %arg24[%176, %c0_58, %c0_59] : memref<8x8x32xf32, #tpu.memory_space<vmem>>, vector<1x8x32xf32>
    %178 = vector.shape_cast %177 : vector<1x8x32xf32> to vector<8x32xf32>
    %179 = vector.shape_cast %171 : vector<8x32xf32> to vector<1x8x32xf32>
    tpu.vector_store %arg24[%176, %c0_58, %c0_59], %179 {strides = array<i32>} : memref<8x8x32xf32, #tpu.memory_space<vmem>>, vector<1x8x32xf32>,
    %c3_i32 = arith.constant 3 : i32
    %c7_i32_60 = arith.constant 7 : i32
    %180 = arith.subi %c7_i32_60, %c3_i32 : i32
    %181 = arith.index_cast %c3_i32 : i32 to index
    %c0_61 = arith.constant 0 : index
    %c0_62 = arith.constant 0 : index
    %182 = vector.load %arg21[%181, %c0_61, %c0_62] : memref<8x8x128xf32, #tpu.memory_space<vmem>>, vector<1x8x128xf32>
    %183 = vector.shape_cast %182 : vector<1x8x128xf32> to vector<8x128xf32>
    %184 = arith.index_cast %180 : i32 to index
    %c0_63 = arith.constant 0 : index
    %c0_64 = arith.constant 0 : index
    %185 = vector.load %arg22[%184, %c0_63, %c0_64] : memref<8x8x128xf32, #tpu.memory_space<vmem>>, vector<1x8x128xf32>
    %186 = vector.shape_cast %185 : vector<1x8x128xf32> to vector<8x128xf32>
    %187 = tpu.concatenate %153, %171 in 1 : vector<8x32xf32>, vector<8x32xf32> -> vector<8x64xf32>
    %cst_65 = arith.constant dense<0.000000e+00> : vector<8x256xf32>
    %188 = tpu.matmul %187, %17, %cst_65 {dimension_numbers = #tpu.dot_dimension_numbers<[1], [0], [0], [1], [0, 0, 1, 1], [], []>} : vector<8x64xf32>, vector<64x256xf32>, vector<8x256xf32> -> vector<8x256xf32>
    %189 = vector.extract_strided_slice %188 {offsets = [0, 0], sizes = [8, 128], strides = [1, 1]} : vector<8x256xf32> to vector<8x128xf32>
    %190 = arith.addf %189, %183 : vector<8x128xf32>
    %191 = vector.extract_strided_slice %190 {offsets = [0, 0], sizes = [8, 96], strides = [1, 1]} : vector<8x128xf32> to vector<8x96xf32>
    %192 = arith.negf %191 : vector<8x96xf32>
    %193 = math.exp %192 : vector<8x96xf32>
    %cst_66 = arith.constant 1.000000e+00 : f32
    %194 = vector.broadcast %cst_66 : f32 to vector<8x96xf32>
    %195 = arith.addf %194, %193 : vector<8x96xf32>
    %196 = arith.divf %194, %195 : vector<8x96xf32>
    %197 = vector.extract_strided_slice %190 {offsets = [0, 96], sizes = [8, 32], strides = [1, 1]} : vector<8x128xf32> to vector<8x32xf32>
    %198 = math.tanh %197 : vector<8x32xf32>
    %199 = vector.extract_strided_slice %196 {offsets = [0, 0], sizes = [8, 32], strides = [1, 1]} : vector<8x96xf32> to vector<8x32xf32>
    %200 = vector.extract_strided_slice %196 {offsets = [0, 32], sizes = [8, 32], strides = [1, 1]} : vector<8x96xf32> to vector<8x32xf32>
    %201 = vector.extract_strided_slice %196 {offsets = [0, 64], sizes = [8, 32], strides = [1, 1]} : vector<8x96xf32> to vector<8x32xf32>
    %202 = arith.mulf %200, %151 : vector<8x32xf32>
    %203 = arith.mulf %199, %198 : vector<8x32xf32>
    %204 = arith.addf %202, %203 : vector<8x32xf32>
    %205 = math.tanh %204 : vector<8x32xf32>
    %206 = arith.mulf %201, %205 : vector<8x32xf32>
    %207 = vector.extract_strided_slice %188 {offsets = [0, 128], sizes = [8, 128], strides = [1, 1]} : vector<8x256xf32> to vector<8x128xf32>
    %208 = arith.addf %207, %186 : vector<8x128xf32>
    %209 = vector.extract_strided_slice %208 {offsets = [0, 0], sizes = [8, 96], strides = [1, 1]} : vector<8x128xf32> to vector<8x96xf32>
    %210 = arith.negf %209 : vector<8x96xf32>
    %211 = math.exp %210 : vector<8x96xf32>
    %cst_67 = arith.constant 1.000000e+00 : f32
    %212 = vector.broadcast %cst_67 : f32 to vector<8x96xf32>
    %213 = arith.addf %212, %211 : vector<8x96xf32>
    %214 = arith.divf %212, %213 : vector<8x96xf32>
    %215 = vector.extract_strided_slice %208 {offsets = [0, 96], sizes = [8, 32], strides = [1, 1]} : vector<8x128xf32> to vector<8x32xf32>
    %216 = math.tanh %215 : vector<8x32xf32>
    %217 = vector.extract_strided_slice %214 {offsets = [0, 0], sizes = [8, 32], strides = [1, 1]} : vector<8x96xf32> to vector<8x32xf32>
    %218 = vector.extract_strided_slice %214 {offsets = [0, 32], sizes = [8, 32], strides = [1, 1]} : vector<8x96xf32> to vector<8x32xf32>
    %219 = vector.extract_strided_slice %214 {offsets = [0, 64], sizes = [8, 32], strides = [1, 1]} : vector<8x96xf32> to vector<8x32xf32>
    %220 = arith.mulf %218, %169 : vector<8x32xf32>
    %221 = arith.mulf %217, %216 : vector<8x32xf32>
    %222 = arith.addf %220, %221 : vector<8x32xf32>
    %223 = math.tanh %222 : vector<8x32xf32>
    %224 = arith.mulf %219, %223 : vector<8x32xf32>
    %225 = arith.index_cast %c3_i32 : i32 to index
    %c0_68 = arith.constant 0 : index
    %c0_69 = arith.constant 0 : index
    %226 = vector.load %arg23[%225, %c0_68, %c0_69] : memref<8x8x32xf32, #tpu.memory_space<vmem>>, vector<1x8x32xf32>
    %227 = vector.shape_cast %226 : vector<1x8x32xf32> to vector<8x32xf32>
    %228 = vector.shape_cast %206 : vector<8x32xf32> to vector<1x8x32xf32>
    tpu.vector_store %arg23[%225, %c0_68, %c0_69], %228 {strides = array<i32>} : memref<8x8x32xf32, #tpu.memory_space<vmem>>, vector<1x8x32xf32>,
    %229 = arith.index_cast %180 : i32 to index
    %c0_70 = arith.constant 0 : index
    %c0_71 = arith.constant 0 : index
    %230 = vector.load %arg24[%229, %c0_70, %c0_71] : memref<8x8x32xf32, #tpu.memory_space<vmem>>, vector<1x8x32xf32>
    %231 = vector.shape_cast %230 : vector<1x8x32xf32> to vector<8x32xf32>
    %232 = vector.shape_cast %224 : vector<8x32xf32> to vector<1x8x32xf32>
    tpu.vector_store %arg24[%229, %c0_70, %c0_71], %232 {strides = array<i32>} : memref<8x8x32xf32, #tpu.memory_space<vmem>>, vector<1x8x32xf32>,
    %c4_i32 = arith.constant 4 : i32
    %c7_i32_72 = arith.constant 7 : i32
    %233 = arith.subi %c7_i32_72, %c4_i32 : i32
    %234 = arith.index_cast %c4_i32 : i32 to index
    %c0_73 = arith.constant 0 : index
    %c0_74 = arith.constant 0 : index
    %235 = vector.load %arg21[%234, %c0_73, %c0_74] : memref<8x8x128xf32, #tpu.memory_space<vmem>>, vector<1x8x128xf32>
    %236 = vector.shape_cast %235 : vector<1x8x128xf32> to vector<8x128xf32>
    %237 = arith.index_cast %233 : i32 to index
    %c0_75 = arith.constant 0 : index
    %c0_76 = arith.constant 0 : index
    %238 = vector.load %arg22[%237, %c0_75, %c0_76] : memref<8x8x128xf32, #tpu.memory_space<vmem>>, vector<1x8x128xf32>
    %239 = vector.shape_cast %238 : vector<1x8x128xf32> to vector<8x128xf32>
    %240 = tpu.concatenate %206, %224 in 1 : vector<8x32xf32>, vector<8x32xf32> -> vector<8x64xf32>
    %cst_77 = arith.constant dense<0.000000e+00> : vector<8x256xf32>
    %241 = tpu.matmul %240, %17, %cst_77 {dimension_numbers = #tpu.dot_dimension_numbers<[1], [0], [0], [1], [0, 0, 1, 1], [], []>} : vector<8x64xf32>, vector<64x256xf32>, vector<8x256xf32> -> vector<8x256xf32>
    %242 = vector.extract_strided_slice %241 {offsets = [0, 0], sizes = [8, 128], strides = [1, 1]} : vector<8x256xf32> to vector<8x128xf32>
    %243 = arith.addf %242, %236 : vector<8x128xf32>
    %244 = vector.extract_strided_slice %243 {offsets = [0, 0], sizes = [8, 96], strides = [1, 1]} : vector<8x128xf32> to vector<8x96xf32>
    %245 = arith.negf %244 : vector<8x96xf32>
    %246 = math.exp %245 : vector<8x96xf32>
    %cst_78 = arith.constant 1.000000e+00 : f32
    %247 = vector.broadcast %cst_78 : f32 to vector<8x96xf32>
    %248 = arith.addf %247, %246 : vector<8x96xf32>
    %249 = arith.divf %247, %248 : vector<8x96xf32>
    %250 = vector.extract_strided_slice %243 {offsets = [0, 96], sizes = [8, 32], strides = [1, 1]} : vector<8x128xf32> to vector<8x32xf32>
    %251 = math.tanh %250 : vector<8x32xf32>
    %252 = vector.extract_strided_slice %249 {offsets = [0, 0], sizes = [8, 32], strides = [1, 1]} : vector<8x96xf32> to vector<8x32xf32>
    %253 = vector.extract_strided_slice %249 {offsets = [0, 32], sizes = [8, 32], strides = [1, 1]} : vector<8x96xf32> to vector<8x32xf32>
    %254 = vector.extract_strided_slice %249 {offsets = [0, 64], sizes = [8, 32], strides = [1, 1]} : vector<8x96xf32> to vector<8x32xf32>
    %255 = arith.mulf %253, %204 : vector<8x32xf32>
    %256 = arith.mulf %252, %251 : vector<8x32xf32>
    %257 = arith.addf %255, %256 : vector<8x32xf32>
    %258 = math.tanh %257 : vector<8x32xf32>
    %259 = arith.mulf %254, %258 : vector<8x32xf32>
    %260 = vector.extract_strided_slice %241 {offsets = [0, 128], sizes = [8, 128], strides = [1, 1]} : vector<8x256xf32> to vector<8x128xf32>
    %261 = arith.addf %260, %239 : vector<8x128xf32>
    %262 = vector.extract_strided_slice %261 {offsets = [0, 0], sizes = [8, 96], strides = [1, 1]} : vector<8x128xf32> to vector<8x96xf32>
    %263 = arith.negf %262 : vector<8x96xf32>
    %264 = math.exp %263 : vector<8x96xf32>
    %cst_79 = arith.constant 1.000000e+00 : f32
    %265 = vector.broadcast %cst_79 : f32 to vector<8x96xf32>
    %266 = arith.addf %265, %264 : vector<8x96xf32>
    %267 = arith.divf %265, %266 : vector<8x96xf32>
    %268 = vector.extract_strided_slice %261 {offsets = [0, 96], sizes = [8, 32], strides = [1, 1]} : vector<8x128xf32> to vector<8x32xf32>
    %269 = math.tanh %268 : vector<8x32xf32>
    %270 = vector.extract_strided_slice %267 {offsets = [0, 0], sizes = [8, 32], strides = [1, 1]} : vector<8x96xf32> to vector<8x32xf32>
    %271 = vector.extract_strided_slice %267 {offsets = [0, 32], sizes = [8, 32], strides = [1, 1]} : vector<8x96xf32> to vector<8x32xf32>
    %272 = vector.extract_strided_slice %267 {offsets = [0, 64], sizes = [8, 32], strides = [1, 1]} : vector<8x96xf32> to vector<8x32xf32>
    %273 = arith.mulf %271, %222 : vector<8x32xf32>
    %274 = arith.mulf %270, %269 : vector<8x32xf32>
    %275 = arith.addf %273, %274 : vector<8x32xf32>
    %276 = math.tanh %275 : vector<8x32xf32>
    %277 = arith.mulf %272, %276 : vector<8x32xf32>
    %278 = arith.index_cast %c4_i32 : i32 to index
    %c0_80 = arith.constant 0 : index
    %c0_81 = arith.constant 0 : index
    %279 = vector.load %arg23[%278, %c0_80, %c0_81] : memref<8x8x32xf32, #tpu.memory_space<vmem>>, vector<1x8x32xf32>
    %280 = vector.shape_cast %279 : vector<1x8x32xf32> to vector<8x32xf32>
    %281 = vector.shape_cast %259 : vector<8x32xf32> to vector<1x8x32xf32>
    tpu.vector_store %arg23[%278, %c0_80, %c0_81], %281 {strides = array<i32>} : memref<8x8x32xf32, #tpu.memory_space<vmem>>, vector<1x8x32xf32>,
    %282 = arith.index_cast %233 : i32 to index
    %c0_82 = arith.constant 0 : index
    %c0_83 = arith.constant 0 : index
    %283 = vector.load %arg24[%282, %c0_82, %c0_83] : memref<8x8x32xf32, #tpu.memory_space<vmem>>, vector<1x8x32xf32>
    %284 = vector.shape_cast %283 : vector<1x8x32xf32> to vector<8x32xf32>
    %285 = vector.shape_cast %277 : vector<8x32xf32> to vector<1x8x32xf32>
    tpu.vector_store %arg24[%282, %c0_82, %c0_83], %285 {strides = array<i32>} : memref<8x8x32xf32, #tpu.memory_space<vmem>>, vector<1x8x32xf32>,
    %c5_i32 = arith.constant 5 : i32
    %c7_i32_84 = arith.constant 7 : i32
    %286 = arith.subi %c7_i32_84, %c5_i32 : i32
    %287 = arith.index_cast %c5_i32 : i32 to index
    %c0_85 = arith.constant 0 : index
    %c0_86 = arith.constant 0 : index
    %288 = vector.load %arg21[%287, %c0_85, %c0_86] : memref<8x8x128xf32, #tpu.memory_space<vmem>>, vector<1x8x128xf32>
    %289 = vector.shape_cast %288 : vector<1x8x128xf32> to vector<8x128xf32>
    %290 = arith.index_cast %286 : i32 to index
    %c0_87 = arith.constant 0 : index
    %c0_88 = arith.constant 0 : index
    %291 = vector.load %arg22[%290, %c0_87, %c0_88] : memref<8x8x128xf32, #tpu.memory_space<vmem>>, vector<1x8x128xf32>
    %292 = vector.shape_cast %291 : vector<1x8x128xf32> to vector<8x128xf32>
    %293 = tpu.concatenate %259, %277 in 1 : vector<8x32xf32>, vector<8x32xf32> -> vector<8x64xf32>
    %cst_89 = arith.constant dense<0.000000e+00> : vector<8x256xf32>
    %294 = tpu.matmul %293, %17, %cst_89 {dimension_numbers = #tpu.dot_dimension_numbers<[1], [0], [0], [1], [0, 0, 1, 1], [], []>} : vector<8x64xf32>, vector<64x256xf32>, vector<8x256xf32> -> vector<8x256xf32>
    %295 = vector.extract_strided_slice %294 {offsets = [0, 0], sizes = [8, 128], strides = [1, 1]} : vector<8x256xf32> to vector<8x128xf32>
    %296 = arith.addf %295, %289 : vector<8x128xf32>
    %297 = vector.extract_strided_slice %296 {offsets = [0, 0], sizes = [8, 96], strides = [1, 1]} : vector<8x128xf32> to vector<8x96xf32>
    %298 = arith.negf %297 : vector<8x96xf32>
    %299 = math.exp %298 : vector<8x96xf32>
    %cst_90 = arith.constant 1.000000e+00 : f32
    %300 = vector.broadcast %cst_90 : f32 to vector<8x96xf32>
    %301 = arith.addf %300, %299 : vector<8x96xf32>
    %302 = arith.divf %300, %301 : vector<8x96xf32>
    %303 = vector.extract_strided_slice %296 {offsets = [0, 96], sizes = [8, 32], strides = [1, 1]} : vector<8x128xf32> to vector<8x32xf32>
    %304 = math.tanh %303 : vector<8x32xf32>
    %305 = vector.extract_strided_slice %302 {offsets = [0, 0], sizes = [8, 32], strides = [1, 1]} : vector<8x96xf32> to vector<8x32xf32>
    %306 = vector.extract_strided_slice %302 {offsets = [0, 32], sizes = [8, 32], strides = [1, 1]} : vector<8x96xf32> to vector<8x32xf32>
    %307 = vector.extract_strided_slice %302 {offsets = [0, 64], sizes = [8, 32], strides = [1, 1]} : vector<8x96xf32> to vector<8x32xf32>
    %308 = arith.mulf %306, %257 : vector<8x32xf32>
    %309 = arith.mulf %305, %304 : vector<8x32xf32>
    %310 = arith.addf %308, %309 : vector<8x32xf32>
    %311 = math.tanh %310 : vector<8x32xf32>
    %312 = arith.mulf %307, %311 : vector<8x32xf32>
    %313 = vector.extract_strided_slice %294 {offsets = [0, 128], sizes = [8, 128], strides = [1, 1]} : vector<8x256xf32> to vector<8x128xf32>
    %314 = arith.addf %313, %292 : vector<8x128xf32>
    %315 = vector.extract_strided_slice %314 {offsets = [0, 0], sizes = [8, 96], strides = [1, 1]} : vector<8x128xf32> to vector<8x96xf32>
    %316 = arith.negf %315 : vector<8x96xf32>
    %317 = math.exp %316 : vector<8x96xf32>
    %cst_91 = arith.constant 1.000000e+00 : f32
    %318 = vector.broadcast %cst_91 : f32 to vector<8x96xf32>
    %319 = arith.addf %318, %317 : vector<8x96xf32>
    %320 = arith.divf %318, %319 : vector<8x96xf32>
    %321 = vector.extract_strided_slice %314 {offsets = [0, 96], sizes = [8, 32], strides = [1, 1]} : vector<8x128xf32> to vector<8x32xf32>
    %322 = math.tanh %321 : vector<8x32xf32>
    %323 = vector.extract_strided_slice %320 {offsets = [0, 0], sizes = [8, 32], strides = [1, 1]} : vector<8x96xf32> to vector<8x32xf32>
    %324 = vector.extract_strided_slice %320 {offsets = [0, 32], sizes = [8, 32], strides = [1, 1]} : vector<8x96xf32> to vector<8x32xf32>
    %325 = vector.extract_strided_slice %320 {offsets = [0, 64], sizes = [8, 32], strides = [1, 1]} : vector<8x96xf32> to vector<8x32xf32>
    %326 = arith.mulf %324, %275 : vector<8x32xf32>
    %327 = arith.mulf %323, %322 : vector<8x32xf32>
    %328 = arith.addf %326, %327 : vector<8x32xf32>
    %329 = math.tanh %328 : vector<8x32xf32>
    %330 = arith.mulf %325, %329 : vector<8x32xf32>
    %331 = arith.index_cast %c5_i32 : i32 to index
    %c0_92 = arith.constant 0 : index
    %c0_93 = arith.constant 0 : index
    %332 = vector.load %arg23[%331, %c0_92, %c0_93] : memref<8x8x32xf32, #tpu.memory_space<vmem>>, vector<1x8x32xf32>
    %333 = vector.shape_cast %332 : vector<1x8x32xf32> to vector<8x32xf32>
    %334 = vector.shape_cast %312 : vector<8x32xf32> to vector<1x8x32xf32>
    tpu.vector_store %arg23[%331, %c0_92, %c0_93], %334 {strides = array<i32>} : memref<8x8x32xf32, #tpu.memory_space<vmem>>, vector<1x8x32xf32>,
    %335 = arith.index_cast %286 : i32 to index
    %c0_94 = arith.constant 0 : index
    %c0_95 = arith.constant 0 : index
    %336 = vector.load %arg24[%335, %c0_94, %c0_95] : memref<8x8x32xf32, #tpu.memory_space<vmem>>, vector<1x8x32xf32>
    %337 = vector.shape_cast %336 : vector<1x8x32xf32> to vector<8x32xf32>
    %338 = vector.shape_cast %330 : vector<8x32xf32> to vector<1x8x32xf32>
    tpu.vector_store %arg24[%335, %c0_94, %c0_95], %338 {strides = array<i32>} : memref<8x8x32xf32, #tpu.memory_space<vmem>>, vector<1x8x32xf32>,
    %c6_i32 = arith.constant 6 : i32
    %c7_i32_96 = arith.constant 7 : i32
    %339 = arith.subi %c7_i32_96, %c6_i32 : i32
    %340 = arith.index_cast %c6_i32 : i32 to index
    %c0_97 = arith.constant 0 : index
    %c0_98 = arith.constant 0 : index
    %341 = vector.load %arg21[%340, %c0_97, %c0_98] : memref<8x8x128xf32, #tpu.memory_space<vmem>>, vector<1x8x128xf32>
    %342 = vector.shape_cast %341 : vector<1x8x128xf32> to vector<8x128xf32>
    %343 = arith.index_cast %339 : i32 to index
    %c0_99 = arith.constant 0 : index
    %c0_100 = arith.constant 0 : index
    %344 = vector.load %arg22[%343, %c0_99, %c0_100] : memref<8x8x128xf32, #tpu.memory_space<vmem>>, vector<1x8x128xf32>
    %345 = vector.shape_cast %344 : vector<1x8x128xf32> to vector<8x128xf32>
    %346 = tpu.concatenate %312, %330 in 1 : vector<8x32xf32>, vector<8x32xf32> -> vector<8x64xf32>
    %cst_101 = arith.constant dense<0.000000e+00> : vector<8x256xf32>
    %347 = tpu.matmul %346, %17, %cst_101 {dimension_numbers = #tpu.dot_dimension_numbers<[1], [0], [0], [1], [0, 0, 1, 1], [], []>} : vector<8x64xf32>, vector<64x256xf32>, vector<8x256xf32> -> vector<8x256xf32>
    %348 = vector.extract_strided_slice %347 {offsets = [0, 0], sizes = [8, 128], strides = [1, 1]} : vector<8x256xf32> to vector<8x128xf32>
    %349 = arith.addf %348, %342 : vector<8x128xf32>
    %350 = vector.extract_strided_slice %349 {offsets = [0, 0], sizes = [8, 96], strides = [1, 1]} : vector<8x128xf32> to vector<8x96xf32>
    %351 = arith.negf %350 : vector<8x96xf32>
    %352 = math.exp %351 : vector<8x96xf32>
    %cst_102 = arith.constant 1.000000e+00 : f32
    %353 = vector.broadcast %cst_102 : f32 to vector<8x96xf32>
    %354 = arith.addf %353, %352 : vector<8x96xf32>
    %355 = arith.divf %353, %354 : vector<8x96xf32>
    %356 = vector.extract_strided_slice %349 {offsets = [0, 96], sizes = [8, 32], strides = [1, 1]} : vector<8x128xf32> to vector<8x32xf32>
    %357 = math.tanh %356 : vector<8x32xf32>
    %358 = vector.extract_strided_slice %355 {offsets = [0, 0], sizes = [8, 32], strides = [1, 1]} : vector<8x96xf32> to vector<8x32xf32>
    %359 = vector.extract_strided_slice %355 {offsets = [0, 32], sizes = [8, 32], strides = [1, 1]} : vector<8x96xf32> to vector<8x32xf32>
    %360 = vector.extract_strided_slice %355 {offsets = [0, 64], sizes = [8, 32], strides = [1, 1]} : vector<8x96xf32> to vector<8x32xf32>
    %361 = arith.mulf %359, %310 : vector<8x32xf32>
    %362 = arith.mulf %358, %357 : vector<8x32xf32>
    %363 = arith.addf %361, %362 : vector<8x32xf32>
    %364 = math.tanh %363 : vector<8x32xf32>
    %365 = arith.mulf %360, %364 : vector<8x32xf32>
    %366 = vector.extract_strided_slice %347 {offsets = [0, 128], sizes = [8, 128], strides = [1, 1]} : vector<8x256xf32> to vector<8x128xf32>
    %367 = arith.addf %366, %345 : vector<8x128xf32>
    %368 = vector.extract_strided_slice %367 {offsets = [0, 0], sizes = [8, 96], strides = [1, 1]} : vector<8x128xf32> to vector<8x96xf32>
    %369 = arith.negf %368 : vector<8x96xf32>
    %370 = math.exp %369 : vector<8x96xf32>
    %cst_103 = arith.constant 1.000000e+00 : f32
    %371 = vector.broadcast %cst_103 : f32 to vector<8x96xf32>
    %372 = arith.addf %371, %370 : vector<8x96xf32>
    %373 = arith.divf %371, %372 : vector<8x96xf32>
    %374 = vector.extract_strided_slice %367 {offsets = [0, 96], sizes = [8, 32], strides = [1, 1]} : vector<8x128xf32> to vector<8x32xf32>
    %375 = math.tanh %374 : vector<8x32xf32>
    %376 = vector.extract_strided_slice %373 {offsets = [0, 0], sizes = [8, 32], strides = [1, 1]} : vector<8x96xf32> to vector<8x32xf32>
    %377 = vector.extract_strided_slice %373 {offsets = [0, 32], sizes = [8, 32], strides = [1, 1]} : vector<8x96xf32> to vector<8x32xf32>
    %378 = vector.extract_strided_slice %373 {offsets = [0, 64], sizes = [8, 32], strides = [1, 1]} : vector<8x96xf32> to vector<8x32xf32>
    %379 = arith.mulf %377, %328 : vector<8x32xf32>
    %380 = arith.mulf %376, %375 : vector<8x32xf32>
    %381 = arith.addf %379, %380 : vector<8x32xf32>
    %382 = math.tanh %381 : vector<8x32xf32>
    %383 = arith.mulf %378, %382 : vector<8x32xf32>
    %384 = arith.index_cast %c6_i32 : i32 to index
    %c0_104 = arith.constant 0 : index
    %c0_105 = arith.constant 0 : index
    %385 = vector.load %arg23[%384, %c0_104, %c0_105] : memref<8x8x32xf32, #tpu.memory_space<vmem>>, vector<1x8x32xf32>
    %386 = vector.shape_cast %385 : vector<1x8x32xf32> to vector<8x32xf32>
    %387 = vector.shape_cast %365 : vector<8x32xf32> to vector<1x8x32xf32>
    tpu.vector_store %arg23[%384, %c0_104, %c0_105], %387 {strides = array<i32>} : memref<8x8x32xf32, #tpu.memory_space<vmem>>, vector<1x8x32xf32>,
    %388 = arith.index_cast %339 : i32 to index
    %c0_106 = arith.constant 0 : index
    %c0_107 = arith.constant 0 : index
    %389 = vector.load %arg24[%388, %c0_106, %c0_107] : memref<8x8x32xf32, #tpu.memory_space<vmem>>, vector<1x8x32xf32>
    %390 = vector.shape_cast %389 : vector<1x8x32xf32> to vector<8x32xf32>
    %391 = vector.shape_cast %383 : vector<8x32xf32> to vector<1x8x32xf32>
    tpu.vector_store %arg24[%388, %c0_106, %c0_107], %391 {strides = array<i32>} : memref<8x8x32xf32, #tpu.memory_space<vmem>>, vector<1x8x32xf32>,
    %c7_i32_108 = arith.constant 7 : i32
    %c7_i32_109 = arith.constant 7 : i32
    %392 = arith.subi %c7_i32_109, %c7_i32_108 : i32
    %393 = arith.index_cast %c7_i32_108 : i32 to index
    %c0_110 = arith.constant 0 : index
    %c0_111 = arith.constant 0 : index
    %394 = vector.load %arg21[%393, %c0_110, %c0_111] : memref<8x8x128xf32, #tpu.memory_space<vmem>>, vector<1x8x128xf32>
    %395 = vector.shape_cast %394 : vector<1x8x128xf32> to vector<8x128xf32>
    %396 = arith.index_cast %392 : i32 to index
    %c0_112 = arith.constant 0 : index
    %c0_113 = arith.constant 0 : index
    %397 = vector.load %arg22[%396, %c0_112, %c0_113] : memref<8x8x128xf32, #tpu.memory_space<vmem>>, vector<1x8x128xf32>
    %398 = vector.shape_cast %397 : vector<1x8x128xf32> to vector<8x128xf32>
    %399 = tpu.concatenate %365, %383 in 1 : vector<8x32xf32>, vector<8x32xf32> -> vector<8x64xf32>
    %cst_114 = arith.constant dense<0.000000e+00> : vector<8x256xf32>
    %400 = tpu.matmul %399, %17, %cst_114 {dimension_numbers = #tpu.dot_dimension_numbers<[1], [0], [0], [1], [0, 0, 1, 1], [], []>} : vector<8x64xf32>, vector<64x256xf32>, vector<8x256xf32> -> vector<8x256xf32>
    %401 = vector.extract_strided_slice %400 {offsets = [0, 0], sizes = [8, 128], strides = [1, 1]} : vector<8x256xf32> to vector<8x128xf32>
    %402 = arith.addf %401, %395 : vector<8x128xf32>
    %403 = vector.extract_strided_slice %402 {offsets = [0, 0], sizes = [8, 96], strides = [1, 1]} : vector<8x128xf32> to vector<8x96xf32>
    %404 = arith.negf %403 : vector<8x96xf32>
    %405 = math.exp %404 : vector<8x96xf32>
    %cst_115 = arith.constant 1.000000e+00 : f32
    %406 = vector.broadcast %cst_115 : f32 to vector<8x96xf32>
    %407 = arith.addf %406, %405 : vector<8x96xf32>
    %408 = arith.divf %406, %407 : vector<8x96xf32>
    %409 = vector.extract_strided_slice %402 {offsets = [0, 96], sizes = [8, 32], strides = [1, 1]} : vector<8x128xf32> to vector<8x32xf32>
    %410 = math.tanh %409 : vector<8x32xf32>
    %411 = vector.extract_strided_slice %408 {offsets = [0, 0], sizes = [8, 32], strides = [1, 1]} : vector<8x96xf32> to vector<8x32xf32>
    %412 = vector.extract_strided_slice %408 {offsets = [0, 32], sizes = [8, 32], strides = [1, 1]} : vector<8x96xf32> to vector<8x32xf32>
    %413 = vector.extract_strided_slice %408 {offsets = [0, 64], sizes = [8, 32], strides = [1, 1]} : vector<8x96xf32> to vector<8x32xf32>
    %414 = arith.mulf %412, %363 : vector<8x32xf32>
    %415 = arith.mulf %411, %410 : vector<8x32xf32>
    %416 = arith.addf %414, %415 : vector<8x32xf32>
    %417 = math.tanh %416 : vector<8x32xf32>
    %418 = arith.mulf %413, %417 : vector<8x32xf32>
    %419 = vector.extract_strided_slice %400 {offsets = [0, 128], sizes = [8, 128], strides = [1, 1]} : vector<8x256xf32> to vector<8x128xf32>
    %420 = arith.addf %419, %398 : vector<8x128xf32>
    %421 = vector.extract_strided_slice %420 {offsets = [0, 0], sizes = [8, 96], strides = [1, 1]} : vector<8x128xf32> to vector<8x96xf32>
    %422 = arith.negf %421 : vector<8x96xf32>
    %423 = math.exp %422 : vector<8x96xf32>
    %cst_116 = arith.constant 1.000000e+00 : f32
    %424 = vector.broadcast %cst_116 : f32 to vector<8x96xf32>
    %425 = arith.addf %424, %423 : vector<8x96xf32>
    %426 = arith.divf %424, %425 : vector<8x96xf32>
    %427 = vector.extract_strided_slice %420 {offsets = [0, 96], sizes = [8, 32], strides = [1, 1]} : vector<8x128xf32> to vector<8x32xf32>
    %428 = math.tanh %427 : vector<8x32xf32>
    %429 = vector.extract_strided_slice %426 {offsets = [0, 0], sizes = [8, 32], strides = [1, 1]} : vector<8x96xf32> to vector<8x32xf32>
    %430 = vector.extract_strided_slice %426 {offsets = [0, 32], sizes = [8, 32], strides = [1, 1]} : vector<8x96xf32> to vector<8x32xf32>
    %431 = vector.extract_strided_slice %426 {offsets = [0, 64], sizes = [8, 32], strides = [1, 1]} : vector<8x96xf32> to vector<8x32xf32>
    %432 = arith.mulf %430, %381 : vector<8x32xf32>
    %433 = arith.mulf %429, %428 : vector<8x32xf32>
    %434 = arith.addf %432, %433 : vector<8x32xf32>
    %435 = math.tanh %434 : vector<8x32xf32>
    %436 = arith.mulf %431, %435 : vector<8x32xf32>
    %437 = arith.index_cast %c7_i32_108 : i32 to index
    %c0_117 = arith.constant 0 : index
    %c0_118 = arith.constant 0 : index
    %438 = vector.load %arg23[%437, %c0_117, %c0_118] : memref<8x8x32xf32, #tpu.memory_space<vmem>>, vector<1x8x32xf32>
    %439 = vector.shape_cast %438 : vector<1x8x32xf32> to vector<8x32xf32>
    %440 = vector.shape_cast %418 : vector<8x32xf32> to vector<1x8x32xf32>
    tpu.vector_store %arg23[%437, %c0_117, %c0_118], %440 {strides = array<i32>} : memref<8x8x32xf32, #tpu.memory_space<vmem>>, vector<1x8x32xf32>,
    %441 = arith.index_cast %392 : i32 to index
    %c0_119 = arith.constant 0 : index
    %c0_120 = arith.constant 0 : index
    %442 = vector.load %arg24[%441, %c0_119, %c0_120] : memref<8x8x32xf32, #tpu.memory_space<vmem>>, vector<1x8x32xf32>
    %443 = vector.shape_cast %442 : vector<1x8x32xf32> to vector<8x32xf32>
    %444 = vector.shape_cast %436 : vector<8x32xf32> to vector<1x8x32xf32>
    tpu.vector_store %arg24[%441, %c0_119, %c0_120], %444 {strides = array<i32>} : memref<8x8x32xf32, #tpu.memory_space<vmem>>, vector<1x8x32xf32>,
    %c8_i32 = arith.constant 8 : i32
    %c0_121 = arith.constant 0 : index
    %c0_122 = arith.constant 0 : index
    %c0_123 = arith.constant 0 : index
    %445 = vector.load %arg23[%c0_121, %c0_122, %c0_123] : memref<8x8x32xf32, #tpu.memory_space<vmem>>, vector<8x8x32xf32>
    %446 = vector.shape_cast %445 : vector<8x8x32xf32> to vector<64x32xf32>
    %c0_124 = arith.constant 0 : index
    %c0_125 = arith.constant 0 : index
    %c0_126 = arith.constant 0 : index
    %447 = vector.load %arg24[%c0_124, %c0_125, %c0_126] : memref<8x8x32xf32, #tpu.memory_space<vmem>>, vector<8x8x32xf32>
    %448 = vector.shape_cast %447 : vector<8x8x32xf32> to vector<64x32xf32>
    %c0_127 = arith.constant 0 : index
    %c0_128 = arith.constant 0 : index
    %449 = vector.load %arg8[%c0_127, %c0_128] : memref<32x64xf32, #tpu.memory_space<vmem>>, vector<32x64xf32>
    %cst_129 = arith.constant dense<0.000000e+00> : vector<64x64xf32>
    %450 = tpu.matmul %446, %449, %cst_129 {dimension_numbers = #tpu.dot_dimension_numbers<[1], [0], [0], [1], [0, 0, 1, 1], [], []>} : vector<64x32xf32>, vector<32x64xf32>, vector<64x64xf32> -> vector<64x64xf32>
    %c0_130 = arith.constant 0 : index
    %c0_131 = arith.constant 0 : index
    %451 = vector.load %arg9[%c0_130, %c0_131] : memref<32x64xf32, #tpu.memory_space<vmem>>, vector<32x64xf32>
    %cst_132 = arith.constant dense<0.000000e+00> : vector<64x64xf32>
    %452 = tpu.matmul %448, %451, %cst_132 {dimension_numbers = #tpu.dot_dimension_numbers<[1], [0], [0], [1], [0, 0, 1, 1], [], []>} : vector<64x32xf32>, vector<32x64xf32>, vector<64x64xf32> -> vector<64x64xf32>
    %453 = arith.addf %450, %452 : vector<64x64xf32>
    %c0_133 = arith.constant 0 : index
    %c0_134 = arith.constant 0 : index
    %454 = vector.load %arg12[%c0_133, %c0_134] : memref<1x64xf32, #tpu.memory_space<vmem>>, vector<1x64xf32>
    %455 = vector.broadcast %454 : vector<1x64xf32> to vector<64x64xf32>
    %456 = arith.addf %453, %455 : vector<64x64xf32>
    %c0_135 = arith.constant 0 : index
    %c0_136 = arith.constant 0 : index
    %457 = vector.load %arg10[%c0_135, %c0_136] : memref<32x64xf32, #tpu.memory_space<vmem>>, vector<32x64xf32>
    %cst_137 = arith.constant dense<0.000000e+00> : vector<64x64xf32>
    %458 = tpu.matmul %446, %457, %cst_137 {dimension_numbers = #tpu.dot_dimension_numbers<[1], [0], [0], [1], [0, 0, 1, 1], [], []>} : vector<64x32xf32>, vector<32x64xf32>, vector<64x64xf32> -> vector<64x64xf32>
    %c0_138 = arith.constant 0 : index
    %c0_139 = arith.constant 0 : index
    %459 = vector.load %arg11[%c0_138, %c0_139] : memref<32x64xf32, #tpu.memory_space<vmem>>, vector<32x64xf32>
    %cst_140 = arith.constant dense<0.000000e+00> : vector<64x64xf32>
    %460 = tpu.matmul %448, %459, %cst_140 {dimension_numbers = #tpu.dot_dimension_numbers<[1], [0], [0], [1], [0, 0, 1, 1], [], []>} : vector<64x32xf32>, vector<32x64xf32>, vector<64x64xf32> -> vector<64x64xf32>
    %461 = arith.addf %458, %460 : vector<64x64xf32>
    %c0_141 = arith.constant 0 : index
    %c0_142 = arith.constant 0 : index
    %462 = vector.load %arg13[%c0_141, %c0_142] : memref<1x64xf32, #tpu.memory_space<vmem>>, vector<1x64xf32>
    %463 = vector.broadcast %462 : vector<1x64xf32> to vector<64x64xf32>
    %464 = arith.addf %461, %463 : vector<64x64xf32>
    %465 = vector.shape_cast %456 : vector<64x64xf32> to vector<8x8x64xf32>
    %c0_143 = arith.constant 0 : index
    %c0_144 = arith.constant 0 : index
    %c0_145 = arith.constant 0 : index
    %466 = vector.load %arg25[%c0_143, %c0_144, %c0_145] : memref<8x8x64xf32, #tpu.memory_space<vmem>>, vector<8x8x64xf32>
    tpu.vector_store %arg25[%c0_143, %c0_144, %c0_145], %465 {strides = array<i32>} : memref<8x8x64xf32, #tpu.memory_space<vmem>>, vector<8x8x64xf32>,
    %467 = vector.shape_cast %464 : vector<64x64xf32> to vector<8x8x64xf32>
    %c0_146 = arith.constant 0 : index
    %c0_147 = arith.constant 0 : index
    %c0_148 = arith.constant 0 : index
    %468 = vector.load %arg26[%c0_146, %c0_147, %c0_148] : memref<8x8x64xf32, #tpu.memory_space<vmem>>, vector<8x8x64xf32>
    tpu.vector_store %arg26[%c0_146, %c0_147, %c0_148], %467 {strides = array<i32>} : memref<8x8x64xf32, #tpu.memory_space<vmem>>, vector<8x8x64xf32>,
    %c0_i32_149 = arith.constant 0 : i32
    %c7_i32_150 = arith.constant 7 : i32
    %469 = arith.subi %c7_i32_150, %c0_i32_149 : i32
    %470 = arith.index_cast %c0_i32_149 : i32 to index
    %c0_151 = arith.constant 0 : index
    %c0_152 = arith.constant 0 : index
    %471 = vector.load %arg25[%470, %c0_151, %c0_152] : memref<8x8x64xf32, #tpu.memory_space<vmem>>, vector<1x8x64xf32>
    %472 = vector.shape_cast %471 : vector<1x8x64xf32> to vector<8x64xf32>
    %473 = arith.index_cast %469 : i32 to index
    %c0_153 = arith.constant 0 : index
    %c0_154 = arith.constant 0 : index
    %474 = vector.load %arg26[%473, %c0_153, %c0_154] : memref<8x8x64xf32, #tpu.memory_space<vmem>>, vector<1x8x64xf32>
    %475 = vector.shape_cast %474 : vector<1x8x64xf32> to vector<8x64xf32>
    %476 = tpu.concatenate %20, %20 in 1 : vector<8x16xf32>, vector<8x16xf32> -> vector<8x32xf32>
    %cst_155 = arith.constant dense<0.000000e+00> : vector<8x128xf32>
    %477 = tpu.matmul %476, %18, %cst_155 {dimension_numbers = #tpu.dot_dimension_numbers<[1], [0], [0], [1], [0, 0, 1, 1], [], []>} : vector<8x32xf32>, vector<32x128xf32>, vector<8x128xf32> -> vector<8x128xf32>
    %478 = vector.extract_strided_slice %477 {offsets = [0, 0], sizes = [8, 64], strides = [1, 1]} : vector<8x128xf32> to vector<8x64xf32>
    %479 = arith.addf %478, %472 : vector<8x64xf32>
    %480 = vector.extract_strided_slice %479 {offsets = [0, 0], sizes = [8, 48], strides = [1, 1]} : vector<8x64xf32> to vector<8x48xf32>
    %481 = arith.negf %480 : vector<8x48xf32>
    %482 = math.exp %481 : vector<8x48xf32>
    %cst_156 = arith.constant 1.000000e+00 : f32
    %483 = vector.broadcast %cst_156 : f32 to vector<8x48xf32>
    %484 = arith.addf %483, %482 : vector<8x48xf32>
    %485 = arith.divf %483, %484 : vector<8x48xf32>
    %486 = vector.extract_strided_slice %479 {offsets = [0, 48], sizes = [8, 16], strides = [1, 1]} : vector<8x64xf32> to vector<8x16xf32>
    %487 = math.tanh %486 : vector<8x16xf32>
    %488 = vector.extract_strided_slice %485 {offsets = [0, 0], sizes = [8, 16], strides = [1, 1]} : vector<8x48xf32> to vector<8x16xf32>
    %489 = vector.extract_strided_slice %485 {offsets = [0, 16], sizes = [8, 16], strides = [1, 1]} : vector<8x48xf32> to vector<8x16xf32>
    %490 = vector.extract_strided_slice %485 {offsets = [0, 32], sizes = [8, 16], strides = [1, 1]} : vector<8x48xf32> to vector<8x16xf32>
    %491 = arith.mulf %489, %20 : vector<8x16xf32>
    %492 = arith.mulf %488, %487 : vector<8x16xf32>
    %493 = arith.addf %491, %492 : vector<8x16xf32>
    %494 = math.tanh %493 : vector<8x16xf32>
    %495 = arith.mulf %490, %494 : vector<8x16xf32>
    %496 = vector.extract_strided_slice %477 {offsets = [0, 64], sizes = [8, 64], strides = [1, 1]} : vector<8x128xf32> to vector<8x64xf32>
    %497 = arith.addf %496, %475 : vector<8x64xf32>
    %498 = vector.extract_strided_slice %497 {offsets = [0, 0], sizes = [8, 48], strides = [1, 1]} : vector<8x64xf32> to vector<8x48xf32>
    %499 = arith.negf %498 : vector<8x48xf32>
    %500 = math.exp %499 : vector<8x48xf32>
    %cst_157 = arith.constant 1.000000e+00 : f32
    %501 = vector.broadcast %cst_157 : f32 to vector<8x48xf32>
    %502 = arith.addf %501, %500 : vector<8x48xf32>
    %503 = arith.divf %501, %502 : vector<8x48xf32>
    %504 = vector.extract_strided_slice %497 {offsets = [0, 48], sizes = [8, 16], strides = [1, 1]} : vector<8x64xf32> to vector<8x16xf32>
    %505 = math.tanh %504 : vector<8x16xf32>
    %506 = vector.extract_strided_slice %503 {offsets = [0, 0], sizes = [8, 16], strides = [1, 1]} : vector<8x48xf32> to vector<8x16xf32>
    %507 = vector.extract_strided_slice %503 {offsets = [0, 16], sizes = [8, 16], strides = [1, 1]} : vector<8x48xf32> to vector<8x16xf32>
    %508 = vector.extract_strided_slice %503 {offsets = [0, 32], sizes = [8, 16], strides = [1, 1]} : vector<8x48xf32> to vector<8x16xf32>
    %509 = arith.mulf %507, %20 : vector<8x16xf32>
    %510 = arith.mulf %506, %505 : vector<8x16xf32>
    %511 = arith.addf %509, %510 : vector<8x16xf32>
    %512 = math.tanh %511 : vector<8x16xf32>
    %513 = arith.mulf %508, %512 : vector<8x16xf32>
    %514 = vector.broadcast %c0_i32_149 : i32 to vector<8x1xi32>
    %515 = arith.cmpi slt, %514, %16 : vector<8x1xi32>
    %516 = vector.shape_cast %515 : vector<8x1xi1> to vector<8x1xi1>
    %517 = vector.broadcast %516 : vector<8x1xi1> to vector<8x16xi1>
    %518 = arith.select %517, %495, %20 : vector<8x16xi1>, vector<8x16xf32>
    %519 = vector.broadcast %469 : i32 to vector<8x1xi32>
    %520 = arith.cmpi slt, %519, %16 : vector<8x1xi32>
    %cst_158 = arith.constant 0.000000e+00 : f32
    %521 = vector.shape_cast %520 : vector<8x1xi1> to vector<8x1xi1>
    %522 = vector.broadcast %521 : vector<8x1xi1> to vector<8x16xi1>
    %523 = vector.broadcast %cst_158 : f32 to vector<8x16xf32>
    %524 = arith.select %522, %513, %523 : vector<8x16xi1>, vector<8x16xf32>
    %cst_159 = arith.constant 0.000000e+00 : f32
    %525 = vector.shape_cast %520 : vector<8x1xi1> to vector<8x1xi1>
    %526 = vector.broadcast %525 : vector<8x1xi1> to vector<8x16xi1>
    %527 = vector.broadcast %cst_159 : f32 to vector<8x16xf32>
    %528 = arith.select %526, %511, %527 : vector<8x16xi1>, vector<8x16xf32>
    %c1_i32_160 = arith.constant 1 : i32
    %c7_i32_161 = arith.constant 7 : i32
    %529 = arith.subi %c7_i32_161, %c1_i32_160 : i32
    %530 = arith.index_cast %c1_i32_160 : i32 to index
    %c0_162 = arith.constant 0 : index
    %c0_163 = arith.constant 0 : index
    %531 = vector.load %arg25[%530, %c0_162, %c0_163] : memref<8x8x64xf32, #tpu.memory_space<vmem>>, vector<1x8x64xf32>
    %532 = vector.shape_cast %531 : vector<1x8x64xf32> to vector<8x64xf32>
    %533 = arith.index_cast %529 : i32 to index
    %c0_164 = arith.constant 0 : index
    %c0_165 = arith.constant 0 : index
    %534 = vector.load %arg26[%533, %c0_164, %c0_165] : memref<8x8x64xf32, #tpu.memory_space<vmem>>, vector<1x8x64xf32>
    %535 = vector.shape_cast %534 : vector<1x8x64xf32> to vector<8x64xf32>
    %536 = tpu.concatenate %495, %524 in 1 : vector<8x16xf32>, vector<8x16xf32> -> vector<8x32xf32>
    %cst_166 = arith.constant dense<0.000000e+00> : vector<8x128xf32>
    %537 = tpu.matmul %536, %18, %cst_166 {dimension_numbers = #tpu.dot_dimension_numbers<[1], [0], [0], [1], [0, 0, 1, 1], [], []>} : vector<8x32xf32>, vector<32x128xf32>, vector<8x128xf32> -> vector<8x128xf32>
    %538 = vector.extract_strided_slice %537 {offsets = [0, 0], sizes = [8, 64], strides = [1, 1]} : vector<8x128xf32> to vector<8x64xf32>
    %539 = arith.addf %538, %532 : vector<8x64xf32>
    %540 = vector.extract_strided_slice %539 {offsets = [0, 0], sizes = [8, 48], strides = [1, 1]} : vector<8x64xf32> to vector<8x48xf32>
    %541 = arith.negf %540 : vector<8x48xf32>
    %542 = math.exp %541 : vector<8x48xf32>
    %cst_167 = arith.constant 1.000000e+00 : f32
    %543 = vector.broadcast %cst_167 : f32 to vector<8x48xf32>
    %544 = arith.addf %543, %542 : vector<8x48xf32>
    %545 = arith.divf %543, %544 : vector<8x48xf32>
    %546 = vector.extract_strided_slice %539 {offsets = [0, 48], sizes = [8, 16], strides = [1, 1]} : vector<8x64xf32> to vector<8x16xf32>
    %547 = math.tanh %546 : vector<8x16xf32>
    %548 = vector.extract_strided_slice %545 {offsets = [0, 0], sizes = [8, 16], strides = [1, 1]} : vector<8x48xf32> to vector<8x16xf32>
    %549 = vector.extract_strided_slice %545 {offsets = [0, 16], sizes = [8, 16], strides = [1, 1]} : vector<8x48xf32> to vector<8x16xf32>
    %550 = vector.extract_strided_slice %545 {offsets = [0, 32], sizes = [8, 16], strides = [1, 1]} : vector<8x48xf32> to vector<8x16xf32>
    %551 = arith.mulf %549, %493 : vector<8x16xf32>
    %552 = arith.mulf %548, %547 : vector<8x16xf32>
    %553 = arith.addf %551, %552 : vector<8x16xf32>
    %554 = math.tanh %553 : vector<8x16xf32>
    %555 = arith.mulf %550, %554 : vector<8x16xf32>
    %556 = vector.extract_strided_slice %537 {offsets = [0, 64], sizes = [8, 64], strides = [1, 1]} : vector<8x128xf32> to vector<8x64xf32>
    %557 = arith.addf %556, %535 : vector<8x64xf32>
    %558 = vector.extract_strided_slice %557 {offsets = [0, 0], sizes = [8, 48], strides = [1, 1]} : vector<8x64xf32> to vector<8x48xf32>
    %559 = arith.negf %558 : vector<8x48xf32>
    %560 = math.exp %559 : vector<8x48xf32>
    %cst_168 = arith.constant 1.000000e+00 : f32
    %561 = vector.broadcast %cst_168 : f32 to vector<8x48xf32>
    %562 = arith.addf %561, %560 : vector<8x48xf32>
    %563 = arith.divf %561, %562 : vector<8x48xf32>
    %564 = vector.extract_strided_slice %557 {offsets = [0, 48], sizes = [8, 16], strides = [1, 1]} : vector<8x64xf32> to vector<8x16xf32>
    %565 = math.tanh %564 : vector<8x16xf32>
    %566 = vector.extract_strided_slice %563 {offsets = [0, 0], sizes = [8, 16], strides = [1, 1]} : vector<8x48xf32> to vector<8x16xf32>
    %567 = vector.extract_strided_slice %563 {offsets = [0, 16], sizes = [8, 16], strides = [1, 1]} : vector<8x48xf32> to vector<8x16xf32>
    %568 = vector.extract_strided_slice %563 {offsets = [0, 32], sizes = [8, 16], strides = [1, 1]} : vector<8x48xf32> to vector<8x16xf32>
    %569 = arith.mulf %567, %528 : vector<8x16xf32>
    %570 = arith.mulf %566, %565 : vector<8x16xf32>
    %571 = arith.addf %569, %570 : vector<8x16xf32>
    %572 = math.tanh %571 : vector<8x16xf32>
    %573 = arith.mulf %568, %572 : vector<8x16xf32>
    %574 = vector.broadcast %c1_i32_160 : i32 to vector<8x1xi32>
    %575 = arith.cmpi slt, %574, %16 : vector<8x1xi32>
    %576 = vector.shape_cast %575 : vector<8x1xi1> to vector<8x1xi1>
    %577 = vector.broadcast %576 : vector<8x1xi1> to vector<8x16xi1>
    %578 = arith.select %577, %555, %518 : vector<8x16xi1>, vector<8x16xf32>
    %579 = vector.broadcast %529 : i32 to vector<8x1xi32>
    %580 = arith.cmpi slt, %579, %16 : vector<8x1xi32>
    %cst_169 = arith.constant 0.000000e+00 : f32
    %581 = vector.shape_cast %580 : vector<8x1xi1> to vector<8x1xi1>
    %582 = vector.broadcast %581 : vector<8x1xi1> to vector<8x16xi1>
    %583 = vector.broadcast %cst_169 : f32 to vector<8x16xf32>
    %584 = arith.select %582, %573, %583 : vector<8x16xi1>, vector<8x16xf32>
    %cst_170 = arith.constant 0.000000e+00 : f32
    %585 = vector.shape_cast %580 : vector<8x1xi1> to vector<8x1xi1>
    %586 = vector.broadcast %585 : vector<8x1xi1> to vector<8x16xi1>
    %587 = vector.broadcast %cst_170 : f32 to vector<8x16xf32>
    %588 = arith.select %586, %571, %587 : vector<8x16xi1>, vector<8x16xf32>
    %c2_i32_171 = arith.constant 2 : i32
    %c7_i32_172 = arith.constant 7 : i32
    %589 = arith.subi %c7_i32_172, %c2_i32_171 : i32
    %590 = arith.index_cast %c2_i32_171 : i32 to index
    %c0_173 = arith.constant 0 : index
    %c0_174 = arith.constant 0 : index
    %591 = vector.load %arg25[%590, %c0_173, %c0_174] : memref<8x8x64xf32, #tpu.memory_space<vmem>>, vector<1x8x64xf32>
    %592 = vector.shape_cast %591 : vector<1x8x64xf32> to vector<8x64xf32>
    %593 = arith.index_cast %589 : i32 to index
    %c0_175 = arith.constant 0 : index
    %c0_176 = arith.constant 0 : index
    %594 = vector.load %arg26[%593, %c0_175, %c0_176] : memref<8x8x64xf32, #tpu.memory_space<vmem>>, vector<1x8x64xf32>
    %595 = vector.shape_cast %594 : vector<1x8x64xf32> to vector<8x64xf32>
    %596 = tpu.concatenate %555, %584 in 1 : vector<8x16xf32>, vector<8x16xf32> -> vector<8x32xf32>
    %cst_177 = arith.constant dense<0.000000e+00> : vector<8x128xf32>
    %597 = tpu.matmul %596, %18, %cst_177 {dimension_numbers = #tpu.dot_dimension_numbers<[1], [0], [0], [1], [0, 0, 1, 1], [], []>} : vector<8x32xf32>, vector<32x128xf32>, vector<8x128xf32> -> vector<8x128xf32>
    %598 = vector.extract_strided_slice %597 {offsets = [0, 0], sizes = [8, 64], strides = [1, 1]} : vector<8x128xf32> to vector<8x64xf32>
    %599 = arith.addf %598, %592 : vector<8x64xf32>
    %600 = vector.extract_strided_slice %599 {offsets = [0, 0], sizes = [8, 48], strides = [1, 1]} : vector<8x64xf32> to vector<8x48xf32>
    %601 = arith.negf %600 : vector<8x48xf32>
    %602 = math.exp %601 : vector<8x48xf32>
    %cst_178 = arith.constant 1.000000e+00 : f32
    %603 = vector.broadcast %cst_178 : f32 to vector<8x48xf32>
    %604 = arith.addf %603, %602 : vector<8x48xf32>
    %605 = arith.divf %603, %604 : vector<8x48xf32>
    %606 = vector.extract_strided_slice %599 {offsets = [0, 48], sizes = [8, 16], strides = [1, 1]} : vector<8x64xf32> to vector<8x16xf32>
    %607 = math.tanh %606 : vector<8x16xf32>
    %608 = vector.extract_strided_slice %605 {offsets = [0, 0], sizes = [8, 16], strides = [1, 1]} : vector<8x48xf32> to vector<8x16xf32>
    %609 = vector.extract_strided_slice %605 {offsets = [0, 16], sizes = [8, 16], strides = [1, 1]} : vector<8x48xf32> to vector<8x16xf32>
    %610 = vector.extract_strided_slice %605 {offsets = [0, 32], sizes = [8, 16], strides = [1, 1]} : vector<8x48xf32> to vector<8x16xf32>
    %611 = arith.mulf %609, %553 : vector<8x16xf32>
    %612 = arith.mulf %608, %607 : vector<8x16xf32>
    %613 = arith.addf %611, %612 : vector<8x16xf32>
    %614 = math.tanh %613 : vector<8x16xf32>
    %615 = arith.mulf %610, %614 : vector<8x16xf32>
    %616 = vector.extract_strided_slice %597 {offsets = [0, 64], sizes = [8, 64], strides = [1, 1]} : vector<8x128xf32> to vector<8x64xf32>
    %617 = arith.addf %616, %595 : vector<8x64xf32>
    %618 = vector.extract_strided_slice %617 {offsets = [0, 0], sizes = [8, 48], strides = [1, 1]} : vector<8x64xf32> to vector<8x48xf32>
    %619 = arith.negf %618 : vector<8x48xf32>
    %620 = math.exp %619 : vector<8x48xf32>
    %cst_179 = arith.constant 1.000000e+00 : f32
    %621 = vector.broadcast %cst_179 : f32 to vector<8x48xf32>
    %622 = arith.addf %621, %620 : vector<8x48xf32>
    %623 = arith.divf %621, %622 : vector<8x48xf32>
    %624 = vector.extract_strided_slice %617 {offsets = [0, 48], sizes = [8, 16], strides = [1, 1]} : vector<8x64xf32> to vector<8x16xf32>
    %625 = math.tanh %624 : vector<8x16xf32>
    %626 = vector.extract_strided_slice %623 {offsets = [0, 0], sizes = [8, 16], strides = [1, 1]} : vector<8x48xf32> to vector<8x16xf32>
    %627 = vector.extract_strided_slice %623 {offsets = [0, 16], sizes = [8, 16], strides = [1, 1]} : vector<8x48xf32> to vector<8x16xf32>
    %628 = vector.extract_strided_slice %623 {offsets = [0, 32], sizes = [8, 16], strides = [1, 1]} : vector<8x48xf32> to vector<8x16xf32>
    %629 = arith.mulf %627, %588 : vector<8x16xf32>
    %630 = arith.mulf %626, %625 : vector<8x16xf32>
    %631 = arith.addf %629, %630 : vector<8x16xf32>
    %632 = math.tanh %631 : vector<8x16xf32>
    %633 = arith.mulf %628, %632 : vector<8x16xf32>
    %634 = vector.broadcast %c2_i32_171 : i32 to vector<8x1xi32>
    %635 = arith.cmpi slt, %634, %16 : vector<8x1xi32>
    %636 = vector.shape_cast %635 : vector<8x1xi1> to vector<8x1xi1>
    %637 = vector.broadcast %636 : vector<8x1xi1> to vector<8x16xi1>
    %638 = arith.select %637, %615, %578 : vector<8x16xi1>, vector<8x16xf32>
    %639 = vector.broadcast %589 : i32 to vector<8x1xi32>
    %640 = arith.cmpi slt, %639, %16 : vector<8x1xi32>
    %cst_180 = arith.constant 0.000000e+00 : f32
    %641 = vector.shape_cast %640 : vector<8x1xi1> to vector<8x1xi1>
    %642 = vector.broadcast %641 : vector<8x1xi1> to vector<8x16xi1>
    %643 = vector.broadcast %cst_180 : f32 to vector<8x16xf32>
    %644 = arith.select %642, %633, %643 : vector<8x16xi1>, vector<8x16xf32>
    %cst_181 = arith.constant 0.000000e+00 : f32
    %645 = vector.shape_cast %640 : vector<8x1xi1> to vector<8x1xi1>
    %646 = vector.broadcast %645 : vector<8x1xi1> to vector<8x16xi1>
    %647 = vector.broadcast %cst_181 : f32 to vector<8x16xf32>
    %648 = arith.select %646, %631, %647 : vector<8x16xi1>, vector<8x16xf32>
    %c3_i32_182 = arith.constant 3 : i32
    %c7_i32_183 = arith.constant 7 : i32
    %649 = arith.subi %c7_i32_183, %c3_i32_182 : i32
    %650 = arith.index_cast %c3_i32_182 : i32 to index
    %c0_184 = arith.constant 0 : index
    %c0_185 = arith.constant 0 : index
    %651 = vector.load %arg25[%650, %c0_184, %c0_185] : memref<8x8x64xf32, #tpu.memory_space<vmem>>, vector<1x8x64xf32>
    %652 = vector.shape_cast %651 : vector<1x8x64xf32> to vector<8x64xf32>
    %653 = arith.index_cast %649 : i32 to index
    %c0_186 = arith.constant 0 : index
    %c0_187 = arith.constant 0 : index
    %654 = vector.load %arg26[%653, %c0_186, %c0_187] : memref<8x8x64xf32, #tpu.memory_space<vmem>>, vector<1x8x64xf32>
    %655 = vector.shape_cast %654 : vector<1x8x64xf32> to vector<8x64xf32>
    %656 = tpu.concatenate %615, %644 in 1 : vector<8x16xf32>, vector<8x16xf32> -> vector<8x32xf32>
    %cst_188 = arith.constant dense<0.000000e+00> : vector<8x128xf32>
    %657 = tpu.matmul %656, %18, %cst_188 {dimension_numbers = #tpu.dot_dimension_numbers<[1], [0], [0], [1], [0, 0, 1, 1], [], []>} : vector<8x32xf32>, vector<32x128xf32>, vector<8x128xf32> -> vector<8x128xf32>
    %658 = vector.extract_strided_slice %657 {offsets = [0, 0], sizes = [8, 64], strides = [1, 1]} : vector<8x128xf32> to vector<8x64xf32>
    %659 = arith.addf %658, %652 : vector<8x64xf32>
    %660 = vector.extract_strided_slice %659 {offsets = [0, 0], sizes = [8, 48], strides = [1, 1]} : vector<8x64xf32> to vector<8x48xf32>
    %661 = arith.negf %660 : vector<8x48xf32>
    %662 = math.exp %661 : vector<8x48xf32>
    %cst_189 = arith.constant 1.000000e+00 : f32
    %663 = vector.broadcast %cst_189 : f32 to vector<8x48xf32>
    %664 = arith.addf %663, %662 : vector<8x48xf32>
    %665 = arith.divf %663, %664 : vector<8x48xf32>
    %666 = vector.extract_strided_slice %659 {offsets = [0, 48], sizes = [8, 16], strides = [1, 1]} : vector<8x64xf32> to vector<8x16xf32>
    %667 = math.tanh %666 : vector<8x16xf32>
    %668 = vector.extract_strided_slice %665 {offsets = [0, 0], sizes = [8, 16], strides = [1, 1]} : vector<8x48xf32> to vector<8x16xf32>
    %669 = vector.extract_strided_slice %665 {offsets = [0, 16], sizes = [8, 16], strides = [1, 1]} : vector<8x48xf32> to vector<8x16xf32>
    %670 = vector.extract_strided_slice %665 {offsets = [0, 32], sizes = [8, 16], strides = [1, 1]} : vector<8x48xf32> to vector<8x16xf32>
    %671 = arith.mulf %669, %613 : vector<8x16xf32>
    %672 = arith.mulf %668, %667 : vector<8x16xf32>
    %673 = arith.addf %671, %672 : vector<8x16xf32>
    %674 = math.tanh %673 : vector<8x16xf32>
    %675 = arith.mulf %670, %674 : vector<8x16xf32>
    %676 = vector.extract_strided_slice %657 {offsets = [0, 64], sizes = [8, 64], strides = [1, 1]} : vector<8x128xf32> to vector<8x64xf32>
    %677 = arith.addf %676, %655 : vector<8x64xf32>
    %678 = vector.extract_strided_slice %677 {offsets = [0, 0], sizes = [8, 48], strides = [1, 1]} : vector<8x64xf32> to vector<8x48xf32>
    %679 = arith.negf %678 : vector<8x48xf32>
    %680 = math.exp %679 : vector<8x48xf32>
    %cst_190 = arith.constant 1.000000e+00 : f32
    %681 = vector.broadcast %cst_190 : f32 to vector<8x48xf32>
    %682 = arith.addf %681, %680 : vector<8x48xf32>
    %683 = arith.divf %681, %682 : vector<8x48xf32>
    %684 = vector.extract_strided_slice %677 {offsets = [0, 48], sizes = [8, 16], strides = [1, 1]} : vector<8x64xf32> to vector<8x16xf32>
    %685 = math.tanh %684 : vector<8x16xf32>
    %686 = vector.extract_strided_slice %683 {offsets = [0, 0], sizes = [8, 16], strides = [1, 1]} : vector<8x48xf32> to vector<8x16xf32>
    %687 = vector.extract_strided_slice %683 {offsets = [0, 16], sizes = [8, 16], strides = [1, 1]} : vector<8x48xf32> to vector<8x16xf32>
    %688 = vector.extract_strided_slice %683 {offsets = [0, 32], sizes = [8, 16], strides = [1, 1]} : vector<8x48xf32> to vector<8x16xf32>
    %689 = arith.mulf %687, %648 : vector<8x16xf32>
    %690 = arith.mulf %686, %685 : vector<8x16xf32>
    %691 = arith.addf %689, %690 : vector<8x16xf32>
    %692 = math.tanh %691 : vector<8x16xf32>
    %693 = arith.mulf %688, %692 : vector<8x16xf32>
    %694 = vector.broadcast %c3_i32_182 : i32 to vector<8x1xi32>
    %695 = arith.cmpi slt, %694, %16 : vector<8x1xi32>
    %696 = vector.shape_cast %695 : vector<8x1xi1> to vector<8x1xi1>
    %697 = vector.broadcast %696 : vector<8x1xi1> to vector<8x16xi1>
    %698 = arith.select %697, %675, %638 : vector<8x16xi1>, vector<8x16xf32>
    %699 = vector.broadcast %649 : i32 to vector<8x1xi32>
    %700 = arith.cmpi slt, %699, %16 : vector<8x1xi32>
    %cst_191 = arith.constant 0.000000e+00 : f32
    %701 = vector.shape_cast %700 : vector<8x1xi1> to vector<8x1xi1>
    %702 = vector.broadcast %701 : vector<8x1xi1> to vector<8x16xi1>
    %703 = vector.broadcast %cst_191 : f32 to vector<8x16xf32>
    %704 = arith.select %702, %693, %703 : vector<8x16xi1>, vector<8x16xf32>
    %cst_192 = arith.constant 0.000000e+00 : f32
    %705 = vector.shape_cast %700 : vector<8x1xi1> to vector<8x1xi1>
    %706 = vector.broadcast %705 : vector<8x1xi1> to vector<8x16xi1>
    %707 = vector.broadcast %cst_192 : f32 to vector<8x16xf32>
    %708 = arith.select %706, %691, %707 : vector<8x16xi1>, vector<8x16xf32>
    %c4_i32_193 = arith.constant 4 : i32
    %c7_i32_194 = arith.constant 7 : i32
    %709 = arith.subi %c7_i32_194, %c4_i32_193 : i32
    %710 = arith.index_cast %c4_i32_193 : i32 to index
    %c0_195 = arith.constant 0 : index
    %c0_196 = arith.constant 0 : index
    %711 = vector.load %arg25[%710, %c0_195, %c0_196] : memref<8x8x64xf32, #tpu.memory_space<vmem>>, vector<1x8x64xf32>
    %712 = vector.shape_cast %711 : vector<1x8x64xf32> to vector<8x64xf32>
    %713 = arith.index_cast %709 : i32 to index
    %c0_197 = arith.constant 0 : index
    %c0_198 = arith.constant 0 : index
    %714 = vector.load %arg26[%713, %c0_197, %c0_198] : memref<8x8x64xf32, #tpu.memory_space<vmem>>, vector<1x8x64xf32>
    %715 = vector.shape_cast %714 : vector<1x8x64xf32> to vector<8x64xf32>
    %716 = tpu.concatenate %675, %704 in 1 : vector<8x16xf32>, vector<8x16xf32> -> vector<8x32xf32>
    %cst_199 = arith.constant dense<0.000000e+00> : vector<8x128xf32>
    %717 = tpu.matmul %716, %18, %cst_199 {dimension_numbers = #tpu.dot_dimension_numbers<[1], [0], [0], [1], [0, 0, 1, 1], [], []>} : vector<8x32xf32>, vector<32x128xf32>, vector<8x128xf32> -> vector<8x128xf32>
    %718 = vector.extract_strided_slice %717 {offsets = [0, 0], sizes = [8, 64], strides = [1, 1]} : vector<8x128xf32> to vector<8x64xf32>
    %719 = arith.addf %718, %712 : vector<8x64xf32>
    %720 = vector.extract_strided_slice %719 {offsets = [0, 0], sizes = [8, 48], strides = [1, 1]} : vector<8x64xf32> to vector<8x48xf32>
    %721 = arith.negf %720 : vector<8x48xf32>
    %722 = math.exp %721 : vector<8x48xf32>
    %cst_200 = arith.constant 1.000000e+00 : f32
    %723 = vector.broadcast %cst_200 : f32 to vector<8x48xf32>
    %724 = arith.addf %723, %722 : vector<8x48xf32>
    %725 = arith.divf %723, %724 : vector<8x48xf32>
    %726 = vector.extract_strided_slice %719 {offsets = [0, 48], sizes = [8, 16], strides = [1, 1]} : vector<8x64xf32> to vector<8x16xf32>
    %727 = math.tanh %726 : vector<8x16xf32>
    %728 = vector.extract_strided_slice %725 {offsets = [0, 0], sizes = [8, 16], strides = [1, 1]} : vector<8x48xf32> to vector<8x16xf32>
    %729 = vector.extract_strided_slice %725 {offsets = [0, 16], sizes = [8, 16], strides = [1, 1]} : vector<8x48xf32> to vector<8x16xf32>
    %730 = vector.extract_strided_slice %725 {offsets = [0, 32], sizes = [8, 16], strides = [1, 1]} : vector<8x48xf32> to vector<8x16xf32>
    %731 = arith.mulf %729, %673 : vector<8x16xf32>
    %732 = arith.mulf %728, %727 : vector<8x16xf32>
    %733 = arith.addf %731, %732 : vector<8x16xf32>
    %734 = math.tanh %733 : vector<8x16xf32>
    %735 = arith.mulf %730, %734 : vector<8x16xf32>
    %736 = vector.extract_strided_slice %717 {offsets = [0, 64], sizes = [8, 64], strides = [1, 1]} : vector<8x128xf32> to vector<8x64xf32>
    %737 = arith.addf %736, %715 : vector<8x64xf32>
    %738 = vector.extract_strided_slice %737 {offsets = [0, 0], sizes = [8, 48], strides = [1, 1]} : vector<8x64xf32> to vector<8x48xf32>
    %739 = arith.negf %738 : vector<8x48xf32>
    %740 = math.exp %739 : vector<8x48xf32>
    %cst_201 = arith.constant 1.000000e+00 : f32
    %741 = vector.broadcast %cst_201 : f32 to vector<8x48xf32>
    %742 = arith.addf %741, %740 : vector<8x48xf32>
    %743 = arith.divf %741, %742 : vector<8x48xf32>
    %744 = vector.extract_strided_slice %737 {offsets = [0, 48], sizes = [8, 16], strides = [1, 1]} : vector<8x64xf32> to vector<8x16xf32>
    %745 = math.tanh %744 : vector<8x16xf32>
    %746 = vector.extract_strided_slice %743 {offsets = [0, 0], sizes = [8, 16], strides = [1, 1]} : vector<8x48xf32> to vector<8x16xf32>
    %747 = vector.extract_strided_slice %743 {offsets = [0, 16], sizes = [8, 16], strides = [1, 1]} : vector<8x48xf32> to vector<8x16xf32>
    %748 = vector.extract_strided_slice %743 {offsets = [0, 32], sizes = [8, 16], strides = [1, 1]} : vector<8x48xf32> to vector<8x16xf32>
    %749 = arith.mulf %747, %708 : vector<8x16xf32>
    %750 = arith.mulf %746, %745 : vector<8x16xf32>
    %751 = arith.addf %749, %750 : vector<8x16xf32>
    %752 = math.tanh %751 : vector<8x16xf32>
    %753 = arith.mulf %748, %752 : vector<8x16xf32>
    %754 = vector.broadcast %c4_i32_193 : i32 to vector<8x1xi32>
    %755 = arith.cmpi slt, %754, %16 : vector<8x1xi32>
    %756 = vector.shape_cast %755 : vector<8x1xi1> to vector<8x1xi1>
    %757 = vector.broadcast %756 : vector<8x1xi1> to vector<8x16xi1>
    %758 = arith.select %757, %735, %698 : vector<8x16xi1>, vector<8x16xf32>
    %759 = vector.broadcast %709 : i32 to vector<8x1xi32>
    %760 = arith.cmpi slt, %759, %16 : vector<8x1xi32>
    %cst_202 = arith.constant 0.000000e+00 : f32
    %761 = vector.shape_cast %760 : vector<8x1xi1> to vector<8x1xi1>
    %762 = vector.broadcast %761 : vector<8x1xi1> to vector<8x16xi1>
    %763 = vector.broadcast %cst_202 : f32 to vector<8x16xf32>
    %764 = arith.select %762, %753, %763 : vector<8x16xi1>, vector<8x16xf32>
    %cst_203 = arith.constant 0.000000e+00 : f32
    %765 = vector.shape_cast %760 : vector<8x1xi1> to vector<8x1xi1>
    %766 = vector.broadcast %765 : vector<8x1xi1> to vector<8x16xi1>
    %767 = vector.broadcast %cst_203 : f32 to vector<8x16xf32>
    %768 = arith.select %766, %751, %767 : vector<8x16xi1>, vector<8x16xf32>
    %c5_i32_204 = arith.constant 5 : i32
    %c7_i32_205 = arith.constant 7 : i32
    %769 = arith.subi %c7_i32_205, %c5_i32_204 : i32
    %770 = arith.index_cast %c5_i32_204 : i32 to index
    %c0_206 = arith.constant 0 : index
    %c0_207 = arith.constant 0 : index
    %771 = vector.load %arg25[%770, %c0_206, %c0_207] : memref<8x8x64xf32, #tpu.memory_space<vmem>>, vector<1x8x64xf32>
    %772 = vector.shape_cast %771 : vector<1x8x64xf32> to vector<8x64xf32>
    %773 = arith.index_cast %769 : i32 to index
    %c0_208 = arith.constant 0 : index
    %c0_209 = arith.constant 0 : index
    %774 = vector.load %arg26[%773, %c0_208, %c0_209] : memref<8x8x64xf32, #tpu.memory_space<vmem>>, vector<1x8x64xf32>
    %775 = vector.shape_cast %774 : vector<1x8x64xf32> to vector<8x64xf32>
    %776 = tpu.concatenate %735, %764 in 1 : vector<8x16xf32>, vector<8x16xf32> -> vector<8x32xf32>
    %cst_210 = arith.constant dense<0.000000e+00> : vector<8x128xf32>
    %777 = tpu.matmul %776, %18, %cst_210 {dimension_numbers = #tpu.dot_dimension_numbers<[1], [0], [0], [1], [0, 0, 1, 1], [], []>} : vector<8x32xf32>, vector<32x128xf32>, vector<8x128xf32> -> vector<8x128xf32>
    %778 = vector.extract_strided_slice %777 {offsets = [0, 0], sizes = [8, 64], strides = [1, 1]} : vector<8x128xf32> to vector<8x64xf32>
    %779 = arith.addf %778, %772 : vector<8x64xf32>
    %780 = vector.extract_strided_slice %779 {offsets = [0, 0], sizes = [8, 48], strides = [1, 1]} : vector<8x64xf32> to vector<8x48xf32>
    %781 = arith.negf %780 : vector<8x48xf32>
    %782 = math.exp %781 : vector<8x48xf32>
    %cst_211 = arith.constant 1.000000e+00 : f32
    %783 = vector.broadcast %cst_211 : f32 to vector<8x48xf32>
    %784 = arith.addf %783, %782 : vector<8x48xf32>
    %785 = arith.divf %783, %784 : vector<8x48xf32>
    %786 = vector.extract_strided_slice %779 {offsets = [0, 48], sizes = [8, 16], strides = [1, 1]} : vector<8x64xf32> to vector<8x16xf32>
    %787 = math.tanh %786 : vector<8x16xf32>
    %788 = vector.extract_strided_slice %785 {offsets = [0, 0], sizes = [8, 16], strides = [1, 1]} : vector<8x48xf32> to vector<8x16xf32>
    %789 = vector.extract_strided_slice %785 {offsets = [0, 16], sizes = [8, 16], strides = [1, 1]} : vector<8x48xf32> to vector<8x16xf32>
    %790 = vector.extract_strided_slice %785 {offsets = [0, 32], sizes = [8, 16], strides = [1, 1]} : vector<8x48xf32> to vector<8x16xf32>
    %791 = arith.mulf %789, %733 : vector<8x16xf32>
    %792 = arith.mulf %788, %787 : vector<8x16xf32>
    %793 = arith.addf %791, %792 : vector<8x16xf32>
    %794 = math.tanh %793 : vector<8x16xf32>
    %795 = arith.mulf %790, %794 : vector<8x16xf32>
    %796 = vector.extract_strided_slice %777 {offsets = [0, 64], sizes = [8, 64], strides = [1, 1]} : vector<8x128xf32> to vector<8x64xf32>
    %797 = arith.addf %796, %775 : vector<8x64xf32>
    %798 = vector.extract_strided_slice %797 {offsets = [0, 0], sizes = [8, 48], strides = [1, 1]} : vector<8x64xf32> to vector<8x48xf32>
    %799 = arith.negf %798 : vector<8x48xf32>
    %800 = math.exp %799 : vector<8x48xf32>
    %cst_212 = arith.constant 1.000000e+00 : f32
    %801 = vector.broadcast %cst_212 : f32 to vector<8x48xf32>
    %802 = arith.addf %801, %800 : vector<8x48xf32>
    %803 = arith.divf %801, %802 : vector<8x48xf32>
    %804 = vector.extract_strided_slice %797 {offsets = [0, 48], sizes = [8, 16], strides = [1, 1]} : vector<8x64xf32> to vector<8x16xf32>
    %805 = math.tanh %804 : vector<8x16xf32>
    %806 = vector.extract_strided_slice %803 {offsets = [0, 0], sizes = [8, 16], strides = [1, 1]} : vector<8x48xf32> to vector<8x16xf32>
    %807 = vector.extract_strided_slice %803 {offsets = [0, 16], sizes = [8, 16], strides = [1, 1]} : vector<8x48xf32> to vector<8x16xf32>
    %808 = vector.extract_strided_slice %803 {offsets = [0, 32], sizes = [8, 16], strides = [1, 1]} : vector<8x48xf32> to vector<8x16xf32>
    %809 = arith.mulf %807, %768 : vector<8x16xf32>
    %810 = arith.mulf %806, %805 : vector<8x16xf32>
    %811 = arith.addf %809, %810 : vector<8x16xf32>
    %812 = math.tanh %811 : vector<8x16xf32>
    %813 = arith.mulf %808, %812 : vector<8x16xf32>
    %814 = vector.broadcast %c5_i32_204 : i32 to vector<8x1xi32>
    %815 = arith.cmpi slt, %814, %16 : vector<8x1xi32>
    %816 = vector.shape_cast %815 : vector<8x1xi1> to vector<8x1xi1>
    %817 = vector.broadcast %816 : vector<8x1xi1> to vector<8x16xi1>
    %818 = arith.select %817, %795, %758 : vector<8x16xi1>, vector<8x16xf32>
    %819 = vector.broadcast %769 : i32 to vector<8x1xi32>
    %820 = arith.cmpi slt, %819, %16 : vector<8x1xi32>
    %cst_213 = arith.constant 0.000000e+00 : f32
    %821 = vector.shape_cast %820 : vector<8x1xi1> to vector<8x1xi1>
    %822 = vector.broadcast %821 : vector<8x1xi1> to vector<8x16xi1>
    %823 = vector.broadcast %cst_213 : f32 to vector<8x16xf32>
    %824 = arith.select %822, %813, %823 : vector<8x16xi1>, vector<8x16xf32>
    %cst_214 = arith.constant 0.000000e+00 : f32
    %825 = vector.shape_cast %820 : vector<8x1xi1> to vector<8x1xi1>
    %826 = vector.broadcast %825 : vector<8x1xi1> to vector<8x16xi1>
    %827 = vector.broadcast %cst_214 : f32 to vector<8x16xf32>
    %828 = arith.select %826, %811, %827 : vector<8x16xi1>, vector<8x16xf32>
    %c6_i32_215 = arith.constant 6 : i32
    %c7_i32_216 = arith.constant 7 : i32
    %829 = arith.subi %c7_i32_216, %c6_i32_215 : i32
    %830 = arith.index_cast %c6_i32_215 : i32 to index
    %c0_217 = arith.constant 0 : index
    %c0_218 = arith.constant 0 : index
    %831 = vector.load %arg25[%830, %c0_217, %c0_218] : memref<8x8x64xf32, #tpu.memory_space<vmem>>, vector<1x8x64xf32>
    %832 = vector.shape_cast %831 : vector<1x8x64xf32> to vector<8x64xf32>
    %833 = arith.index_cast %829 : i32 to index
    %c0_219 = arith.constant 0 : index
    %c0_220 = arith.constant 0 : index
    %834 = vector.load %arg26[%833, %c0_219, %c0_220] : memref<8x8x64xf32, #tpu.memory_space<vmem>>, vector<1x8x64xf32>
    %835 = vector.shape_cast %834 : vector<1x8x64xf32> to vector<8x64xf32>
    %836 = tpu.concatenate %795, %824 in 1 : vector<8x16xf32>, vector<8x16xf32> -> vector<8x32xf32>
    %cst_221 = arith.constant dense<0.000000e+00> : vector<8x128xf32>
    %837 = tpu.matmul %836, %18, %cst_221 {dimension_numbers = #tpu.dot_dimension_numbers<[1], [0], [0], [1], [0, 0, 1, 1], [], []>} : vector<8x32xf32>, vector<32x128xf32>, vector<8x128xf32> -> vector<8x128xf32>
    %838 = vector.extract_strided_slice %837 {offsets = [0, 0], sizes = [8, 64], strides = [1, 1]} : vector<8x128xf32> to vector<8x64xf32>
    %839 = arith.addf %838, %832 : vector<8x64xf32>
    %840 = vector.extract_strided_slice %839 {offsets = [0, 0], sizes = [8, 48], strides = [1, 1]} : vector<8x64xf32> to vector<8x48xf32>
    %841 = arith.negf %840 : vector<8x48xf32>
    %842 = math.exp %841 : vector<8x48xf32>
    %cst_222 = arith.constant 1.000000e+00 : f32
    %843 = vector.broadcast %cst_222 : f32 to vector<8x48xf32>
    %844 = arith.addf %843, %842 : vector<8x48xf32>
    %845 = arith.divf %843, %844 : vector<8x48xf32>
    %846 = vector.extract_strided_slice %839 {offsets = [0, 48], sizes = [8, 16], strides = [1, 1]} : vector<8x64xf32> to vector<8x16xf32>
    %847 = math.tanh %846 : vector<8x16xf32>
    %848 = vector.extract_strided_slice %845 {offsets = [0, 0], sizes = [8, 16], strides = [1, 1]} : vector<8x48xf32> to vector<8x16xf32>
    %849 = vector.extract_strided_slice %845 {offsets = [0, 16], sizes = [8, 16], strides = [1, 1]} : vector<8x48xf32> to vector<8x16xf32>
    %850 = vector.extract_strided_slice %845 {offsets = [0, 32], sizes = [8, 16], strides = [1, 1]} : vector<8x48xf32> to vector<8x16xf32>
    %851 = arith.mulf %849, %793 : vector<8x16xf32>
    %852 = arith.mulf %848, %847 : vector<8x16xf32>
    %853 = arith.addf %851, %852 : vector<8x16xf32>
    %854 = math.tanh %853 : vector<8x16xf32>
    %855 = arith.mulf %850, %854 : vector<8x16xf32>
    %856 = vector.extract_strided_slice %837 {offsets = [0, 64], sizes = [8, 64], strides = [1, 1]} : vector<8x128xf32> to vector<8x64xf32>
    %857 = arith.addf %856, %835 : vector<8x64xf32>
    %858 = vector.extract_strided_slice %857 {offsets = [0, 0], sizes = [8, 48], strides = [1, 1]} : vector<8x64xf32> to vector<8x48xf32>
    %859 = arith.negf %858 : vector<8x48xf32>
    %860 = math.exp %859 : vector<8x48xf32>
    %cst_223 = arith.constant 1.000000e+00 : f32
    %861 = vector.broadcast %cst_223 : f32 to vector<8x48xf32>
    %862 = arith.addf %861, %860 : vector<8x48xf32>
    %863 = arith.divf %861, %862 : vector<8x48xf32>
    %864 = vector.extract_strided_slice %857 {offsets = [0, 48], sizes = [8, 16], strides = [1, 1]} : vector<8x64xf32> to vector<8x16xf32>
    %865 = math.tanh %864 : vector<8x16xf32>
    %866 = vector.extract_strided_slice %863 {offsets = [0, 0], sizes = [8, 16], strides = [1, 1]} : vector<8x48xf32> to vector<8x16xf32>
    %867 = vector.extract_strided_slice %863 {offsets = [0, 16], sizes = [8, 16], strides = [1, 1]} : vector<8x48xf32> to vector<8x16xf32>
    %868 = vector.extract_strided_slice %863 {offsets = [0, 32], sizes = [8, 16], strides = [1, 1]} : vector<8x48xf32> to vector<8x16xf32>
    %869 = arith.mulf %867, %828 : vector<8x16xf32>
    %870 = arith.mulf %866, %865 : vector<8x16xf32>
    %871 = arith.addf %869, %870 : vector<8x16xf32>
    %872 = math.tanh %871 : vector<8x16xf32>
    %873 = arith.mulf %868, %872 : vector<8x16xf32>
    %874 = vector.broadcast %c6_i32_215 : i32 to vector<8x1xi32>
    %875 = arith.cmpi slt, %874, %16 : vector<8x1xi32>
    %876 = vector.shape_cast %875 : vector<8x1xi1> to vector<8x1xi1>
    %877 = vector.broadcast %876 : vector<8x1xi1> to vector<8x16xi1>
    %878 = arith.select %877, %855, %818 : vector<8x16xi1>, vector<8x16xf32>
    %879 = vector.broadcast %829 : i32 to vector<8x1xi32>
    %880 = arith.cmpi slt, %879, %16 : vector<8x1xi32>
    %cst_224 = arith.constant 0.000000e+00 : f32
    %881 = vector.shape_cast %880 : vector<8x1xi1> to vector<8x1xi1>
    %882 = vector.broadcast %881 : vector<8x1xi1> to vector<8x16xi1>
    %883 = vector.broadcast %cst_224 : f32 to vector<8x16xf32>
    %884 = arith.select %882, %873, %883 : vector<8x16xi1>, vector<8x16xf32>
    %cst_225 = arith.constant 0.000000e+00 : f32
    %885 = vector.shape_cast %880 : vector<8x1xi1> to vector<8x1xi1>
    %886 = vector.broadcast %885 : vector<8x1xi1> to vector<8x16xi1>
    %887 = vector.broadcast %cst_225 : f32 to vector<8x16xf32>
    %888 = arith.select %886, %871, %887 : vector<8x16xi1>, vector<8x16xf32>
    %c7_i32_226 = arith.constant 7 : i32
    %c7_i32_227 = arith.constant 7 : i32
    %889 = arith.subi %c7_i32_227, %c7_i32_226 : i32
    %890 = arith.index_cast %c7_i32_226 : i32 to index
    %c0_228 = arith.constant 0 : index
    %c0_229 = arith.constant 0 : index
    %891 = vector.load %arg25[%890, %c0_228, %c0_229] : memref<8x8x64xf32, #tpu.memory_space<vmem>>, vector<1x8x64xf32>
    %892 = vector.shape_cast %891 : vector<1x8x64xf32> to vector<8x64xf32>
    %893 = arith.index_cast %889 : i32 to index
    %c0_230 = arith.constant 0 : index
    %c0_231 = arith.constant 0 : index
    %894 = vector.load %arg26[%893, %c0_230, %c0_231] : memref<8x8x64xf32, #tpu.memory_space<vmem>>, vector<1x8x64xf32>
    %895 = vector.shape_cast %894 : vector<1x8x64xf32> to vector<8x64xf32>
    %896 = tpu.concatenate %855, %884 in 1 : vector<8x16xf32>, vector<8x16xf32> -> vector<8x32xf32>
    %cst_232 = arith.constant dense<0.000000e+00> : vector<8x128xf32>
    %897 = tpu.matmul %896, %18, %cst_232 {dimension_numbers = #tpu.dot_dimension_numbers<[1], [0], [0], [1], [0, 0, 1, 1], [], []>} : vector<8x32xf32>, vector<32x128xf32>, vector<8x128xf32> -> vector<8x128xf32>
    %898 = vector.extract_strided_slice %897 {offsets = [0, 0], sizes = [8, 64], strides = [1, 1]} : vector<8x128xf32> to vector<8x64xf32>
    %899 = arith.addf %898, %892 : vector<8x64xf32>
    %900 = vector.extract_strided_slice %899 {offsets = [0, 0], sizes = [8, 48], strides = [1, 1]} : vector<8x64xf32> to vector<8x48xf32>
    %901 = arith.negf %900 : vector<8x48xf32>
    %902 = math.exp %901 : vector<8x48xf32>
    %cst_233 = arith.constant 1.000000e+00 : f32
    %903 = vector.broadcast %cst_233 : f32 to vector<8x48xf32>
    %904 = arith.addf %903, %902 : vector<8x48xf32>
    %905 = arith.divf %903, %904 : vector<8x48xf32>
    %906 = vector.extract_strided_slice %899 {offsets = [0, 48], sizes = [8, 16], strides = [1, 1]} : vector<8x64xf32> to vector<8x16xf32>
    %907 = math.tanh %906 : vector<8x16xf32>
    %908 = vector.extract_strided_slice %905 {offsets = [0, 0], sizes = [8, 16], strides = [1, 1]} : vector<8x48xf32> to vector<8x16xf32>
    %909 = vector.extract_strided_slice %905 {offsets = [0, 16], sizes = [8, 16], strides = [1, 1]} : vector<8x48xf32> to vector<8x16xf32>
    %910 = vector.extract_strided_slice %905 {offsets = [0, 32], sizes = [8, 16], strides = [1, 1]} : vector<8x48xf32> to vector<8x16xf32>
    %911 = arith.mulf %909, %853 : vector<8x16xf32>
    %912 = arith.mulf %908, %907 : vector<8x16xf32>
    %913 = arith.addf %911, %912 : vector<8x16xf32>
    %914 = math.tanh %913 : vector<8x16xf32>
    %915 = arith.mulf %910, %914 : vector<8x16xf32>
    %916 = vector.extract_strided_slice %897 {offsets = [0, 64], sizes = [8, 64], strides = [1, 1]} : vector<8x128xf32> to vector<8x64xf32>
    %917 = arith.addf %916, %895 : vector<8x64xf32>
    %918 = vector.extract_strided_slice %917 {offsets = [0, 0], sizes = [8, 48], strides = [1, 1]} : vector<8x64xf32> to vector<8x48xf32>
    %919 = arith.negf %918 : vector<8x48xf32>
    %920 = math.exp %919 : vector<8x48xf32>
    %cst_234 = arith.constant 1.000000e+00 : f32
    %921 = vector.broadcast %cst_234 : f32 to vector<8x48xf32>
    %922 = arith.addf %921, %920 : vector<8x48xf32>
    %923 = arith.divf %921, %922 : vector<8x48xf32>
    %924 = vector.extract_strided_slice %917 {offsets = [0, 48], sizes = [8, 16], strides = [1, 1]} : vector<8x64xf32> to vector<8x16xf32>
    %925 = math.tanh %924 : vector<8x16xf32>
    %926 = vector.extract_strided_slice %923 {offsets = [0, 0], sizes = [8, 16], strides = [1, 1]} : vector<8x48xf32> to vector<8x16xf32>
    %927 = vector.extract_strided_slice %923 {offsets = [0, 16], sizes = [8, 16], strides = [1, 1]} : vector<8x48xf32> to vector<8x16xf32>
    %928 = vector.extract_strided_slice %923 {offsets = [0, 32], sizes = [8, 16], strides = [1, 1]} : vector<8x48xf32> to vector<8x16xf32>
    %929 = arith.mulf %927, %888 : vector<8x16xf32>
    %930 = arith.mulf %926, %925 : vector<8x16xf32>
    %931 = arith.addf %929, %930 : vector<8x16xf32>
    %932 = math.tanh %931 : vector<8x16xf32>
    %933 = arith.mulf %928, %932 : vector<8x16xf32>
    %934 = vector.broadcast %c7_i32_226 : i32 to vector<8x1xi32>
    %935 = arith.cmpi slt, %934, %16 : vector<8x1xi32>
    %936 = vector.shape_cast %935 : vector<8x1xi1> to vector<8x1xi1>
    %937 = vector.broadcast %936 : vector<8x1xi1> to vector<8x16xi1>
    %938 = arith.select %937, %915, %878 : vector<8x16xi1>, vector<8x16xf32>
    %939 = vector.broadcast %889 : i32 to vector<8x1xi32>
    %940 = arith.cmpi slt, %939, %16 : vector<8x1xi32>
    %cst_235 = arith.constant 0.000000e+00 : f32
    %941 = vector.shape_cast %940 : vector<8x1xi1> to vector<8x1xi1>
    %942 = vector.broadcast %941 : vector<8x1xi1> to vector<8x16xi1>
    %943 = vector.broadcast %cst_235 : f32 to vector<8x16xf32>
    %944 = arith.select %942, %933, %943 : vector<8x16xi1>, vector<8x16xf32>
    %cst_236 = arith.constant 0.000000e+00 : f32
    %945 = vector.shape_cast %940 : vector<8x1xi1> to vector<8x1xi1>
    %946 = vector.broadcast %945 : vector<8x1xi1> to vector<8x16xi1>
    %947 = vector.broadcast %cst_236 : f32 to vector<8x16xf32>
    %948 = arith.select %946, %931, %947 : vector<8x16xi1>, vector<8x16xf32>
    %c8_i32_237 = arith.constant 8 : i32
    %c0_238 = arith.constant 0 : index
    %c0_239 = arith.constant 0 : index
    %949 = vector.load %arg15[%c0_238, %c0_239] : memref<16x16xf32, #tpu.memory_space<vmem>>, vector<16x16xf32>
    %cst_240 = arith.constant dense<0.000000e+00> : vector<8x16xf32>
    %950 = tpu.matmul %938, %949, %cst_240 {dimension_numbers = #tpu.dot_dimension_numbers<[1], [0], [0], [1], [0, 0, 1, 1], [], []>} : vector<8x16xf32>, vector<16x16xf32>, vector<8x16xf32> -> vector<8x16xf32>
    %c0_241 = arith.constant 0 : index
    %c0_242 = arith.constant 0 : index
    %951 = vector.load %arg16[%c0_241, %c0_242] : memref<16x16xf32, #tpu.memory_space<vmem>>, vector<16x16xf32>
    %cst_243 = arith.constant dense<0.000000e+00> : vector<8x16xf32>
    %952 = tpu.matmul %944, %951, %cst_243 {dimension_numbers = #tpu.dot_dimension_numbers<[1], [0], [0], [1], [0, 0, 1, 1], [], []>} : vector<8x16xf32>, vector<16x16xf32>, vector<8x16xf32> -> vector<8x16xf32>
    %953 = arith.addf %950, %952 : vector<8x16xf32>
    %c0_244 = arith.constant 0 : index
    %c0_245 = arith.constant 0 : index
    %954 = vector.load %arg17[%c0_244, %c0_245] : memref<1x16xf32, #tpu.memory_space<vmem>>, vector<1x16xf32>
    %955 = vector.broadcast %954 : vector<1x16xf32> to vector<8x16xf32>
    %956 = arith.addf %953, %955 : vector<8x16xf32>
    %cst_246 = arith.constant 0.000000e+00 : f32
    %957 = vector.broadcast %cst_246 : f32 to vector<8x16xf32>
    %958 = arith.maximumf %956, %957 : vector<8x16xf32>
    %c0_247 = arith.constant 0 : index
    %c0_248 = arith.constant 0 : index
    %959 = vector.load %arg18[%c0_247, %c0_248] : memref<16x3xf32, #tpu.memory_space<vmem>>, vector<16x3xf32>
    %cst_249 = arith.constant dense<0.000000e+00> : vector<8x3xf32>
    %960 = tpu.matmul %958, %959, %cst_249 {dimension_numbers = #tpu.dot_dimension_numbers<[1], [0], [0], [1], [0, 0, 1, 1], [], []>} : vector<8x16xf32>, vector<16x3xf32>, vector<8x3xf32> -> vector<8x3xf32>
    %c0_250 = arith.constant 0 : index
    %c0_251 = arith.constant 0 : index
    %961 = vector.load %arg19[%c0_250, %c0_251] : memref<1x3xf32, #tpu.memory_space<vmem>>, vector<1x3xf32>
    %962 = vector.broadcast %961 : vector<1x3xf32> to vector<8x3xf32>
    %963 = arith.addf %960, %962 : vector<8x3xf32>
    %cst_252 = arith.constant dense<0xFF800000> : vector<8xf32>
    %964 = vector.multi_reduction <maximumf>, %963, %cst_252 [1] : vector<8x3xf32> to vector<8xf32>
    %965 = vector.shape_cast %964 : vector<8xf32> to vector<8x1xf32>
    %966 = vector.broadcast %965 : vector<8x1xf32> to vector<8x3xf32>
    %967 = arith.subf %963, %966 : vector<8x3xf32>
    %968 = math.exp %967 : vector<8x3xf32>
    %cst_253 = arith.constant dense<0.000000e+00> : vector<8xf32>
    %969 = vector.multi_reduction <add>, %968, %cst_253 [1] : vector<8x3xf32> to vector<8xf32>
    %970 = vector.shape_cast %969 : vector<8xf32> to vector<8x1xf32>
    %971 = tpu.reciprocal %970 {approx = true} : vector<8x1xf32> -> vector<8x1xf32>
    %972 = vector.broadcast %971 : vector<8x1xf32> to vector<8x3xf32>
    %973 = arith.mulf %968, %972 : vector<8x3xf32>
    %c0_254 = arith.constant 0 : index
    %c0_255 = arith.constant 0 : index
    %974 = vector.load %arg20[%c0_254, %c0_255] : memref<8x3xf32, #tpu.memory_space<vmem>>, vector<8x3xf32>
    tpu.vector_store %arg20[%c0_254, %c0_255], %973 {strides = array<i32>} : memref<8x3xf32, #tpu.memory_space<vmem>>, vector<8x3xf32>,
    return
  }
  func.func @transform_0(%arg0: i32) -> (i32, i32) {
    %c0_i32 = arith.constant 0 : i32
    %c0_i32_0 = arith.constant 0 : i32
    return %arg0, %c0_i32 : i32, i32
  }
  func.func @transform_1(%arg0: i32) -> (i32, i32, i32) {
    %c0_i32 = arith.constant 0 : i32
    %c0_i32_0 = arith.constant 0 : i32
    %c0_i32_1 = arith.constant 0 : i32
    return %c0_i32, %arg0, %c0_i32_0 : i32, i32, i32
  }
  func.func @transform_2(%arg0: i32) -> (i32, i32) {
    %c0_i32 = arith.constant 0 : i32
    %c0_i32_0 = arith.constant 0 : i32
    %c0_i32_1 = arith.constant 0 : i32
    return %c0_i32, %c0_i32_0 : i32, i32
  }
  func.func @transform_3(%arg0: i32) -> (i32, i32) {
    %c0_i32 = arith.constant 0 : i32
    %c0_i32_0 = arith.constant 0 : i32
    %c0_i32_1 = arith.constant 0 : i32
    return %c0_i32, %c0_i32_0 : i32, i32
  }
  func.func @transform_4(%arg0: i32) -> (i32, i32) {
    %c0_i32 = arith.constant 0 : i32
    %c0_i32_0 = arith.constant 0 : i32
    %c0_i32_1 = arith.constant 0 : i32
    return %c0_i32, %c0_i32_0 : i32, i32
  }
  func.func @transform_5(%arg0: i32) -> (i32, i32) {
    %c0_i32 = arith.constant 0 : i32
    %c0_i32_0 = arith.constant 0 : i32
    %c0_i32_1 = arith.constant 0 : i32
    return %c0_i32, %c0_i32_0 : i32, i32
  }
  func.func @transform_6(%arg0: i32) -> (i32, i32) {
    %c0_i32 = arith.constant 0 : i32
    %c0_i32_0 = arith.constant 0 : i32
    %c0_i32_1 = arith.constant 0 : i32
    return %c0_i32, %c0_i32_0 : i32, i32
  }
  func.func @transform_7(%arg0: i32) -> (i32, i32) {
    %c0_i32 = arith.constant 0 : i32
    %c0_i32_0 = arith.constant 0 : i32
    %c0_i32_1 = arith.constant 0 : i32
    return %c0_i32, %c0_i32_0 : i32, i32
  }
  func.func @transform_8(%arg0: i32) -> (i32, i32) {
    %c0_i32 = arith.constant 0 : i32
    %c0_i32_0 = arith.constant 0 : i32
    %c0_i32_1 = arith.constant 0 : i32
    return %c0_i32, %c0_i32_0 : i32, i32
  }
  func.func @transform_9(%arg0: i32) -> (i32, i32) {
    %c0_i32 = arith.constant 0 : i32
    %c0_i32_0 = arith.constant 0 : i32
    %c0_i32_1 = arith.constant 0 : i32
    return %c0_i32, %c0_i32_0 : i32, i32
  }
  func.func @transform_10(%arg0: i32) -> (i32, i32) {
    %c0_i32 = arith.constant 0 : i32
    %c0_i32_0 = arith.constant 0 : i32
    %c0_i32_1 = arith.constant 0 : i32
    return %c0_i32, %c0_i32_0 : i32, i32
  }
  func.func @transform_11(%arg0: i32) -> (i32, i32) {
    %c0_i32 = arith.constant 0 : i32
    %c0_i32_0 = arith.constant 0 : i32
    %c0_i32_1 = arith.constant 0 : i32
    return %c0_i32, %c0_i32_0 : i32, i32
  }
  func.func @transform_12(%arg0: i32) -> (i32, i32) {
    %c0_i32 = arith.constant 0 : i32
    %c0_i32_0 = arith.constant 0 : i32
    %c0_i32_1 = arith.constant 0 : i32
    return %c0_i32, %c0_i32_0 : i32, i32
  }
  func.func @transform_13(%arg0: i32) -> (i32, i32) {
    %c0_i32 = arith.constant 0 : i32
    %c0_i32_0 = arith.constant 0 : i32
    %c0_i32_1 = arith.constant 0 : i32
    return %c0_i32, %c0_i32_0 : i32, i32
  }
  func.func @transform_14(%arg0: i32) -> (i32, i32) {
    %c0_i32 = arith.constant 0 : i32
    %c0_i32_0 = arith.constant 0 : i32
    %c0_i32_1 = arith.constant 0 : i32
    return %c0_i32, %c0_i32_0 : i32, i32
  }
  func.func @transform_15(%arg0: i32) -> (i32, i32) {
    %c0_i32 = arith.constant 0 : i32
    %c0_i32_0 = arith.constant 0 : i32
    %c0_i32_1 = arith.constant 0 : i32
    return %c0_i32, %c0_i32_0 : i32, i32
  }
  func.func @transform_16(%arg0: i32) -> (i32, i32) {
    %c0_i32 = arith.constant 0 : i32
    %c0_i32_0 = arith.constant 0 : i32
    %c0_i32_1 = arith.constant 0 : i32
    return %c0_i32, %c0_i32_0 : i32, i32
  }
  func.func @transform_17(%arg0: i32) -> (i32, i32) {
    %c0_i32 = arith.constant 0 : i32
    %c0_i32_0 = arith.constant 0 : i32
    %c0_i32_1 = arith.constant 0 : i32
    return %c0_i32, %c0_i32_0 : i32, i32
  }
  func.func @transform_18(%arg0: i32) -> (i32, i32) {
    %c0_i32 = arith.constant 0 : i32
    %c0_i32_0 = arith.constant 0 : i32
    %c0_i32_1 = arith.constant 0 : i32
    return %c0_i32, %c0_i32_0 : i32, i32
  }
  func.func @transform_19(%arg0: i32) -> (i32, i32) {
    %c0_i32 = arith.constant 0 : i32
    %c0_i32_0 = arith.constant 0 : i32
    return %arg0, %c0_i32 : i32, i32
  }
}

</mosaic_0001>

<llo_original>
// kernel: tpu_custom_call.1
$region0: #{tpu_custom_call.1}
  #allocation0 [shape = 'u32[]', space=smem, size = 0x4, offset = 0x4, fixed_abs, tag = 'smem constant byte address 0x4 - core index']
  #allocation1 [shape = 'u32[144,128]{1,0:T(1,128)}', space=vmem, size = 0x12000, scoped, tag = 'internal scratch']
  #allocation2 [shape = 'f32[8,8,128]{2,1,0:T(8,128)}', space=vmem, size = 0x8000, scoped, tag = 'scratch operand']
  #allocation3 [shape = 'f32[8,8,128]{2,1,0:T(8,128)}', space=vmem, size = 0x8000, scoped, tag = 'scratch operand']
  #allocation4 [shape = 'f32[8,8,32]{2,1,0:T(8,128)}', space=vmem, size = 0x8000, scoped, tag = 'scratch operand']
  #allocation5 [shape = 'f32[8,8,32]{2,1,0:T(8,128)}', space=vmem, size = 0x8000, scoped, tag = 'scratch operand']
  #allocation6 [shape = 'f32[8,8,64]{2,1,0:T(8,128)}', space=vmem, size = 0x8000, scoped, tag = 'scratch operand']
  #allocation7 [shape = 'f32[8,8,64]{2,1,0:T(8,128)}', space=vmem, size = 0x8000, scoped, tag = 'scratch operand']
  %s0 = inlined_call_operand.vmem [shape: s32[8,1], index: 0, kind: input, shape index: {}]
  %s1 = inlined_call_operand.hbm [shape: f32[8,8,64], index: 1, kind: input, shape index: {}]
  %s2 = inlined_call_operand.hbm [shape: f32[64,128], index: 2, kind: input, shape index: {}]
  %s3 = inlined_call_operand.hbm [shape: f32[64,128], index: 3, kind: input, shape index: {}]
  %s4 = inlined_call_operand.hbm [shape: f32[1,128], index: 4, kind: input, shape index: {}]
  %s5 = inlined_call_operand.hbm [shape: f32[1,128], index: 5, kind: input, shape index: {}]
  %s6 = inlined_call_operand.hbm [shape: f32[64,256], index: 6, kind: input, shape index: {}]
  %s7 = inlined_call_operand.vmem [shape: f32[32,64], index: 7, kind: input, shape index: {}]
  %s8 = inlined_call_operand.hbm [shape: f32[32,64], index: 8, kind: input, shape index: {}]
  %s9 = inlined_call_operand.hbm [shape: f32[32,64], index: 9, kind: input, shape index: {}]
  %s10 = inlined_call_operand.hbm [shape: f32[32,64], index: 10, kind: input, shape index: {}]
  %s11 = inlined_call_operand.hbm [shape: f32[1,64], index: 11, kind: input, shape index: {}]
  %s12 = inlined_call_operand.hbm [shape: f32[1,64], index: 12, kind: input, shape index: {}]
  %s13 = inlined_call_operand.hbm [shape: f32[32,128], index: 13, kind: input, shape index: {}]
  %s14 = inlined_call_operand.vmem [shape: f32[16,16], index: 14, kind: input, shape index: {}]
  %s15 = inlined_call_operand.hbm [shape: f32[16,16], index: 15, kind: input, shape index: {}]
  %s16 = inlined_call_operand.vmem [shape: f32[1,16], index: 16, kind: input, shape index: {}]
  %s17 = inlined_call_operand.vmem [shape: f32[16,3], index: 17, kind: input, shape index: {}]
  %s18 = inlined_call_operand.vmem [shape: f32[1,3], index: 18, kind: input, shape index: {}]
  %s19 = inlined_call_operand.vmem [shape: f32[8,3], index: 19, kind: output, shape index: {}]
  %s20 = sld [smem:[#allocation0]]
  $region138: #{tpu_custom_call.1} parent=0
    _
  %s22 = ssub.s32 1, %s20
  %s23 = scalar_select 0, %s22, %s20
  $region1: #{tpu_custom_call.1} parent=0
    #allocation8 [shape = 'u8[32768]{0}', space=vmem, size = 0x8000, scoped, tag = 'input window, operand 1, single buffered']
    #allocation9 [shape = 's32[1]{0}', space=sflag, size = 0x4, scoped, tag = 'scoped memory for tpu_custom_call.1']
    #allocation10 [shape = 'u8[32768]{0}', space=vmem, size = 0x8000, scoped, tag = 'input window, operand 2, single buffered']
    #allocation11 [shape = 's32[1]{0}', space=sflag, size = 0x4, scoped, tag = 'scoped memory for tpu_custom_call.1']
    #allocation12 [shape = 'u8[32768]{0}', space=vmem, size = 0x8000, scoped, tag = 'input window, operand 3, single buffered']
    #allocation13 [shape = 'u8[512]{0}', space=vmem, size = 0x400, scoped, tag = 'input window, operand 4, single buffered']
    #allocation14 [shape = 's32[1]{0}', space=sflag, size = 0x4, scoped, tag = 'scoped memory for tpu_custom_call.1']
    #allocation15 [shape = 'u8[512]{0}', space=vmem, size = 0x400, scoped, tag = 'input window, operand 5, single buffered']
    #allocation16 [shape = 'u8[65536]{0}', space=vmem, size = 0x10000, scoped, tag = 'input window, operand 6, single buffered']
    #allocation17 [shape = 's32[1]{0}', space=sflag, size = 0x4, scoped, tag = 'scoped memory for tpu_custom_call.1']
    #allocation18 [shape = 'u8[16384]{0}', space=vmem, size = 0x4000, scoped, tag = 'input window, operand 8, single buffered']
    #allocation19 [shape = 'u8[16384]{0}', space=vmem, size = 0x4000, scoped, tag = 'input window, operand 9, single buffered']
    #allocation20 [shape = 's32[1]{0}', space=sflag, size = 0x4, scoped, tag = 'scoped memory for tpu_custom_call.1']
    #allocation21 [shape = 'u8[16384]{0}', space=vmem, size = 0x4000, scoped, tag = 'input window, operand 10, single buffered']
    #allocation22 [shape = 'u8[512]{0}', space=vmem, size = 0x400, scoped, tag = 'input window, operand 11, single buffered']
    #allocation23 [shape = 's32[1]{0}', space=sflag, size = 0x4, scoped, tag = 'scoped memory for tpu_custom_call.1']
    #allocation24 [shape = 'u8[512]{0}', space=vmem, size = 0x400, scoped, tag = 'input window, operand 12, single buffered']
    #allocation25 [shape = 'u8[16384]{0}', space=vmem, size = 0x4000, scoped, tag = 'input window, operand 13, single buffered']
    #allocation26 [shape = 's32[1]{0}', space=sflag, size = 0x4, scoped, tag = 'scoped memory for tpu_custom_call.1']
    #allocation27 [shape = 'u8[8192]{0}', space=vmem, size = 0x2000, scoped, tag = 'input window, operand 15, single buffered']
    %24 = vsyncpa [#allocation9], 0
    %25 = vsyncpa [#allocation11], 0
    %26 = vsyncpa [#allocation14], 0
    %27 = vsyncpa [#allocation17], 0
    %28 = vsyncpa [#allocation20], 0
    %29 = vsyncpa [#allocation23], 0
    %30 = vsyncpa [#allocation26], 0
    // Predicated region
    $region2: #{tpu_custom_call.1} parent=1 // pred_check
      _
    $region3: #{tpu_custom_call.1} parent=1 // pred_check_branch
      %32 = sbr.rel (0) target = $region5
    $region4: #{tpu_custom_call.1} parent=1 // pred_region
      _
    $region5: #{tpu_custom_call.1} parent=1 // pred_fallthru
      _
    // Predicated region
    $region6: #{tpu_custom_call.1} parent=1 // pred_check
      _
    $region7: #{tpu_custom_call.1} parent=1 // pred_check_branch
      %34 = sbr.rel (0) target = $region9
    $region8: #{tpu_custom_call.1} parent=1 // pred_region
      %s36 = ssub.s32 1024, 1024
      %37 = vsyncadd [#allocation9], %s36
      %s38 = sshll.u32 [#allocation8], 4
      %s39 = int_to_ptr.vmem [resolvable:$true] %s38
      %44 = dma.hbm_to_vmem [thread:$0]  %s1, 1024, %s39, [#allocation9], 128, 128, 8
    $region9: #{tpu_custom_call.1} parent=1 // pred_fallthru
      _
    // Predicated region
    $region10: #{tpu_custom_call.1} parent=1 // pred_check
      _
    $region11: #{tpu_custom_call.1} parent=1 // pred_check_branch
      %46 = sbr.rel (0) target = $region13
    $region12: #{tpu_custom_call.1} parent=1 // pred_region
      %s48 = ssub.s32 1024, 1024
      %49 = vsyncadd [#allocation11], %s48
      %s50 = sshll.u32 [#allocation10], 4
      %s51 = int_to_ptr.vmem [resolvable:$true] %s50
      %56 = dma.hbm_to_vmem [thread:$0]  %s2, 1024, %s51, [#allocation11], 128, 128, 8
    $region13: #{tpu_custom_call.1} parent=1 // pred_fallthru
      _
    // Predicated region
    $region14: #{tpu_custom_call.1} parent=1 // pred_check
      _
    $region15: #{tpu_custom_call.1} parent=1 // pred_check_branch
      %58 = sbr.rel (0) target = $region17
    $region16: #{tpu_custom_call.1} parent=1 // pred_region
      %s60 = ssub.s32 1024, 1024
      %61 = vsyncadd [#allocation11], %s60
      %s62 = sshll.u32 [#allocation12], 4
      %s63 = int_to_ptr.vmem [resolvable:$true] %s62
      %68 = dma.hbm_to_vmem [thread:$0]  %s3, 1024, %s63, [#allocation11], 128, 128, 8
    $region17: #{tpu_custom_call.1} parent=1 // pred_fallthru
      _
    // Predicated region
    $region18: #{tpu_custom_call.1} parent=1 // pred_check
      _
    $region19: #{tpu_custom_call.1} parent=1 // pred_check_branch
      %70 = sbr.rel (0) target = $region21
    $region20: #{tpu_custom_call.1} parent=1 // pred_region
      %s72 = ssub.s32 16, 16
      %73 = vsyncadd [#allocation14], %s72
      %s75 = sshll.u32 [#allocation13], 4
      %s76 = int_to_ptr.vmem [resolvable:$true] %s75
      %78 = dma.hbm_to_vmem [thread:$0]  %s4, 16, %s76, [#allocation14]
    $region21: #{tpu_custom_call.1} parent=1 // pred_fallthru
      _
    // Predicated region
    $region22: #{tpu_custom_call.1} parent=1 // pred_check
      _
    $region23: #{tpu_custom_call.1} parent=1 // pred_check_branch
      %80 = sbr.rel (0) target = $region25
    $region24: #{tpu_custom_call.1} parent=1 // pred_region
      %s82 = ssub.s32 16, 16
      %83 = vsyncadd [#allocation14], %s82
      %s85 = sshll.u32 [#allocation15], 4
      %s86 = int_to_ptr.vmem [resolvable:$true] %s85
      %88 = dma.hbm_to_vmem [thread:$0]  %s5, 16, %s86, [#allocation14]
    $region25: #{tpu_custom_call.1} parent=1 // pred_fallthru
      _
    // Predicated region
    $region26: #{tpu_custom_call.1} parent=1 // pred_check
      _
    $region27: #{tpu_custom_call.1} parent=1 // pred_check_branch
      %90 = sbr.rel (0) target = $region29
    $region28: #{tpu_custom_call.1} parent=1 // pred_region
      %s92 = ssub.s32 2048, 2048
      %93 = vsyncadd [#allocation17], %s92
      %s94 = sshll.u32 [#allocation16], 4
      %s95 = int_to_ptr.vmem [resolvable:$true] %s94
      %100 = dma.hbm_to_vmem [thread:$0]  %s6, 2048, %s95, [#allocation17], 256, 256, 16
    $region29: #{tpu_custom_call.1} parent=1 // pred_fallthru
      _
    // Predicated region
    $region30: #{tpu_custom_call.1} parent=1 // pred_check
      _
    $region31: #{tpu_custom_call.1} parent=1 // pred_check_branch
      %102 = sbr.rel (0) target = $region33
    $region32: #{tpu_custom_call.1} parent=1 // pred_region
      _
    $region33: #{tpu_custom_call.1} parent=1 // pred_fallthru
      _
    // Predicated region
    $region34: #{tpu_custom_call.1} parent=1 // pred_check
      _
    $region35: #{tpu_custom_call.1} parent=1 // pred_check_branch
      %104 = sbr.rel (0) target = $region37
    $region36: #{tpu_custom_call.1} parent=1 // pred_region
      %s106 = ssub.s32 512, 512
      %107 = vsyncadd [#allocation17], %s106
      %s108 = sshll.u32 [#allocation18], 4
      %s109 = int_to_ptr.vmem [resolvable:$true] %s108
      %114 = dma.hbm_to_vmem [thread:$0]  %s8, 512, %s109, [#allocation17], 128, 128, 8
    $region37: #{tpu_custom_call.1} parent=1 // pred_fallthru
      _
    // Predicated region
    $region38: #{tpu_custom_call.1} parent=1 // pred_check
      _
    $region39: #{tpu_custom_call.1} parent=1 // pred_check_branch
      %116 = sbr.rel (0) target = $region41
    $region40: #{tpu_custom_call.1} parent=1 // pred_region
      %s118 = ssub.s32 512, 512
      %119 = vsyncadd [#allocation20], %s118
      %s120 = sshll.u32 [#allocation19], 4
      %s121 = int_to_ptr.vmem [resolvable:$true] %s120
      %126 = dma.hbm_to_vmem [thread:$0]  %s9, 512, %s121, [#allocation20], 128, 128, 8
    $region41: #{tpu_custom_call.1} parent=1 // pred_fallthru
      _
    // Predicated region
    $region42: #{tpu_custom_call.1} parent=1 // pred_check
      _
    $region43: #{tpu_custom_call.1} parent=1 // pred_check_branch
      %128 = sbr.rel (0) target = $region45
    $region44: #{tpu_custom_call.1} parent=1 // pred_region
      %s130 = ssub.s32 512, 512
      %131 = vsyncadd [#allocation20], %s130
      %s132 = sshll.u32 [#allocation21], 4
      %s133 = int_to_ptr.vmem [resolvable:$true] %s132
      %138 = dma.hbm_to_vmem [thread:$0]  %s10, 512, %s133, [#allocation20], 128, 128, 8
    $region45: #{tpu_custom_call.1} parent=1 // pred_fallthru
      _
    // Predicated region
    $region46: #{tpu_custom_call.1} parent=1 // pred_check
      _
    $region47: #{tpu_custom_call.1} parent=1 // pred_check_branch
      %140 = sbr.rel (0) target = $region49
    $region48: #{tpu_custom_call.1} parent=1 // pred_region
      %s142 = ssub.s32 16, 16
      %143 = vsyncadd [#allocation23], %s142
      %s145 = sshll.u32 [#allocation22], 4
      %s146 = int_to_ptr.vmem [resolvable:$true] %s145
      %148 = dma.hbm_to_vmem [thread:$0]  %s11, 16, %s146, [#allocation23]
    $region49: #{tpu_custom_call.1} parent=1 // pred_fallthru
      _
    // Predicated region
    $region50: #{tpu_custom_call.1} parent=1 // pred_check
      _
    $region51: #{tpu_custom_call.1} parent=1 // pred_check_branch
      %150 = sbr.rel (0) target = $region53
    $region52: #{tpu_custom_call.1} parent=1 // pred_region
      %s152 = ssub.s32 16, 16
      %153 = vsyncadd [#allocation23], %s152
      %s155 = sshll.u32 [#allocation24], 4
      %s156 = int_to_ptr.vmem [resolvable:$true] %s155
      %158 = dma.hbm_to_vmem [thread:$0]  %s12, 16, %s156, [#allocation23]
    $region53: #{tpu_custom_call.1} parent=1 // pred_fallthru
      _
    // Predicated region
    $region54: #{tpu_custom_call.1} parent=1 // pred_check
      _
    $region55: #{tpu_custom_call.1} parent=1 // pred_check_branch
      %160 = sbr.rel (0) target = $region57
    $region56: #{tpu_custom_call.1} parent=1 // pred_region
      %s162 = ssub.s32 512, 512
      %163 = vsyncadd [#allocation26], %s162
      %s164 = sshll.u32 [#allocation25], 4
      %s165 = int_to_ptr.vmem [resolvable:$true] %s164
      %170 = dma.hbm_to_vmem [thread:$0]  %s13, 512, %s165, [#allocation26], 128, 128, 8
    $region57: #{tpu_custom_call.1} parent=1 // pred_fallthru
      _
    // Predicated region
    $region58: #{tpu_custom_call.1} parent=1 // pred_check
      _
    $region59: #{tpu_custom_call.1} parent=1 // pred_check_branch
      %172 = sbr.rel (0) target = $region61
    $region60: #{tpu_custom_call.1} parent=1 // pred_region
      _
    $region61: #{tpu_custom_call.1} parent=1 // pred_fallthru
      _
    // Predicated region
    $region62: #{tpu_custom_call.1} parent=1 // pred_check
      _
    $region63: #{tpu_custom_call.1} parent=1 // pred_check_branch
      %174 = sbr.rel (0) target = $region65
    $region64: #{tpu_custom_call.1} parent=1 // pred_region
      %s176 = ssub.s32 256, 256
      %177 = vsyncadd [#allocation26], %s176
      %s178 = sshll.u32 [#allocation27], 4
      %s179 = int_to_ptr.vmem [resolvable:$true] %s178
      %184 = dma.hbm_to_vmem [thread:$0]  %s15, 256, %s179, [#allocation26], 128, 128, 8
    $region65: #{tpu_custom_call.1} parent=1 // pred_fallthru
      _
    // Predicated region
    $region66: #{tpu_custom_call.1} parent=1 // pred_check
      _
    $region67: #{tpu_custom_call.1} parent=1 // pred_check_branch
      %186 = sbr.rel (0) target = $region69
    $region68: #{tpu_custom_call.1} parent=1 // pred_region
      _
    $region69: #{tpu_custom_call.1} parent=1 // pred_fallthru
      _
    // Predicated region
    $region70: #{tpu_custom_call.1} parent=1 // pred_check
      _
    $region71: #{tpu_custom_call.1} parent=1 // pred_check_branch
      %188 = sbr.rel (0) target = $region73
    $region72: #{tpu_custom_call.1} parent=1 // pred_region
      _
    $region73: #{tpu_custom_call.1} parent=1 // pred_fallthru
      _
    // Predicated region
    $region74: #{tpu_custom_call.1} parent=1 // pred_check
      _
    $region75: #{tpu_custom_call.1} parent=1 // pred_check_branch
      %190 = sbr.rel (0) target = $region77
    $region76: #{tpu_custom_call.1} parent=1 // pred_region
      _
    $region77: #{tpu_custom_call.1} parent=1 // pred_fallthru
      _
    // Predicated region
    $region78: #{tpu_custom_call.1} parent=1 // pred_check
      _
    $region79: #{tpu_custom_call.1} parent=1 // pred_check_branch
      %192 = sbr.rel (0) target = $region81
    $region80: #{tpu_custom_call.1} parent=1 // pred_region
      %193 = dma.done [#allocation9], 1024
    $region81: #{tpu_custom_call.1} parent=1 // pred_fallthru
      _
    // Predicated region
    $region82: #{tpu_custom_call.1} parent=1 // pred_check
      _
    $region83: #{tpu_custom_call.1} parent=1 // pred_check_branch
      %195 = sbr.rel (0) target = $region85
    $region84: #{tpu_custom_call.1} parent=1 // pred_region
      %196 = dma.done [#allocation11], 1024
    $region85: #{tpu_custom_call.1} parent=1 // pred_fallthru
      _
    // Predicated region
    $region86: #{tpu_custom_call.1} parent=1 // pred_check
      _
    $region87: #{tpu_custom_call.1} parent=1 // pred_check_branch
      %198 = sbr.rel (0) target = $region89
    $region88: #{tpu_custom_call.1} parent=1 // pred_region
      %199 = dma.done [#allocation11], 1024
    $region89: #{tpu_custom_call.1} parent=1 // pred_fallthru
      _
    // Predicated region
    $region90: #{tpu_custom_call.1} parent=1 // pred_check
      _
    $region91: #{tpu_custom_call.1} parent=1 // pred_check_branch
      %201 = sbr.rel (0) target = $region93
    $region92: #{tpu_custom_call.1} parent=1 // pred_region
      %202 = dma.done [#allocation14], 16
    $region93: #{tpu_custom_call.1} parent=1 // pred_fallthru
      _
    // Predicated region
    $region94: #{tpu_custom_call.1} parent=1 // pred_check
      _
    $region95: #{tpu_custom_call.1} parent=1 // pred_check_branch
      %204 = sbr.rel (0) target = $region97
    $region96: #{tpu_custom_call.1} parent=1 // pred_region
      %205 = dma.done [#allocation14], 16
    $region97: #{tpu_custom_call.1} parent=1 // pred_fallthru
      _
    // Predicated region
    $region98: #{tpu_custom_call.1} parent=1 // pred_check
      _
    $region99: #{tpu_custom_call.1} parent=1 // pred_check_branch
      %207 = sbr.rel (0) target = $region101
    $region100: #{tpu_custom_call.1} parent=1 // pred_region
      %208 = dma.done [#allocation17], 2048
    $region101: #{tpu_custom_call.1} parent=1 // pred_fallthru
      _
    // Predicated region
    $region102: #{tpu_custom_call.1} parent=1 // pred_check
      _
    $region103: #{tpu_custom_call.1} parent=1 // pred_check_branch
      %210 = sbr.rel (0) target = $region105
    $region104: #{tpu_custom_call.1} parent=1 // pred_region
      %211 = dma.done [#allocation17], 512
    $region105: #{tpu_custom_call.1} parent=1 // pred_fallthru
      _
    // Predicated region
    $region106: #{tpu_custom_call.1} parent=1 // pred_check
      _
    $region107: #{tpu_custom_call.1} parent=1 // pred_check_branch
      %213 = sbr.rel (0) target = $region109
    $region108: #{tpu_custom_call.1} parent=1 // pred_region
      %214 = dma.done [#allocation20], 512
    $region109: #{tpu_custom_call.1} parent=1 // pred_fallthru
      _
    // Predicated region
    $region110: #{tpu_custom_call.1} parent=1 // pred_check
      _
    $region111: #{tpu_custom_call.1} parent=1 // pred_check_branch
      %216 = sbr.rel (0) target = $region113
    $region112: #{tpu_custom_call.1} parent=1 // pred_region
      %217 = dma.done [#allocation20], 512
    $region113: #{tpu_custom_call.1} parent=1 // pred_fallthru
      _
    // Predicated region
    $region114: #{tpu_custom_call.1} parent=1 // pred_check
      _
    $region115: #{tpu_custom_call.1} parent=1 // pred_check_branch
      %219 = sbr.rel (0) target = $region117
    $region116: #{tpu_custom_call.1} parent=1 // pred_region
      %220 = dma.done [#allocation23], 16
    $region117: #{tpu_custom_call.1} parent=1 // pred_fallthru
      _
    // Predicated region
    $region118: #{tpu_custom_call.1} parent=1 // pred_check
      _
    $region119: #{tpu_custom_call.1} parent=1 // pred_check_branch
      %222 = sbr.rel (0) target = $region121
    $region120: #{tpu_custom_call.1} parent=1 // pred_region
      %223 = dma.done [#allocation23], 16
    $region121: #{tpu_custom_call.1} parent=1 // pred_fallthru
      _
    // Predicated region
    $region122: #{tpu_custom_call.1} parent=1 // pred_check
      _
    $region123: #{tpu_custom_call.1} parent=1 // pred_check_branch
      %225 = sbr.rel (0) target = $region125
    $region124: #{tpu_custom_call.1} parent=1 // pred_region
      %226 = dma.done [#allocation26], 512
    $region125: #{tpu_custom_call.1} parent=1 // pred_fallthru
      _
    // Predicated region
    $region126: #{tpu_custom_call.1} parent=1 // pred_check
      _
    $region127: #{tpu_custom_call.1} parent=1 // pred_check_branch
      %228 = sbr.rel (0) target = $region129
    $region128: #{tpu_custom_call.1} parent=1 // pred_region
      %229 = dma.done [#allocation26], 256
    $region129: #{tpu_custom_call.1} parent=1 // pred_fallthru
      _
    %v230 = vld [vmem:[#allocation8] sm:$0xff]
    %v231 = vld [vmem:[#allocation8 + $0x8] sm:$0xff]
    %v232 = vld [vmem:[#allocation8 + $0x10] sm:$0xff]
    %v233 = vld [vmem:[#allocation8 + $0x18] sm:$0xff]
    %v234 = vld [vmem:[#allocation8 + $0x20] sm:$0xff]
    %v235 = vld [vmem:[#allocation8 + $0x28] sm:$0xff]
    %v236 = vld [vmem:[#allocation8 + $0x30] sm:$0xff]
    %v237 = vld [vmem:[#allocation8 + $0x38] sm:$0xff]
    %v238 = vld [vmem:[#allocation10] sm:$0xff]
    %v239 = vld [vmem:[#allocation10 + $0x8] sm:$0xff]
    %v240 = vld [vmem:[#allocation10 + $0x10] sm:$0xff]
    %v241 = vld [vmem:[#allocation10 + $0x18] sm:$0xff]
    %v242 = vld [vmem:[#allocation10 + $0x20] sm:$0xff]
    %v243 = vld [vmem:[#allocation10 + $0x28] sm:$0xff]
    %v244 = vld [vmem:[#allocation10 + $0x30] sm:$0xff]
    %v245 = vld [vmem:[#allocation10 + $0x38] sm:$0xff]
    %v246 = vld [vmem:[#allocation13] sm:$0x1]
    %v248 = vlaneseq
    %v249 = vshrl.u32 %v248, 7
    %v250 = vsub.s32 0, %v249
    %v251 = vrot.slane %v246, %v250
    %vm253 = vcmask 523264
    %v255 = vsel %vm253, %v230, 0
    %v258 = vsel %vm253, %v231, 0
    %v261 = vsel %vm253, %v232, 0
    %v264 = vsel %vm253, %v233, 0
    %v267 = vsel %vm253, %v234, 0
    %v270 = vsel %vm253, %v235, 0
    %v273 = vsel %vm253, %v236, 0
    %v276 = vsel %vm253, %v237, 0
    %278 = vmatprep.subr.mxu0 0.0
    %279 = vmatpush1.msra.mxu0 0.0
    %280 = vmatprep.subr.mxu0 0.0
    %281 = vmatpush1.msra.mxu0 0.0
    %282 = vmatprep.subr.mxu0 0.0
    %283 = vmatpush1.msra.mxu0 0.0
    %284 = vmatprep.subr.mxu0 0.0
    %285 = vmatpush1.msra.mxu0 0.0
    %286 = vmatprep.subr.mxu0 0.0
    %287 = vmatpush1.msra.mxu0 0.0
    %288 = vmatprep.subr.mxu0 0.0
    %289 = vmatpush1.msra.mxu0 0.0
    %290 = vmatprep.subr.mxu0 0.0
    %291 = vmatpush1.msra.mxu0 0.0
    %292 = vmatprep.subr.mxu0 0.0
    %293 = vmatpush1.msra.mxu0 0.0
    %294 = vmatprep.subr.mxu0 0.0
    %295 = vmatpush1.msra.mxu0 %v245
    %296 = vmatprep.subr.mxu0 0.0
    %297 = vmatpush1.msra.mxu0 %v244
    %298 = vmatprep.subr.mxu0 0.0
    %299 = vmatpush1.msra.mxu0 %v243
    %300 = vmatprep.subr.mxu0 0.0
    %301 = vmatpush1.msra.mxu0 %v242
    %302 = vmatprep.subr.mxu0 0.0
    %303 = vmatpush1.msra.mxu0 %v241
    %304 = vmatprep.subr.mxu0 0.0
    %305 = vmatpush1.msra.mxu0 %v240
    %306 = vmatprep.subr.mxu0 0.0
    %307 = vmatpush1.msra.mxu0 %v239
    %308 = vmatprep.subr.mxu0 0.0
    %309 = vmatpush1.msra.mxu0 %v238
    %310 = vmatprep.subr.mxu0 0.0
    %311 = vmatpush2.msra.mxu0 0.0
    %312 = vmatprep.subr.mxu0 0.0
    %313 = vmatpush2.msra.mxu0 0.0
    %314 = vmatprep.subr.mxu0 0.0
    %315 = vmatpush2.msra.mxu0 0.0
    %316 = vmatprep.subr.mxu0 0.0
    %317 = vmatpush2.msra.mxu0 0.0
    %318 = vmatprep.subr.mxu0 0.0
    %319 = vmatpush2.msra.mxu0 0.0
    %320 = vmatprep.subr.mxu0 0.0
    %321 = vmatpush2.msra.mxu0 0.0
    %322 = vmatprep.subr.mxu0 0.0
    %323 = vmatpush2.msra.mxu0 0.0
    %324 = vmatprep.subr.mxu0 0.0
    %325 = vmatpush2.msra.mxu0 0.0
    %326 = vmatprep.subr.mxu0 0.0
    %327 = vmatpush2.msra.mxu0 0.0
    %328 = vmatprep.subr.mxu0 0.0
    %329 = vmatpush2.msra.mxu0 0.0
    %330 = vmatprep.subr.mxu0 0.0
    %331 = vmatpush2.msra.mxu0 0.0
    %332 = vmatprep.subr.mxu0 0.0
    %333 = vmatpush2.msra.mxu0 0.0
    %334 = vmatprep.subr.mxu0 0.0
    %335 = vmatpush2.msra.mxu0 0.0
    %336 = vmatprep.subr.mxu0 0.0
    %337 = vmatpush2.msra.mxu0 0.0
    %338 = vmatprep.subr.mxu0 0.0
    %339 = vmatpush2.msra.mxu0 0.0
    %340 = vmatprep.subr.mxu0 0.0
    %341 = vmatpush2.msra.mxu0 0.0
    %342 = vmatprep.mubr.f32.mxu0 0.0
    %343 = vmatmul.mubr.f32.gmra.mxu0 %v255
    %v344 = vpop.f32.mrf.mxu0
    %v345 = vadd.f32 %v251, %v344
    %v346 = vpop.f32.mrf.mxu0
    %347 = vmatprep.mubr.f32.mxu0 0.0
    %348 = vmatmul.mubr.f32.gmra.mxu0 %v258
    %v349 = vpop.f32.mrf.mxu0
    %v350 = vadd.f32 %v251, %v349
    %v351 = vpop.f32.mrf.mxu0
    %352 = vmatprep.mubr.f32.mxu0 0.0
    %353 = vmatmul.mubr.f32.gmra.mxu0 %v261
    %v354 = vpop.f32.mrf.mxu0
    %v355 = vadd.f32 %v251, %v354
    %v356 = vpop.f32.mrf.mxu0
    %357 = vmatprep.mubr.f32.mxu0 0.0
    %358 = vmatmul.mubr.f32.gmra.mxu0 %v264
    %v359 = vpop.f32.mrf.mxu0
    %v360 = vadd.f32 %v251, %v359
    %v361 = vpop.f32.mrf.mxu0
    %362 = vmatprep.mubr.f32.mxu0 0.0
    %363 = vmatmul.mubr.f32.gmra.mxu0 %v267
    %v364 = vpop.f32.mrf.mxu0
    %v365 = vadd.f32 %v251, %v364
    %v366 = vpop.f32.mrf.mxu0
    %367 = vmatprep.mubr.f32.mxu0 0.0
    %368 = vmatmul.mubr.f32.gmra.mxu0 %v270
    %v369 = vpop.f32.mrf.mxu0
    %v370 = vadd.f32 %v251, %v369
    %v371 = vpop.f32.mrf.mxu0
    %372 = vmatprep.mubr.f32.mxu0 0.0
    %373 = vmatmul.mubr.f32.gmra.mxu0 %v273
    %v374 = vpop.f32.mrf.mxu0
    %v375 = vadd.f32 %v251, %v374
    %v376 = vpop.f32.mrf.mxu0
    %377 = vmatprep.mubr.f32.mxu0 0.0
    %378 = vmatmul.mubr.f32.gmra.mxu0 %v276
    %v379 = vpop.f32.mrf.mxu0
    %v380 = vadd.f32 %v251, %v379
    %v381 = vpop.f32.mrf.mxu0
    %382 = vdwg.mxu0
    %v383 = vld [vmem:[#allocation12] sm:$0xff]
    %v384 = vld [vmem:[#allocation12 + $0x8] sm:$0xff]
    %v385 = vld [vmem:[#allocation12 + $0x10] sm:$0xff]
    %v386 = vld [vmem:[#allocation12 + $0x18] sm:$0xff]
    %v387 = vld [vmem:[#allocation12 + $0x20] sm:$0xff]
    %v388 = vld [vmem:[#allocation12 + $0x28] sm:$0xff]
    %v389 = vld [vmem:[#allocation12 + $0x30] sm:$0xff]
    %v390 = vld [vmem:[#allocation12 + $0x38] sm:$0xff]
    %v391 = vld [vmem:[#allocation15] sm:$0x1]
    %v393 = vlaneseq
    %v394 = vshrl.u32 %v393, 7
    %v395 = vsub.s32 0, %v394
    %v396 = vrot.slane %v391, %v395
    %398 = vmatprep.subr.mxu0 0.0
    %399 = vmatpush1.msra.mxu0 0.0
    %400 = vmatprep.subr.mxu0 0.0
    %401 = vmatpush1.msra.mxu0 0.0
    %402 = vmatprep.subr.mxu0 0.0
    %403 = vmatpush1.msra.mxu0 0.0
    %404 = vmatprep.subr.mxu0 0.0
    %405 = vmatpush1.msra.mxu0 0.0
    %406 = vmatprep.subr.mxu0 0.0
    %407 = vmatpush1.msra.mxu0 0.0
    %408 = vmatprep.subr.mxu0 0.0
    %409 = vmatpush1.msra.mxu0 0.0
    %410 = vmatprep.subr.mxu0 0.0
    %411 = vmatpush1.msra.mxu0 0.0
    %412 = vmatprep.subr.mxu0 0.0
    %413 = vmatpush1.msra.mxu0 0.0
    %414 = vmatprep.subr.mxu0 0.0
    %415 = vmatpush1.msra.mxu0 %v390
    %416 = vmatprep.subr.mxu0 0.0
    %417 = vmatpush1.msra.mxu0 %v389
    %418 = vmatprep.subr.mxu0 0.0
    %419 = vmatpush1.msra.mxu0 %v388
    %420 = vmatprep.subr.mxu0 0.0
    %421 = vmatpush1.msra.mxu0 %v387
    %422 = vmatprep.subr.mxu0 0.0
    %423 = vmatpush1.msra.mxu0 %v386
    %424 = vmatprep.subr.mxu0 0.0
    %425 = vmatpush1.msra.mxu0 %v385
    %426 = vmatprep.subr.mxu0 0.0
    %427 = vmatpush1.msra.mxu0 %v384
    %428 = vmatprep.subr.mxu0 0.0
    %429 = vmatpush1.msra.mxu0 %v383
    %430 = vmatprep.subr.mxu0 0.0
    %431 = vmatpush2.msra.mxu0 0.0
    %432 = vmatprep.subr.mxu0 0.0
    %433 = vmatpush2.msra.mxu0 0.0
    %434 = vmatprep.subr.mxu0 0.0
    %435 = vmatpush2.msra.mxu0 0.0
    %436 = vmatprep.subr.mxu0 0.0
    %437 = vmatpush2.msra.mxu0 0.0
    %438 = vmatprep.subr.mxu0 0.0
    %439 = vmatpush2.msra.mxu0 0.0
    %440 = vmatprep.subr.mxu0 0.0
    %441 = vmatpush2.msra.mxu0 0.0
    %442 = vmatprep.subr.mxu0 0.0
    %443 = vmatpush2.msra.mxu0 0.0
    %444 = vmatprep.subr.mxu0 0.0
    %445 = vmatpush2.msra.mxu0 0.0
    %446 = vmatprep.subr.mxu0 0.0
    %447 = vmatpush2.msra.mxu0 0.0
    %448 = vmatprep.subr.mxu0 0.0
    %449 = vmatpush2.msra.mxu0 0.0
    %450 = vmatprep.subr.mxu0 0.0
    %451 = vmatpush2.msra.mxu0 0.0
    %452 = vmatprep.subr.mxu0 0.0
    %453 = vmatpush2.msra.mxu0 0.0
    %454 = vmatprep.subr.mxu0 0.0
    %455 = vmatpush2.msra.mxu0 0.0
    %456 = vmatprep.subr.mxu0 0.0
    %457 = vmatpush2.msra.mxu0 0.0
    %458 = vmatprep.subr.mxu0 0.0
    %459 = vmatpush2.msra.mxu0 0.0
    %460 = vmatprep.subr.mxu0 0.0
    %461 = vmatpush2.msra.mxu0 0.0
    %462 = vmatprep.mubr.f32.mxu0 0.0
    %463 = vmatmul.mubr.f32.gmra.mxu0 %v255
    %v464 = vpop.f32.mrf.mxu0
    %v465 = vadd.f32 %v396, %v464
    %v466 = vpop.f32.mrf.mxu0
    %467 = vmatprep.mubr.f32.mxu0 0.0
    %468 = vmatmul.mubr.f32.gmra.mxu0 %v258
    %v469 = vpop.f32.mrf.mxu0
    %v470 = vadd.f32 %v396, %v469
    %v471 = vpop.f32.mrf.mxu0
    %472 = vmatprep.mubr.f32.mxu0 0.0
    %473 = vmatmul.mubr.f32.gmra.mxu0 %v261
    %v474 = vpop.f32.mrf.mxu0
    %v475 = vadd.f32 %v396, %v474
    %v476 = vpop.f32.mrf.mxu0
    %477 = vmatprep.mubr.f32.mxu0 0.0
    %478 = vmatmul.mubr.f32.gmra.mxu0 %v264
    %v479 = vpop.f32.mrf.mxu0
    %v480 = vadd.f32 %v396, %v479
    %v481 = vpop.f32.mrf.mxu0
    %482 = vmatprep.mubr.f32.mxu0 0.0
    %483 = vmatmul.mubr.f32.gmra.mxu0 %v267
    %v484 = vpop.f32.mrf.mxu0
    %v485 = vadd.f32 %v396, %v484
    %v486 = vpop.f32.mrf.mxu0
    %487 = vmatprep.mubr.f32.mxu0 0.0
    %488 = vmatmul.mubr.f32.gmra.mxu0 %v270
    %v489 = vpop.f32.mrf.mxu0
    %v490 = vadd.f32 %v396, %v489
    %v491 = vpop.f32.mrf.mxu0
    %492 = vmatprep.mubr.f32.mxu0 0.0
    %493 = vmatmul.mubr.f32.gmra.mxu0 %v273
    %v494 = vpop.f32.mrf.mxu0
    %v495 = vadd.f32 %v396, %v494
    %v496 = vpop.f32.mrf.mxu0
    %497 = vmatprep.mubr.f32.mxu0 0.0
    %498 = vmatmul.mubr.f32.gmra.mxu0 %v276
    %v499 = vpop.f32.mrf.mxu0
    %v500 = vadd.f32 %v396, %v499
    %v501 = vpop.f32.mrf.mxu0
    %502 = vdwg.mxu0
    %503 = vst [vmem:[#allocation2] sm:$0xff] %v345
    %504 = vst [vmem:[#allocation2 + $0x8] sm:$0xff] %v350
    %505 = vst [vmem:[#allocation2 + $0x10] sm:$0xff] %v355
    %506 = vst [vmem:[#allocation2 + $0x18] sm:$0xff] %v360
    %507 = vst [vmem:[#allocation2 + $0x20] sm:$0xff] %v365
    %508 = vst [vmem:[#allocation2 + $0x28] sm:$0xff] %v370
    %509 = vst [vmem:[#allocation2 + $0x30] sm:$0xff] %v375
    %510 = vst [vmem:[#allocation2 + $0x38] sm:$0xff] %v380
    %511 = vst [vmem:[#allocation3] sm:$0xff] %v465
    %512 = vst [vmem:[#allocation3 + $0x8] sm:$0xff] %v470
    %513 = vst [vmem:[#allocation3 + $0x10] sm:$0xff] %v475
    %514 = vst [vmem:[#allocation3 + $0x18] sm:$0xff] %v480
    %515 = vst [vmem:[#allocation3 + $0x20] sm:$0xff] %v485
    %516 = vst [vmem:[#allocation3 + $0x28] sm:$0xff] %v490
    %517 = vst [vmem:[#allocation3 + $0x30] sm:$0xff] %v495
    %518 = vst [vmem:[#allocation3 + $0x38] sm:$0xff] %v500
    %v519 = vld [vmem:[%s0] sm:$0xff]
    %v520 = vld [vmem:[#allocation16] sm:$0xff]
    %v521 = vld [vmem:[#allocation16 + $0x8] sm:$0xff]
    %v522 = vld [vmem:[#allocation16 + $0x10] sm:$0xff]
    %v523 = vld [vmem:[#allocation16 + $0x18] sm:$0xff]
    %v524 = vld [vmem:[#allocation16 + $0x20] sm:$0xff]
    %v525 = vld [vmem:[#allocation16 + $0x28] sm:$0xff]
    %v526 = vld [vmem:[#allocation16 + $0x30] sm:$0xff]
    %v527 = vld [vmem:[#allocation16 + $0x38] sm:$0xff]
    %v528 = vld [vmem:[#allocation16 + $0x40] sm:$0xff]
    %v529 = vld [vmem:[#allocation16 + $0x48] sm:$0xff]
    %v530 = vld [vmem:[#allocation16 + $0x50] sm:$0xff]
    %v531 = vld [vmem:[#allocation16 + $0x58] sm:$0xff]
    %v532 = vld [vmem:[#allocation16 + $0x60] sm:$0xff]
    %v533 = vld [vmem:[#allocation16 + $0x68] sm:$0xff]
    %v534 = vld [vmem:[#allocation16 + $0x70] sm:$0xff]
    %v535 = vld [vmem:[#allocation16 + $0x78] sm:$0xff]
    %v536 = vld [vmem:[#allocation25] sm:$0xff]
    %v537 = vld [vmem:[#allocation25 + $0x8] sm:$0xff]
    %v538 = vld [vmem:[#allocation25 + $0x10] sm:$0xff]
    %v539 = vld [vmem:[#allocation25 + $0x18] sm:$0xff]
    %v540 = vld [vmem:[#allocation2] sm:$0xff]
    %s541 = scalar_lea.vmem [#allocation3], 56
    %v542 = vld [vmem:[%s541] sm:$0xff]
    %v544 = vsel %vm253, 0.0, 0
    %546 = vmatprep.subr.mxu0 0.0
    %547 = vmatpush1.msra.mxu0 0.0
    %548 = vmatprep.subr.mxu0 0.0
    %549 = vmatpush1.msra.mxu0 0.0
    %550 = vmatprep.subr.mxu0 0.0
    %551 = vmatpush1.msra.mxu0 0.0
    %552 = vmatprep.subr.mxu0 0.0
    %553 = vmatpush1.msra.mxu0 0.0
    %554 = vmatprep.subr.mxu0 0.0
    %555 = vmatpush1.msra.mxu0 0.0
    %556 = vmatprep.subr.mxu0 0.0
    %557 = vmatpush1.msra.mxu0 0.0
    %558 = vmatprep.subr.mxu0 0.0
    %559 = vmatpush1.msra.mxu0 0.0
    %560 = vmatprep.subr.mxu0 0.0
    %561 = vmatpush1.msra.mxu0 0.0
    %562 = vmatprep.subr.mxu0 %v535
    %563 = vmatpush1.msra.mxu0 %v534
    %564 = vmatprep.subr.mxu0 %v533
    %565 = vmatpush1.msra.mxu0 %v532
    %566 = vmatprep.subr.mxu0 %v531
    %567 = vmatpush1.msra.mxu0 %v530
    %568 = vmatprep.subr.mxu0 %v529
    %569 = vmatpush1.msra.mxu0 %v528
    %570 = vmatprep.subr.mxu0 %v527
    %571 = vmatpush1.msra.mxu0 %v526
    %572 = vmatprep.subr.mxu0 %v525
    %573 = vmatpush1.msra.mxu0 %v524
    %574 = vmatprep.subr.mxu0 %v523
    %575 = vmatpush1.msra.mxu0 %v522
    %576 = vmatprep.subr.mxu0 %v521
    %577 = vmatpush1.msra.mxu0 %v520
    %578 = vmatprep.subr.mxu0 0.0
    %579 = vmatpush2.msra.mxu0 0.0
    %580 = vmatprep.subr.mxu0 0.0
    %581 = vmatpush2.msra.mxu0 0.0
    %582 = vmatprep.subr.mxu0 0.0
    %583 = vmatpush2.msra.mxu0 0.0
    %584 = vmatprep.subr.mxu0 0.0
    %585 = vmatpush2.msra.mxu0 0.0
    %586 = vmatprep.subr.mxu0 0.0
    %587 = vmatpush2.msra.mxu0 0.0
    %588 = vmatprep.subr.mxu0 0.0
    %589 = vmatpush2.msra.mxu0 0.0
    %590 = vmatprep.subr.mxu0 0.0
    %591 = vmatpush2.msra.mxu0 0.0
    %592 = vmatprep.subr.mxu0 0.0
    %593 = vmatpush2.msra.mxu0 0.0
    %594 = vmatprep.subr.mxu0 0.0
    %595 = vmatpush2.msra.mxu0 0.0
    %596 = vmatprep.subr.mxu0 0.0
    %597 = vmatpush2.msra.mxu0 0.0
    %598 = vmatprep.subr.mxu0 0.0
    %599 = vmatpush2.msra.mxu0 0.0
    %600 = vmatprep.subr.mxu0 0.0
    %601 = vmatpush2.msra.mxu0 0.0
    %602 = vmatprep.subr.mxu0 0.0
    %603 = vmatpush2.msra.mxu0 0.0
    %604 = vmatprep.subr.mxu0 0.0
    %605 = vmatpush2.msra.mxu0 0.0
    %606 = vmatprep.subr.mxu0 0.0
    %607 = vmatpush2.msra.mxu0 0.0
    %608 = vmatprep.subr.mxu0 0.0
    %609 = vmatpush2.msra.mxu0 0.0
    %610 = vmatprep.mubr.f32.mxu0 0.0
    %611 = vmatmul.mubr.f32.gmra.mxu0 %v544
    %v612 = vpop.f32.mrf.mxu0
    %v613 = vadd.f32 0.0, %v612
    %v614 = vpop.f32.mrf.mxu0
    %v615 = vadd.f32 0.0, %v614
    %616 = vdwg.mxu0
    %v617 = vadd.f32 %v613, %v540
    %v618 = vxor.u32 %v617, 2147483648
    %v619 = vmul.f32 %v618, 1.442695
    %v620 = vpow.pop %v619
    %v621 = vadd.f32 %v620, 1.0
    %v622 = vrcp.pop %v621
    %v623 = vmul.f32 1.0, %v622
    %v624 = vtanh.pop %v617
    %v625 = vmul.f32 %v623, 0.0
    %627 = vrot.lane.b32.xlu0 %v624, 32
    %v628 = vpop.permute.xlu0 %627
    %v630 = vmul.f32 %v623, %v628
    %632 = vrot.lane.b32.xlu0 %v630, 32
    %v633 = vpop.permute.xlu0 %632
    %v635 = vadd.f32 %v625, %v633
    %v636 = vtanh.pop %v635
    %638 = vrot.lane.b32.xlu0 %v636, 32
    %v639 = vpop.permute.xlu0 %638
    %v641 = vmul.f32 %v623, %v639
    %v642 = vadd.f32 %v615, %v542
    %v643 = vxor.u32 %v642, 2147483648
    %v644 = vmul.f32 %v643, 1.442695
    %v645 = vpow.pop %v644
    %v646 = vadd.f32 %v645, 1.0
    %v647 = vrcp.pop %v646
    %v648 = vmul.f32 1.0, %v647
    %v649 = vtanh.pop %v642
    %v650 = vmul.f32 %v648, 0.0
    %652 = vrot.lane.b32.xlu0 %v649, 32
    %v653 = vpop.permute.xlu0 %652
    %v655 = vmul.f32 %v648, %v653
    %657 = vrot.lane.b32.xlu0 %v655, 32
    %v658 = vpop.permute.xlu0 %657
    %v660 = vadd.f32 %v650, %v658
    %v661 = vtanh.pop %v660
    %663 = vrot.lane.b32.xlu0 %v661, 32
    %v664 = vpop.permute.xlu0 %663
    %v666 = vmul.f32 %v648, %v664
    %668 = vrot.lane.b32.xlu0 %v641, 64
    %v669 = vpop.permute.xlu0 %668
    %vm671 = vcmask 261120
    %672 = vst.msk [vmem:[#allocation4] sm:$0xff] %vm671, %v669
    %674 = vrot.lane.b32.xlu0 %v666, 64
    %v675 = vpop.permute.xlu0 %674
    %s677 = scalar_lea.vmem [#allocation5], 56
    %678 = vst.msk [vmem:[%s677] sm:$0xff] %vm671, %v675
    %s679 = scalar_lea.vmem [#allocation2], 8
    %v680 = vld [vmem:[%s679] sm:$0xff]
    %s681 = scalar_lea.vmem [#allocation3], 48
    %v682 = vld [vmem:[%s681] sm:$0xff]
    %683 = vrot.lane.b32.xlu0 %v666, 96
    %v684 = vpop.permute.xlu0 %683
    %v686 = vsel %vm671, %v669, %v684
    %v688 = vsel %vm253, %v686, 0
    %690 = vmatprep.subr.mxu0 0.0
    %691 = vmatpush1.msra.mxu0 0.0
    %692 = vmatprep.subr.mxu0 0.0
    %693 = vmatpush1.msra.mxu0 0.0
    %694 = vmatprep.subr.mxu0 0.0
    %695 = vmatpush1.msra.mxu0 0.0
    %696 = vmatprep.subr.mxu0 0.0
    %697 = vmatpush1.msra.mxu0 0.0
    %698 = vmatprep.subr.mxu0 0.0
    %699 = vmatpush1.msra.mxu0 0.0
    %700 = vmatprep.subr.mxu0 0.0
    %701 = vmatpush1.msra.mxu0 0.0
    %702 = vmatprep.subr.mxu0 0.0
    %703 = vmatpush1.msra.mxu0 0.0
    %704 = vmatprep.subr.mxu0 0.0
    %705 = vmatpush1.msra.mxu0 0.0
    %706 = vmatprep.subr.mxu0 %v535
    %707 = vmatpush1.msra.mxu0 %v534
    %708 = vmatprep.subr.mxu0 %v533
    %709 = vmatpush1.msra.mxu0 %v532
    %710 = vmatprep.subr.mxu0 %v531
    %711 = vmatpush1.msra.mxu0 %v530
    %712 = vmatprep.subr.mxu0 %v529
    %713 = vmatpush1.msra.mxu0 %v528
    %714 = vmatprep.subr.mxu0 %v527
    %715 = vmatpush1.msra.mxu0 %v526
    %716 = vmatprep.subr.mxu0 %v525
    %717 = vmatpush1.msra.mxu0 %v524
    %718 = vmatprep.subr.mxu0 %v523
    %719 = vmatpush1.msra.mxu0 %v522
    %720 = vmatprep.subr.mxu0 %v521
    %721 = vmatpush1.msra.mxu0 %v520
    %722 = vmatprep.subr.mxu0 0.0
    %723 = vmatpush2.msra.mxu0 0.0
    %724 = vmatprep.subr.mxu0 0.0
    %725 = vmatpush2.msra.mxu0 0.0
    %726 = vmatprep.subr.mxu0 0.0
    %727 = vmatpush2.msra.mxu0 0.0
    %728 = vmatprep.subr.mxu0 0.0
    %729 = vmatpush2.msra.mxu0 0.0
    %730 = vmatprep.subr.mxu0 0.0
    %731 = vmatpush2.msra.mxu0 0.0
    %732 = vmatprep.subr.mxu0 0.0
    %733 = vmatpush2.msra.mxu0 0.0
    %734 = vmatprep.subr.mxu0 0.0
    %735 = vmatpush2.msra.mxu0 0.0
    %736 = vmatprep.subr.mxu0 0.0
    %737 = vmatpush2.msra.mxu0 0.0
    %738 = vmatprep.subr.mxu0 0.0
    %739 = vmatpush2.msra.mxu0 0.0
    %740 = vmatprep.subr.mxu0 0.0
    %741 = vmatpush2.msra.mxu0 0.0
    %742 = vmatprep.subr.mxu0 0.0
    %743 = vmatpush2.msra.mxu0 0.0
    %744 = vmatprep.subr.mxu0 0.0
    %745 = vmatpush2.msra.mxu0 0.0
    %746 = vmatprep.subr.mxu0 0.0
    %747 = vmatpush2.msra.mxu0 0.0
    %748 = vmatprep.subr.mxu0 0.0
    %749 = vmatpush2.msra.mxu0 0.0
    %750 = vmatprep.subr.mxu0 0.0
    %751 = vmatpush2.msra.mxu0 0.0
    %752 = vmatprep.subr.mxu0 0.0
    %753 = vmatpush2.msra.mxu0 0.0
    %754 = vmatprep.mubr.f32.mxu0 0.0
    %755 = vmatmul.mubr.f32.gmra.mxu0 %v688
    %v756 = vpop.f32.mrf.mxu0
    %v757 = vadd.f32 0.0, %v756
    %v758 = vpop.f32.mrf.mxu0
    %v759 = vadd.f32 0.0, %v758
    %760 = vdwg.mxu0
    %v761 = vadd.f32 %v757, %v680
    %v762 = vxor.u32 %v761, 2147483648
    %v763 = vmul.f32 %v762, 1.442695
    %v764 = vpow.pop %v763
    %v765 = vadd.f32 %v764, 1.0
    %v766 = vrcp.pop %v765
    %v767 = vmul.f32 1.0, %v766
    %v768 = vtanh.pop %v761
    %v769 = vmul.f32 %v767, %v635
    %771 = vrot.lane.b32.xlu0 %v768, 32
    %v772 = vpop.permute.xlu0 %771
    %v774 = vmul.f32 %v767, %v772
    %776 = vrot.lane.b32.xlu0 %v774, 32
    %v777 = vpop.permute.xlu0 %776
    %v779 = vadd.f32 %v769, %v777
    %v780 = vtanh.pop %v779
    %782 = vrot.lane.b32.xlu0 %v780, 32
    %v783 = vpop.permute.xlu0 %782
    %v785 = vmul.f32 %v767, %v783
    %v786 = vadd.f32 %v759, %v682
    %v787 = vxor.u32 %v786, 2147483648
    %v788 = vmul.f32 %v787, 1.442695
    %v789 = vpow.pop %v788
    %v790 = vadd.f32 %v789, 1.0
    %v791 = vrcp.pop %v790
    %v792 = vmul.f32 1.0, %v791
    %v793 = vtanh.pop %v786
    %v794 = vmul.f32 %v792, %v660
    %796 = vrot.lane.b32.xlu0 %v793, 32
    %v797 = vpop.permute.xlu0 %796
    %v799 = vmul.f32 %v792, %v797
    %801 = vrot.lane.b32.xlu0 %v799, 32
    %v802 = vpop.permute.xlu0 %801
    %v804 = vadd.f32 %v794, %v802
    %v805 = vtanh.pop %v804
    %807 = vrot.lane.b32.xlu0 %v805, 32
    %v808 = vpop.permute.xlu0 %807
    %v810 = vmul.f32 %v792, %v808
    %812 = vrot.lane.b32.xlu0 %v785, 64
    %v813 = vpop.permute.xlu0 %812
    %s815 = scalar_lea.vmem [#allocation4], 8
    %816 = vst.msk [vmem:[%s815] sm:$0xff] %vm671, %v813
    %818 = vrot.lane.b32.xlu0 %v810, 64
    %v819 = vpop.permute.xlu0 %818
    %s821 = scalar_lea.vmem [#allocation5], 48
    %822 = vst.msk [vmem:[%s821] sm:$0xff] %vm671, %v819
    %s823 = scalar_lea.vmem [#allocation2], 16
    %v824 = vld [vmem:[%s823] sm:$0xff]
    %s825 = scalar_lea.vmem [#allocation3], 40
    %v826 = vld [vmem:[%s825] sm:$0xff]
    %827 = vrot.lane.b32.xlu0 %v810, 96
    %v828 = vpop.permute.xlu0 %827
    %v830 = vsel %vm671, %v813, %v828
    %v832 = vsel %vm253, %v830, 0
    %834 = vmatprep.subr.mxu0 0.0
    %835 = vmatpush1.msra.mxu0 0.0
    %836 = vmatprep.subr.mxu0 0.0
    %837 = vmatpush1.msra.mxu0 0.0
    %838 = vmatprep.subr.mxu0 0.0
    %839 = vmatpush1.msra.mxu0 0.0
    %840 = vmatprep.subr.mxu0 0.0
    %841 = vmatpush1.msra.mxu0 0.0
    %842 = vmatprep.subr.mxu0 0.0
    %843 = vmatpush1.msra.mxu0 0.0
    %844 = vmatprep.subr.mxu0 0.0
    %845 = vmatpush1.msra.mxu0 0.0
    %846 = vmatprep.subr.mxu0 0.0
    %847 = vmatpush1.msra.mxu0 0.0
    %848 = vmatprep.subr.mxu0 0.0
    %849 = vmatpush1.msra.mxu0 0.0
    %850 = vmatprep.subr.mxu0 %v535
    %851 = vmatpush1.msra.mxu0 %v534
    %852 = vmatprep.subr.mxu0 %v533
    %853 = vmatpush1.msra.mxu0 %v532
    %854 = vmatprep.subr.mxu0 %v531
    %855 = vmatpush1.msra.mxu0 %v530
    %856 = vmatprep.subr.mxu0 %v529
    %857 = vmatpush1.msra.mxu0 %v528
    %858 = vmatprep.subr.mxu0 %v527
    %859 = vmatpush1.msra.mxu0 %v526
    %860 = vmatprep.subr.mxu0 %v525
    %861 = vmatpush1.msra.mxu0 %v524
    %862 = vmatprep.subr.mxu0 %v523
    %863 = vmatpush1.msra.mxu0 %v522
    %864 = vmatprep.subr.mxu0 %v521
    %865 = vmatpush1.msra.mxu0 %v520
    %866 = vmatprep.subr.mxu0 0.0
    %867 = vmatpush2.msra.mxu0 0.0
    %868 = vmatprep.subr.mxu0 0.0
    %869 = vmatpush2.msra.mxu0 0.0
    %870 = vmatprep.subr.mxu0 0.0
    %871 = vmatpush2.msra.mxu0 0.0
    %872 = vmatprep.subr.mxu0 0.0
    %873 = vmatpush2.msra.mxu0 0.0
    %874 = vmatprep.subr.mxu0 0.0
    %875 = vmatpush2.msra.mxu0 0.0
    %876 = vmatprep.subr.mxu0 0.0
    %877 = vmatpush2.msra.mxu0 0.0
    %878 = vmatprep.subr.mxu0 0.0
    %879 = vmatpush2.msra.mxu0 0.0
    %880 = vmatprep.subr.mxu0 0.0
    %881 = vmatpush2.msra.mxu0 0.0
    %882 = vmatprep.subr.mxu0 0.0
    %883 = vmatpush2.msra.mxu0 0.0
    %884 = vmatprep.subr.mxu0 0.0
    %885 = vmatpush2.msra.mxu0 0.0
    %886 = vmatprep.subr.mxu0 0.0
    %887 = vmatpush2.msra.mxu0 0.0
    %888 = vmatprep.subr.mxu0 0.0
    %889 = vmatpush2.msra.mxu0 0.0
    %890 = vmatprep.subr.mxu0 0.0
    %891 = vmatpush2.msra.mxu0 0.0
    %892 = vmatprep.subr.mxu0 0.0
    %893 = vmatpush2.msra.mxu0 0.0
    %894 = vmatprep.subr.mxu0 0.0
    %895 = vmatpush2.msra.mxu0 0.0
    %896 = vmatprep.subr.mxu0 0.0
    %897 = vmatpush2.msra.mxu0 0.0
    %898 = vmatprep.mubr.f32.mxu0 0.0
    %899 = vmatmul.mubr.f32.gmra.mxu0 %v832
    %v900 = vpop.f32.mrf.mxu0
    %v901 = vadd.f32 0.0, %v900
    %v902 = vpop.f32.mrf.mxu0
    %v903 = vadd.f32 0.0, %v902
    %904 = vdwg.mxu0
    %v905 = vadd.f32 %v901, %v824
    %v906 = vxor.u32 %v905, 2147483648
    %v907 = vmul.f32 %v906, 1.442695
    %v908 = vpow.pop %v907
    %v909 = vadd.f32 %v908, 1.0
    %v910 = vrcp.pop %v909
    %v911 = vmul.f32 1.0, %v910
    %v912 = vtanh.pop %v905
    %v913 = vmul.f32 %v911, %v779
    %915 = vrot.lane.b32.xlu0 %v912, 32
    %v916 = vpop.permute.xlu0 %915
    %v918 = vmul.f32 %v911, %v916
    %920 = vrot.lane.b32.xlu0 %v918, 32
    %v921 = vpop.permute.xlu0 %920
    %v923 = vadd.f32 %v913, %v921
    %v924 = vtanh.pop %v923
    %926 = vrot.lane.b32.xlu0 %v924, 32
    %v927 = vpop.permute.xlu0 %926
    %v929 = vmul.f32 %v911, %v927
    %v930 = vadd.f32 %v903, %v826
    %v931 = vxor.u32 %v930, 2147483648
    %v932 = vmul.f32 %v931, 1.442695
    %v933 = vpow.pop %v932
    %v934 = vadd.f32 %v933, 1.0
    %v935 = vrcp.pop %v934
    %v936 = vmul.f32 1.0, %v935
    %v937 = vtanh.pop %v930
    %v938 = vmul.f32 %v936, %v804
    %940 = vrot.lane.b32.xlu0 %v937, 32
    %v941 = vpop.permute.xlu0 %940
    %v943 = vmul.f32 %v936, %v941
    %945 = vrot.lane.b32.xlu0 %v943, 32
    %v946 = vpop.permute.xlu0 %945
    %v948 = vadd.f32 %v938, %v946
    %v949 = vtanh.pop %v948
    %951 = vrot.lane.b32.xlu0 %v949, 32
    %v952 = vpop.permute.xlu0 %951
    %v954 = vmul.f32 %v936, %v952
    %956 = vrot.lane.b32.xlu0 %v929, 64
    %v957 = vpop.permute.xlu0 %956
    %s959 = scalar_lea.vmem [#allocation4], 16
    %960 = vst.msk [vmem:[%s959] sm:$0xff] %vm671, %v957
    %962 = vrot.lane.b32.xlu0 %v954, 64
    %v963 = vpop.permute.xlu0 %962
    %s965 = scalar_lea.vmem [#allocation5], 40
    %966 = vst.msk [vmem:[%s965] sm:$0xff] %vm671, %v963
    %s967 = scalar_lea.vmem [#allocation2], 24
    %v968 = vld [vmem:[%s967] sm:$0xff]
    %s969 = scalar_lea.vmem [#allocation3], 32
    %v970 = vld [vmem:[%s969] sm:$0xff]
    %971 = vrot.lane.b32.xlu0 %v954, 96
    %v972 = vpop.permute.xlu0 %971
    %v974 = vsel %vm671, %v957, %v972
    %v976 = vsel %vm253, %v974, 0
    %978 = vmatprep.subr.mxu0 0.0
    %979 = vmatpush1.msra.mxu0 0.0
    %980 = vmatprep.subr.mxu0 0.0
    %981 = vmatpush1.msra.mxu0 0.0
    %982 = vmatprep.subr.mxu0 0.0
    %983 = vmatpush1.msra.mxu0 0.0
    %984 = vmatprep.subr.mxu0 0.0
    %985 = vmatpush1.msra.mxu0 0.0
    %986 = vmatprep.subr.mxu0 0.0
    %987 = vmatpush1.msra.mxu0 0.0
    %988 = vmatprep.subr.mxu0 0.0
    %989 = vmatpush1.msra.mxu0 0.0
    %990 = vmatprep.subr.mxu0 0.0
    %991 = vmatpush1.msra.mxu0 0.0
    %992 = vmatprep.subr.mxu0 0.0
    %993 = vmatpush1.msra.mxu0 0.0
    %994 = vmatprep.subr.mxu0 %v535
    %995 = vmatpush1.msra.mxu0 %v534
    %996 = vmatprep.subr.mxu0 %v533
    %997 = vmatpush1.msra.mxu0 %v532
    %998 = vmatprep.subr.mxu0 %v531
    %999 = vmatpush1.msra.mxu0 %v530
    %1000 = vmatprep.subr.mxu0 %v529
    %1001 = vmatpush1.msra.mxu0 %v528
    %1002 = vmatprep.subr.mxu0 %v527
    %1003 = vmatpush1.msra.mxu0 %v526
    %1004 = vmatprep.subr.mxu0 %v525
    %1005 = vmatpush1.msra.mxu0 %v524
    %1006 = vmatprep.subr.mxu0 %v523
    %1007 = vmatpush1.msra.mxu0 %v522
    %1008 = vmatprep.subr.mxu0 %v521
    %1009 = vmatpush1.msra.mxu0 %v520
    %1010 = vmatprep.subr.mxu0 0.0
    %1011 = vmatpush2.msra.mxu0 0.0
    %1012 = vmatprep.subr.mxu0 0.0
    %1013 = vmatpush2.msra.mxu0 0.0
    %1014 = vmatprep.subr.mxu0 0.0
    %1015 = vmatpush2.msra.mxu0 0.0
    %1016 = vmatprep.subr.mxu0 0.0
    %1017 = vmatpush2.msra.mxu0 0.0
    %1018 = vmatprep.subr.mxu0 0.0
    %1019 = vmatpush2.msra.mxu0 0.0
    %1020 = vmatprep.subr.mxu0 0.0
    %1021 = vmatpush2.msra.mxu0 0.0
    %1022 = vmatprep.subr.mxu0 0.0
    %1023 = vmatpush2.msra.mxu0 0.0
    %1024 = vmatprep.subr.mxu0 0.0
    %1025 = vmatpush2.msra.mxu0 0.0
    %1026 = vmatprep.subr.mxu0 0.0
    %1027 = vmatpush2.msra.mxu0 0.0
    %1028 = vmatprep.subr.mxu0 0.0
    %1029 = vmatpush2.msra.mxu0 0.0
    %1030 = vmatprep.subr.mxu0 0.0
    %1031 = vmatpush2.msra.mxu0 0.0
    %1032 = vmatprep.subr.mxu0 0.0
    %1033 = vmatpush2.msra.mxu0 0.0
    %1034 = vmatprep.subr.mxu0 0.0
    %1035 = vmatpush2.msra.mxu0 0.0
    %1036 = vmatprep.subr.mxu0 0.0
    %1037 = vmatpush2.msra.mxu0 0.0
    %1038 = vmatprep.subr.mxu0 0.0
    %1039 = vmatpush2.msra.mxu0 0.0
    %1040 = vmatprep.subr.mxu0 0.0
    %1041 = vmatpush2.msra.mxu0 0.0
    %1042 = vmatprep.mubr.f32.mxu0 0.0
    %1043 = vmatmul.mubr.f32.gmra.mxu0 %v976
    %v1044 = vpop.f32.mrf.mxu0
    %v1045 = vadd.f32 0.0, %v1044
    %v1046 = vpop.f32.mrf.mxu0
    %v1047 = vadd.f32 0.0, %v1046
    %1048 = vdwg.mxu0
    %v1049 = vadd.f32 %v1045, %v968
    %v1050 = vxor.u32 %v1049, 2147483648
    %v1051 = vmul.f32 %v1050, 1.442695
    %v1052 = vpow.pop %v1051
    %v1053 = vadd.f32 %v1052, 1.0
    %v1054 = vrcp.pop %v1053
    %v1055 = vmul.f32 1.0, %v1054
    %v1056 = vtanh.pop %v1049
    %v1057 = vmul.f32 %v1055, %v923
    %1059 = vrot.lane.b32.xlu0 %v1056, 32
    %v1060 = vpop.permute.xlu0 %1059
    %v1062 = vmul.f32 %v1055, %v1060
    %1064 = vrot.lane.b32.xlu0 %v1062, 32
    %v1065 = vpop.permute.xlu0 %1064
    %v1067 = vadd.f32 %v1057, %v1065
    %v1068 = vtanh.pop %v1067
    %1070 = vrot.lane.b32.xlu0 %v1068, 32
    %v1071 = vpop.permute.xlu0 %1070
    %v1073 = vmul.f32 %v1055, %v1071
    %v1074 = vadd.f32 %v1047, %v970
    %v1075 = vxor.u32 %v1074, 2147483648
    %v1076 = vmul.f32 %v1075, 1.442695
    %v1077 = vpow.pop %v1076
    %v1078 = vadd.f32 %v1077, 1.0
    %v1079 = vrcp.pop %v1078
    %v1080 = vmul.f32 1.0, %v1079
    %v1081 = vtanh.pop %v1074
    %v1082 = vmul.f32 %v1080, %v948
    %1084 = vrot.lane.b32.xlu0 %v1081, 32
    %v1085 = vpop.permute.xlu0 %1084
    %v1087 = vmul.f32 %v1080, %v1085
    %1089 = vrot.lane.b32.xlu0 %v1087, 32
    %v1090 = vpop.permute.xlu0 %1089
    %v1092 = vadd.f32 %v1082, %v1090
    %v1093 = vtanh.pop %v1092
    %1095 = vrot.lane.b32.xlu0 %v1093, 32
    %v1096 = vpop.permute.xlu0 %1095
    %v1098 = vmul.f32 %v1080, %v1096
    %1100 = vrot.lane.b32.xlu0 %v1073, 64
    %v1101 = vpop.permute.xlu0 %1100
    %s1103 = scalar_lea.vmem [#allocation4], 24
    %1104 = vst.msk [vmem:[%s1103] sm:$0xff] %vm671, %v1101
    %1106 = vrot.lane.b32.xlu0 %v1098, 64
    %v1107 = vpop.permute.xlu0 %1106
    %s1109 = scalar_lea.vmem [#allocation5], 32
    %1110 = vst.msk [vmem:[%s1109] sm:$0xff] %vm671, %v1107
    %s1111 = scalar_lea.vmem [#allocation2], 32
    %v1112 = vld [vmem:[%s1111] sm:$0xff]
    %s1113 = scalar_lea.vmem [#allocation3], 24
    %v1114 = vld [vmem:[%s1113] sm:$0xff]
    %1115 = vrot.lane.b32.xlu0 %v1098, 96
    %v1116 = vpop.permute.xlu0 %1115
    %v1118 = vsel %vm671, %v1101, %v1116
    %v1120 = vsel %vm253, %v1118, 0
    %1122 = vmatprep.subr.mxu0 0.0
    %1123 = vmatpush1.msra.mxu0 0.0
    %1124 = vmatprep.subr.mxu0 0.0
    %1125 = vmatpush1.msra.mxu0 0.0
    %1126 = vmatprep.subr.mxu0 0.0
    %1127 = vmatpush1.msra.mxu0 0.0
    %1128 = vmatprep.subr.mxu0 0.0
    %1129 = vmatpush1.msra.mxu0 0.0
    %1130 = vmatprep.subr.mxu0 0.0
    %1131 = vmatpush1.msra.mxu0 0.0
    %1132 = vmatprep.subr.mxu0 0.0
    %1133 = vmatpush1.msra.mxu0 0.0
    %1134 = vmatprep.subr.mxu0 0.0
    %1135 = vmatpush1.msra.mxu0 0.0
    %1136 = vmatprep.subr.mxu0 0.0
    %1137 = vmatpush1.msra.mxu0 0.0
    %1138 = vmatprep.subr.mxu0 %v535
    %1139 = vmatpush1.msra.mxu0 %v534
    %1140 = vmatprep.subr.mxu0 %v533
    %1141 = vmatpush1.msra.mxu0 %v532
    %1142 = vmatprep.subr.mxu0 %v531
    %1143 = vmatpush1.msra.mxu0 %v530
    %1144 = vmatprep.subr.mxu0 %v529
    %1145 = vmatpush1.msra.mxu0 %v528
    %1146 = vmatprep.subr.mxu0 %v527
    %1147 = vmatpush1.msra.mxu0 %v526
    %1148 = vmatprep.subr.mxu0 %v525
    %1149 = vmatpush1.msra.mxu0 %v524
    %1150 = vmatprep.subr.mxu0 %v523
    %1151 = vmatpush1.msra.mxu0 %v522
    %1152 = vmatprep.subr.mxu0 %v521
    %1153 = vmatpush1.msra.mxu0 %v520
    %1154 = vmatprep.subr.mxu0 0.0
    %1155 = vmatpush2.msra.mxu0 0.0
    %1156 = vmatprep.subr.mxu0 0.0
    %1157 = vmatpush2.msra.mxu0 0.0
    %1158 = vmatprep.subr.mxu0 0.0
    %1159 = vmatpush2.msra.mxu0 0.0
    %1160 = vmatprep.subr.mxu0 0.0
    %1161 = vmatpush2.msra.mxu0 0.0
    %1162 = vmatprep.subr.mxu0 0.0
    %1163 = vmatpush2.msra.mxu0 0.0
    %1164 = vmatprep.subr.mxu0 0.0
    %1165 = vmatpush2.msra.mxu0 0.0
    %1166 = vmatprep.subr.mxu0 0.0
    %1167 = vmatpush2.msra.mxu0 0.0
    %1168 = vmatprep.subr.mxu0 0.0
    %1169 = vmatpush2.msra.mxu0 0.0
    %1170 = vmatprep.subr.mxu0 0.0
    %1171 = vmatpush2.msra.mxu0 0.0
    %1172 = vmatprep.subr.mxu0 0.0
    %1173 = vmatpush2.msra.mxu0 0.0
    %1174 = vmatprep.subr.mxu0 0.0
    %1175 = vmatpush2.msra.mxu0 0.0
    %1176 = vmatprep.subr.mxu0 0.0
    %1177 = vmatpush2.msra.mxu0 0.0
    %1178 = vmatprep.subr.mxu0 0.0
    %1179 = vmatpush2.msra.mxu0 0.0
    %1180 = vmatprep.subr.mxu0 0.0
    %1181 = vmatpush2.msra.mxu0 0.0
    %1182 = vmatprep.subr.mxu0 0.0
    %1183 = vmatpush2.msra.mxu0 0.0
    %1184 = vmatprep.subr.mxu0 0.0
    %1185 = vmatpush2.msra.mxu0 0.0
    %1186 = vmatprep.mubr.f32.mxu0 0.0
    %1187 = vmatmul.mubr.f32.gmra.mxu0 %v1120
    %v1188 = vpop.f32.mrf.mxu0
    %v1189 = vadd.f32 0.0, %v1188
    %v1190 = vpop.f32.mrf.mxu0
    %v1191 = vadd.f32 0.0, %v1190
    %1192 = vdwg.mxu0
    %v1193 = vadd.f32 %v1189, %v1112
    %v1194 = vxor.u32 %v1193, 2147483648
    %v1195 = vmul.f32 %v1194, 1.442695
    %v1196 = vpow.pop %v1195
    %v1197 = vadd.f32 %v1196, 1.0
    %v1198 = vrcp.pop %v1197
    %v1199 = vmul.f32 1.0, %v1198
    %v1200 = vtanh.pop %v1193
    %v1201 = vmul.f32 %v1199, %v1067
    %1203 = vrot.lane.b32.xlu0 %v1200, 32
    %v1204 = vpop.permute.xlu0 %1203
    %v1206 = vmul.f32 %v1199, %v1204
    %1208 = vrot.lane.b32.xlu0 %v1206, 32
    %v1209 = vpop.permute.xlu0 %1208
    %v1211 = vadd.f32 %v1201, %v1209
    %v1212 = vtanh.pop %v1211
    %1214 = vrot.lane.b32.xlu0 %v1212, 32
    %v1215 = vpop.permute.xlu0 %1214
    %v1217 = vmul.f32 %v1199, %v1215
    %v1218 = vadd.f32 %v1191, %v1114
    %v1219 = vxor.u32 %v1218, 2147483648
    %v1220 = vmul.f32 %v1219, 1.442695
    %v1221 = vpow.pop %v1220
    %v1222 = vadd.f32 %v1221, 1.0
    %v1223 = vrcp.pop %v1222
    %v1224 = vmul.f32 1.0, %v1223
    %v1225 = vtanh.pop %v1218
    %v1226 = vmul.f32 %v1224, %v1092
    %1228 = vrot.lane.b32.xlu0 %v1225, 32
    %v1229 = vpop.permute.xlu0 %1228
    %v1231 = vmul.f32 %v1224, %v1229
    %1233 = vrot.lane.b32.xlu0 %v1231, 32
    %v1234 = vpop.permute.xlu0 %1233
    %v1236 = vadd.f32 %v1226, %v1234
    %v1237 = vtanh.pop %v1236
    %1239 = vrot.lane.b32.xlu0 %v1237, 32
    %v1240 = vpop.permute.xlu0 %1239
    %v1242 = vmul.f32 %v1224, %v1240
    %1244 = vrot.lane.b32.xlu0 %v1217, 64
    %v1245 = vpop.permute.xlu0 %1244
    %s1247 = scalar_lea.vmem [#allocation4], 32
    %1248 = vst.msk [vmem:[%s1247] sm:$0xff] %vm671, %v1245
    %1250 = vrot.lane.b32.xlu0 %v1242, 64
    %v1251 = vpop.permute.xlu0 %1250
    %s1253 = scalar_lea.vmem [#allocation5], 24
    %1254 = vst.msk [vmem:[%s1253] sm:$0xff] %vm671, %v1251
    %s1255 = scalar_lea.vmem [#allocation2], 40
    %v1256 = vld [vmem:[%s1255] sm:$0xff]
    %s1257 = scalar_lea.vmem [#allocation3], 16
    %v1258 = vld [vmem:[%s1257] sm:$0xff]
    %1259 = vrot.lane.b32.xlu0 %v1242, 96
    %v1260 = vpop.permute.xlu0 %1259
    %v1262 = vsel %vm671, %v1245, %v1260
    %v1264 = vsel %vm253, %v1262, 0
    %1266 = vmatprep.subr.mxu0 0.0
    %1267 = vmatpush1.msra.mxu0 0.0
    %1268 = vmatprep.subr.mxu0 0.0
    %1269 = vmatpush1.msra.mxu0 0.0
    %1270 = vmatprep.subr.mxu0 0.0
    %1271 = vmatpush1.msra.mxu0 0.0
    %1272 = vmatprep.subr.mxu0 0.0
    %1273 = vmatpush1.msra.mxu0 0.0
    %1274 = vmatprep.subr.mxu0 0.0
    %1275 = vmatpush1.msra.mxu0 0.0
    %1276 = vmatprep.subr.mxu0 0.0
    %1277 = vmatpush1.msra.mxu0 0.0
    %1278 = vmatprep.subr.mxu0 0.0
    %1279 = vmatpush1.msra.mxu0 0.0
    %1280 = vmatprep.subr.mxu0 0.0
    %1281 = vmatpush1.msra.mxu0 0.0
    %1282 = vmatprep.subr.mxu0 %v535
    %1283 = vmatpush1.msra.mxu0 %v534
    %1284 = vmatprep.subr.mxu0 %v533
    %1285 = vmatpush1.msra.mxu0 %v532
    %1286 = vmatprep.subr.mxu0 %v531
    %1287 = vmatpush1.msra.mxu0 %v530
    %1288 = vmatprep.subr.mxu0 %v529
    %1289 = vmatpush1.msra.mxu0 %v528
    %1290 = vmatprep.subr.mxu0 %v527
    %1291 = vmatpush1.msra.mxu0 %v526
    %1292 = vmatprep.subr.mxu0 %v525
    %1293 = vmatpush1.msra.mxu0 %v524
    %1294 = vmatprep.subr.mxu0 %v523
    %1295 = vmatpush1.msra.mxu0 %v522
    %1296 = vmatprep.subr.mxu0 %v521
    %1297 = vmatpush1.msra.mxu0 %v520
    %1298 = vmatprep.subr.mxu0 0.0
    %1299 = vmatpush2.msra.mxu0 0.0
    %1300 = vmatprep.subr.mxu0 0.0
    %1301 = vmatpush2.msra.mxu0 0.0
    %1302 = vmatprep.subr.mxu0 0.0
    %1303 = vmatpush2.msra.mxu0 0.0
    %1304 = vmatprep.subr.mxu0 0.0
    %1305 = vmatpush2.msra.mxu0 0.0
    %1306 = vmatprep.subr.mxu0 0.0
    %1307 = vmatpush2.msra.mxu0 0.0
    %1308 = vmatprep.subr.mxu0 0.0
    %1309 = vmatpush2.msra.mxu0 0.0
    %1310 = vmatprep.subr.mxu0 0.0
    %1311 = vmatpush2.msra.mxu0 0.0
    %1312 = vmatprep.subr.mxu0 0.0
    %1313 = vmatpush2.msra.mxu0 0.0
    %1314 = vmatprep.subr.mxu0 0.0
    %1315 = vmatpush2.msra.mxu0 0.0
    %1316 = vmatprep.subr.mxu0 0.0
    %1317 = vmatpush2.msra.mxu0 0.0
    %1318 = vmatprep.subr.mxu0 0.0
    %1319 = vmatpush2.msra.mxu0 0.0
    %1320 = vmatprep.subr.mxu0 0.0
    %1321 = vmatpush2.msra.mxu0 0.0
    %1322 = vmatprep.subr.mxu0 0.0
    %1323 = vmatpush2.msra.mxu0 0.0
    %1324 = vmatprep.subr.mxu0 0.0
    %1325 = vmatpush2.msra.mxu0 0.0
    %1326 = vmatprep.subr.mxu0 0.0
    %1327 = vmatpush2.msra.mxu0 0.0
    %1328 = vmatprep.subr.mxu0 0.0
    %1329 = vmatpush2.msra.mxu0 0.0
    %1330 = vmatprep.mubr.f32.mxu0 0.0
    %1331 = vmatmul.mubr.f32.gmra.mxu0 %v1264
    %v1332 = vpop.f32.mrf.mxu0
    %v1333 = vadd.f32 0.0, %v1332
    %v1334 = vpop.f32.mrf.mxu0
    %v1335 = vadd.f32 0.0, %v1334
    %1336 = vdwg.mxu0
    %v1337 = vadd.f32 %v1333, %v1256
    %v1338 = vxor.u32 %v1337, 2147483648
    %v1339 = vmul.f32 %v1338, 1.442695
    %v1340 = vpow.pop %v1339
    %v1341 = vadd.f32 %v1340, 1.0
    %v1342 = vrcp.pop %v1341
    %v1343 = vmul.f32 1.0, %v1342
    %v1344 = vtanh.pop %v1337
    %v1345 = vmul.f32 %v1343, %v1211
    %1347 = vrot.lane.b32.xlu0 %v1344, 32
    %v1348 = vpop.permute.xlu0 %1347
    %v1350 = vmul.f32 %v1343, %v1348
    %1352 = vrot.lane.b32.xlu0 %v1350, 32
    %v1353 = vpop.permute.xlu0 %1352
    %v1355 = vadd.f32 %v1345, %v1353
    %v1356 = vtanh.pop %v1355
    %1358 = vrot.lane.b32.xlu0 %v1356, 32
    %v1359 = vpop.permute.xlu0 %1358
    %v1361 = vmul.f32 %v1343, %v1359
    %v1362 = vadd.f32 %v1335, %v1258
    %v1363 = vxor.u32 %v1362, 2147483648
    %v1364 = vmul.f32 %v1363, 1.442695
    %v1365 = vpow.pop %v1364
    %v1366 = vadd.f32 %v1365, 1.0
    %v1367 = vrcp.pop %v1366
    %v1368 = vmul.f32 1.0, %v1367
    %v1369 = vtanh.pop %v1362
    %v1370 = vmul.f32 %v1368, %v1236
    %1372 = vrot.lane.b32.xlu0 %v1369, 32
    %v1373 = vpop.permute.xlu0 %1372
    %v1375 = vmul.f32 %v1368, %v1373
    %1377 = vrot.lane.b32.xlu0 %v1375, 32
    %v1378 = vpop.permute.xlu0 %1377
    %v1380 = vadd.f32 %v1370, %v1378
    %v1381 = vtanh.pop %v1380
    %1383 = vrot.lane.b32.xlu0 %v1381, 32
    %v1384 = vpop.permute.xlu0 %1383
    %v1386 = vmul.f32 %v1368, %v1384
    %1388 = vrot.lane.b32.xlu0 %v1361, 64
    %v1389 = vpop.permute.xlu0 %1388
    %s1391 = scalar_lea.vmem [#allocation4], 40
    %1392 = vst.msk [vmem:[%s1391] sm:$0xff] %vm671, %v1389
    %1394 = vrot.lane.b32.xlu0 %v1386, 64
    %v1395 = vpop.permute.xlu0 %1394
    %s1397 = scalar_lea.vmem [#allocation5], 16
    %1398 = vst.msk [vmem:[%s1397] sm:$0xff] %vm671, %v1395
    %s1399 = scalar_lea.vmem [#allocation2], 48
    %v1400 = vld [vmem:[%s1399] sm:$0xff]
    %s1401 = scalar_lea.vmem [#allocation3], 8
    %v1402 = vld [vmem:[%s1401] sm:$0xff]
    %1403 = vrot.lane.b32.xlu0 %v1386, 96
    %v1404 = vpop.permute.xlu0 %1403
    %v1406 = vsel %vm671, %v1389, %v1404
    %v1408 = vsel %vm253, %v1406, 0
    %1410 = vmatprep.subr.mxu0 0.0
    %1411 = vmatpush1.msra.mxu0 0.0
    %1412 = vmatprep.subr.mxu0 0.0
    %1413 = vmatpush1.msra.mxu0 0.0
    %1414 = vmatprep.subr.mxu0 0.0
    %1415 = vmatpush1.msra.mxu0 0.0
    %1416 = vmatprep.subr.mxu0 0.0
    %1417 = vmatpush1.msra.mxu0 0.0
    %1418 = vmatprep.subr.mxu0 0.0
    %1419 = vmatpush1.msra.mxu0 0.0
    %1420 = vmatprep.subr.mxu0 0.0
    %1421 = vmatpush1.msra.mxu0 0.0
    %1422 = vmatprep.subr.mxu0 0.0
    %1423 = vmatpush1.msra.mxu0 0.0
    %1424 = vmatprep.subr.mxu0 0.0
    %1425 = vmatpush1.msra.mxu0 0.0
    %1426 = vmatprep.subr.mxu0 %v535
    %1427 = vmatpush1.msra.mxu0 %v534
    %1428 = vmatprep.subr.mxu0 %v533
    %1429 = vmatpush1.msra.mxu0 %v532
    %1430 = vmatprep.subr.mxu0 %v531
    %1431 = vmatpush1.msra.mxu0 %v530
    %1432 = vmatprep.subr.mxu0 %v529
    %1433 = vmatpush1.msra.mxu0 %v528
    %1434 = vmatprep.subr.mxu0 %v527
    %1435 = vmatpush1.msra.mxu0 %v526
    %1436 = vmatprep.subr.mxu0 %v525
    %1437 = vmatpush1.msra.mxu0 %v524
    %1438 = vmatprep.subr.mxu0 %v523
    %1439 = vmatpush1.msra.mxu0 %v522
    %1440 = vmatprep.subr.mxu0 %v521
    %1441 = vmatpush1.msra.mxu0 %v520
    %1442 = vmatprep.subr.mxu0 0.0
    %1443 = vmatpush2.msra.mxu0 0.0
    %1444 = vmatprep.subr.mxu0 0.0
    %1445 = vmatpush2.msra.mxu0 0.0
    %1446 = vmatprep.subr.mxu0 0.0
    %1447 = vmatpush2.msra.mxu0 0.0
    %1448 = vmatprep.subr.mxu0 0.0
    %1449 = vmatpush2.msra.mxu0 0.0
    %1450 = vmatprep.subr.mxu0 0.0
    %1451 = vmatpush2.msra.mxu0 0.0
    %1452 = vmatprep.subr.mxu0 0.0
    %1453 = vmatpush2.msra.mxu0 0.0
    %1454 = vmatprep.subr.mxu0 0.0
    %1455 = vmatpush2.msra.mxu0 0.0
    %1456 = vmatprep.subr.mxu0 0.0
    %1457 = vmatpush2.msra.mxu0 0.0
    %1458 = vmatprep.subr.mxu0 0.0
    %1459 = vmatpush2.msra.mxu0 0.0
    %1460 = vmatprep.subr.mxu0 0.0
    %1461 = vmatpush2.msra.mxu0 0.0
    %1462 = vmatprep.subr.mxu0 0.0
    %1463 = vmatpush2.msra.mxu0 0.0
    %1464 = vmatprep.subr.mxu0 0.0
    %1465 = vmatpush2.msra.mxu0 0.0
    %1466 = vmatprep.subr.mxu0 0.0
    %1467 = vmatpush2.msra.mxu0 0.0
    %1468 = vmatprep.subr.mxu0 0.0
    %1469 = vmatpush2.msra.mxu0 0.0
    %1470 = vmatprep.subr.mxu0 0.0
    %1471 = vmatpush2.msra.mxu0 0.0
    %1472 = vmatprep.subr.mxu0 0.0
    %1473 = vmatpush2.msra.mxu0 0.0
    %1474 = vmatprep.mubr.f32.mxu0 0.0
    %1475 = vmatmul.mubr.f32.gmra.mxu0 %v1408
    %v1476 = vpop.f32.mrf.mxu0
    %v1477 = vadd.f32 0.0, %v1476
    %v1478 = vpop.f32.mrf.mxu0
    %v1479 = vadd.f32 0.0, %v1478
    %1480 = vdwg.mxu0
    %v1481 = vadd.f32 %v1477, %v1400
    %v1482 = vxor.u32 %v1481, 2147483648
    %v1483 = vmul.f32 %v1482, 1.442695
    %v1484 = vpow.pop %v1483
    %v1485 = vadd.f32 %v1484, 1.0
    %v1486 = vrcp.pop %v1485
    %v1487 = vmul.f32 1.0, %v1486
    %v1488 = vtanh.pop %v1481
    %v1489 = vmul.f32 %v1487, %v1355
    %1491 = vrot.lane.b32.xlu0 %v1488, 32
    %v1492 = vpop.permute.xlu0 %1491
    %v1494 = vmul.f32 %v1487, %v1492
    %1496 = vrot.lane.b32.xlu0 %v1494, 32
    %v1497 = vpop.permute.xlu0 %1496
    %v1499 = vadd.f32 %v1489, %v1497
    %v1500 = vtanh.pop %v1499
    %1502 = vrot.lane.b32.xlu0 %v1500, 32
    %v1503 = vpop.permute.xlu0 %1502
    %v1505 = vmul.f32 %v1487, %v1503
    %v1506 = vadd.f32 %v1479, %v1402
    %v1507 = vxor.u32 %v1506, 2147483648
    %v1508 = vmul.f32 %v1507, 1.442695
    %v1509 = vpow.pop %v1508
    %v1510 = vadd.f32 %v1509, 1.0
    %v1511 = vrcp.pop %v1510
    %v1512 = vmul.f32 1.0, %v1511
    %v1513 = vtanh.pop %v1506
    %v1514 = vmul.f32 %v1512, %v1380
    %1516 = vrot.lane.b32.xlu0 %v1513, 32
    %v1517 = vpop.permute.xlu0 %1516
    %v1519 = vmul.f32 %v1512, %v1517
    %1521 = vrot.lane.b32.xlu0 %v1519, 32
    %v1522 = vpop.permute.xlu0 %1521
    %v1524 = vadd.f32 %v1514, %v1522
    %v1525 = vtanh.pop %v1524
    %1527 = vrot.lane.b32.xlu0 %v1525, 32
    %v1528 = vpop.permute.xlu0 %1527
    %v1530 = vmul.f32 %v1512, %v1528
    %1532 = vrot.lane.b32.xlu0 %v1505, 64
    %v1533 = vpop.permute.xlu0 %1532
    %s1535 = scalar_lea.vmem [#allocation4], 48
    %1536 = vst.msk [vmem:[%s1535] sm:$0xff] %vm671, %v1533
    %1538 = vrot.lane.b32.xlu0 %v1530, 64
    %v1539 = vpop.permute.xlu0 %1538
    %s1541 = scalar_lea.vmem [#allocation5], 8
    %1542 = vst.msk [vmem:[%s1541] sm:$0xff] %vm671, %v1539
    %s1543 = scalar_lea.vmem [#allocation2], 56
    %v1544 = vld [vmem:[%s1543] sm:$0xff]
    %v1545 = vld [vmem:[#allocation3] sm:$0xff]
    %1546 = vrot.lane.b32.xlu0 %v1530, 96
    %v1547 = vpop.permute.xlu0 %1546
    %v1549 = vsel %vm671, %v1533, %v1547
    %v1551 = vsel %vm253, %v1549, 0
    %1553 = vmatprep.subr.mxu0 0.0
    %1554 = vmatpush1.msra.mxu0 0.0
    %1555 = vmatprep.subr.mxu0 0.0
    %1556 = vmatpush1.msra.mxu0 0.0
    %1557 = vmatprep.subr.mxu0 0.0
    %1558 = vmatpush1.msra.mxu0 0.0
    %1559 = vmatprep.subr.mxu0 0.0
    %1560 = vmatpush1.msra.mxu0 0.0
    %1561 = vmatprep.subr.mxu0 0.0
    %1562 = vmatpush1.msra.mxu0 0.0
    %1563 = vmatprep.subr.mxu0 0.0
    %1564 = vmatpush1.msra.mxu0 0.0
    %1565 = vmatprep.subr.mxu0 0.0
    %1566 = vmatpush1.msra.mxu0 0.0
    %1567 = vmatprep.subr.mxu0 0.0
    %1568 = vmatpush1.msra.mxu0 0.0
    %1569 = vmatprep.subr.mxu0 %v535
    %1570 = vmatpush1.msra.mxu0 %v534
    %1571 = vmatprep.subr.mxu0 %v533
    %1572 = vmatpush1.msra.mxu0 %v532
    %1573 = vmatprep.subr.mxu0 %v531
    %1574 = vmatpush1.msra.mxu0 %v530
    %1575 = vmatprep.subr.mxu0 %v529
    %1576 = vmatpush1.msra.mxu0 %v528
    %1577 = vmatprep.subr.mxu0 %v527
    %1578 = vmatpush1.msra.mxu0 %v526
    %1579 = vmatprep.subr.mxu0 %v525
    %1580 = vmatpush1.msra.mxu0 %v524
    %1581 = vmatprep.subr.mxu0 %v523
    %1582 = vmatpush1.msra.mxu0 %v522
    %1583 = vmatprep.subr.mxu0 %v521
    %1584 = vmatpush1.msra.mxu0 %v520
    %1585 = vmatprep.subr.mxu0 0.0
    %1586 = vmatpush2.msra.mxu0 0.0
    %1587 = vmatprep.subr.mxu0 0.0
    %1588 = vmatpush2.msra.mxu0 0.0
    %1589 = vmatprep.subr.mxu0 0.0
    %1590 = vmatpush2.msra.mxu0 0.0
    %1591 = vmatprep.subr.mxu0 0.0
    %1592 = vmatpush2.msra.mxu0 0.0
    %1593 = vmatprep.subr.mxu0 0.0
    %1594 = vmatpush2.msra.mxu0 0.0
    %1595 = vmatprep.subr.mxu0 0.0
    %1596 = vmatpush2.msra.mxu0 0.0
    %1597 = vmatprep.subr.mxu0 0.0
    %1598 = vmatpush2.msra.mxu0 0.0
    %1599 = vmatprep.subr.mxu0 0.0
    %1600 = vmatpush2.msra.mxu0 0.0
    %1601 = vmatprep.subr.mxu0 0.0
    %1602 = vmatpush2.msra.mxu0 0.0
    %1603 = vmatprep.subr.mxu0 0.0
    %1604 = vmatpush2.msra.mxu0 0.0
    %1605 = vmatprep.subr.mxu0 0.0
    %1606 = vmatpush2.msra.mxu0 0.0
    %1607 = vmatprep.subr.mxu0 0.0
    %1608 = vmatpush2.msra.mxu0 0.0
    %1609 = vmatprep.subr.mxu0 0.0
    %1610 = vmatpush2.msra.mxu0 0.0
    %1611 = vmatprep.subr.mxu0 0.0
    %1612 = vmatpush2.msra.mxu0 0.0
    %1613 = vmatprep.subr.mxu0 0.0
    %1614 = vmatpush2.msra.mxu0 0.0
    %1615 = vmatprep.subr.mxu0 0.0
    %1616 = vmatpush2.msra.mxu0 0.0
    %1617 = vmatprep.mubr.f32.mxu0 0.0
    %1618 = vmatmul.mubr.f32.gmra.mxu0 %v1551
    %v1619 = vpop.f32.mrf.mxu0
    %v1620 = vadd.f32 0.0, %v1619
    %v1621 = vpop.f32.mrf.mxu0
    %v1622 = vadd.f32 0.0, %v1621
    %1623 = vdwg.mxu0
    %v1624 = vadd.f32 %v1620, %v1544
    %v1625 = vxor.u32 %v1624, 2147483648
    %v1626 = vmul.f32 %v1625, 1.442695
    %v1627 = vpow.pop %v1626
    %v1628 = vadd.f32 %v1627, 1.0
    %v1629 = vrcp.pop %v1628
    %v1630 = vmul.f32 1.0, %v1629
    %v1631 = vtanh.pop %v1624
    %v1632 = vmul.f32 %v1630, %v1499
    %1634 = vrot.lane.b32.xlu0 %v1631, 32
    %v1635 = vpop.permute.xlu0 %1634
    %v1637 = vmul.f32 %v1630, %v1635
    %1639 = vrot.lane.b32.xlu0 %v1637, 32
    %v1640 = vpop.permute.xlu0 %1639
    %v1642 = vadd.f32 %v1632, %v1640
    %v1643 = vtanh.pop %v1642
    %1645 = vrot.lane.b32.xlu0 %v1643, 32
    %v1646 = vpop.permute.xlu0 %1645
    %v1648 = vmul.f32 %v1630, %v1646
    %v1649 = vadd.f32 %v1622, %v1545
    %v1650 = vxor.u32 %v1649, 2147483648
    %v1651 = vmul.f32 %v1650, 1.442695
    %v1652 = vpow.pop %v1651
    %v1653 = vadd.f32 %v1652, 1.0
    %v1654 = vrcp.pop %v1653
    %v1655 = vmul.f32 1.0, %v1654
    %v1656 = vtanh.pop %v1649
    %v1657 = vmul.f32 %v1655, %v1524
    %1659 = vrot.lane.b32.xlu0 %v1656, 32
    %v1660 = vpop.permute.xlu0 %1659
    %v1662 = vmul.f32 %v1655, %v1660
    %1664 = vrot.lane.b32.xlu0 %v1662, 32
    %v1665 = vpop.permute.xlu0 %1664
    %v1667 = vadd.f32 %v1657, %v1665
    %v1668 = vtanh.pop %v1667
    %1670 = vrot.lane.b32.xlu0 %v1668, 32
    %v1671 = vpop.permute.xlu0 %1670
    %v1673 = vmul.f32 %v1655, %v1671
    %1675 = vrot.lane.b32.xlu0 %v1648, 64
    %v1676 = vpop.permute.xlu0 %1675
    %s1678 = scalar_lea.vmem [#allocation4], 56
    %1679 = vst.msk [vmem:[%s1678] sm:$0xff] %vm671, %v1676
    %1681 = vrot.lane.b32.xlu0 %v1673, 64
    %v1682 = vpop.permute.xlu0 %1681
    %1684 = vst.msk [vmem:[#allocation5] sm:$0xff] %vm671, %v1682
    %v1685 = vld [vmem:[#allocation4] sm:$0xff]
    %v1686 = vld [vmem:[#allocation4 + $0x8] sm:$0xff]
    %v1687 = vld [vmem:[#allocation4 + $0x10] sm:$0xff]
    %v1688 = vld [vmem:[#allocation4 + $0x18] sm:$0xff]
    %v1689 = vld [vmem:[#allocation4 + $0x20] sm:$0xff]
    %v1690 = vld [vmem:[#allocation4 + $0x28] sm:$0xff]
    %v1691 = vld [vmem:[#allocation4 + $0x30] sm:$0xff]
    %v1692 = vld [vmem:[#allocation4 + $0x38] sm:$0xff]
    %v1693 = vld [vmem:[#allocation5] sm:$0xff]
    %v1694 = vld [vmem:[#allocation5 + $0x8] sm:$0xff]
    %v1695 = vld [vmem:[#allocation5 + $0x10] sm:$0xff]
    %v1696 = vld [vmem:[#allocation5 + $0x18] sm:$0xff]
    %v1697 = vld [vmem:[#allocation5 + $0x20] sm:$0xff]
    %v1698 = vld [vmem:[#allocation5 + $0x28] sm:$0xff]
    %v1699 = vld [vmem:[#allocation5 + $0x30] sm:$0xff]
    %v1700 = vld [vmem:[#allocation5 + $0x38] sm:$0xff]
    %v1701 = vld [vmem:[%s7] sm:$0xff]
    %v1702 = vld [vmem:[%s7 + $0x8] sm:$0xff]
    %v1703 = vld [vmem:[%s7 + $0x10] sm:$0xff]
    %v1704 = vld [vmem:[%s7 + $0x18] sm:$0xff]
    %v1705 = vld [vmem:[#allocation18] sm:$0xff]
    %v1706 = vld [vmem:[#allocation18 + $0x8] sm:$0xff]
    %v1707 = vld [vmem:[#allocation18 + $0x10] sm:$0xff]
    %v1708 = vld [vmem:[#allocation18 + $0x18] sm:$0xff]
    %v1710 = vsel %vm671, %v1693, 0
    %v1713 = vsel %vm671, %v1694, 0
    %v1716 = vsel %vm671, %v1695, 0
    %v1719 = vsel %vm671, %v1696, 0
    %v1722 = vsel %vm671, %v1697, 0
    %v1725 = vsel %vm671, %v1698, 0
    %v1728 = vsel %vm671, %v1699, 0
    %v1731 = vsel %vm671, %v1700, 0
    %1733 = vmatprep.subr.mxu0 0.0
    %1734 = vmatpush1.msra.mxu0 0.0
    %1735 = vmatprep.subr.mxu0 0.0
    %1736 = vmatpush1.msra.mxu0 0.0
    %1737 = vmatprep.subr.mxu0 0.0
    %1738 = vmatpush1.msra.mxu0 0.0
    %1739 = vmatprep.subr.mxu0 0.0
    %1740 = vmatpush1.msra.mxu0 0.0
    %1741 = vmatprep.subr.mxu0 0.0
    %1742 = vmatpush1.msra.mxu0 0.0
    %1743 = vmatprep.subr.mxu0 0.0
    %1744 = vmatpush1.msra.mxu0 0.0
    %1745 = vmatprep.subr.mxu0 0.0
    %1746 = vmatpush1.msra.mxu0 0.0
    %1747 = vmatprep.subr.mxu0 0.0
    %1748 = vmatpush1.msra.mxu0 0.0
    %1749 = vmatprep.subr.mxu0 0.0
    %1750 = vmatpush1.msra.mxu0 0.0
    %1751 = vmatprep.subr.mxu0 0.0
    %1752 = vmatpush1.msra.mxu0 0.0
    %1753 = vmatprep.subr.mxu0 0.0
    %1754 = vmatpush1.msra.mxu0 0.0
    %1755 = vmatprep.subr.mxu0 0.0
    %1756 = vmatpush1.msra.mxu0 0.0
    %1757 = vmatprep.subr.mxu0 0.0
    %1758 = vmatpush1.msra.mxu0 %v1708
    %1759 = vmatprep.subr.mxu0 0.0
    %1760 = vmatpush1.msra.mxu0 %v1707
    %1761 = vmatprep.subr.mxu0 0.0
    %1762 = vmatpush1.msra.mxu0 %v1706
    %1763 = vmatprep.subr.mxu0 0.0
    %1764 = vmatpush1.msra.mxu0 %v1705
    %1765 = vmatprep.subr.mxu0 0.0
    %1766 = vmatpush2.msra.mxu0 0.0
    %1767 = vmatprep.subr.mxu0 0.0
    %1768 = vmatpush2.msra.mxu0 0.0
    %1769 = vmatprep.subr.mxu0 0.0
    %1770 = vmatpush2.msra.mxu0 0.0
    %1771 = vmatprep.subr.mxu0 0.0
    %1772 = vmatpush2.msra.mxu0 0.0
    %1773 = vmatprep.subr.mxu0 0.0
    %1774 = vmatpush2.msra.mxu0 0.0
    %1775 = vmatprep.subr.mxu0 0.0
    %1776 = vmatpush2.msra.mxu0 0.0
    %1777 = vmatprep.subr.mxu0 0.0
    %1778 = vmatpush2.msra.mxu0 0.0
    %1779 = vmatprep.subr.mxu0 0.0
    %1780 = vmatpush2.msra.mxu0 0.0
    %1781 = vmatprep.subr.mxu0 0.0
    %1782 = vmatpush2.msra.mxu0 0.0
    %1783 = vmatprep.subr.mxu0 0.0
    %1784 = vmatpush2.msra.mxu0 0.0
    %1785 = vmatprep.subr.mxu0 0.0
    %1786 = vmatpush2.msra.mxu0 0.0
    %1787 = vmatprep.subr.mxu0 0.0
    %1788 = vmatpush2.msra.mxu0 0.0
    %1789 = vmatprep.subr.mxu0 0.0
    %1790 = vmatpush2.msra.mxu0 0.0
    %1791 = vmatprep.subr.mxu0 0.0
    %1792 = vmatpush2.msra.mxu0 0.0
    %1793 = vmatprep.subr.mxu0 0.0
    %1794 = vmatpush2.msra.mxu0 0.0
    %1795 = vmatprep.subr.mxu0 0.0
    %1796 = vmatpush2.msra.mxu0 0.0
    %1797 = vmatprep.mubr.f32.mxu0 0.0
    %1798 = vmatmul.mubr.f32.gmra.mxu0 %v1710
    %v1799 = vpop.f32.mrf.mxu0
    %v1800 = vadd.f32 0.0, %v1799
    %v1801 = vpop.f32.mrf.mxu0
    %1802 = vmatprep.mubr.f32.mxu0 0.0
    %1803 = vmatmul.mubr.f32.gmra.mxu0 %v1713
    %v1804 = vpop.f32.mrf.mxu0
    %v1805 = vadd.f32 0.0, %v1804
    %v1806 = vpop.f32.mrf.mxu0
    %1807 = vmatprep.mubr.f32.mxu0 0.0
    %1808 = vmatmul.mubr.f32.gmra.mxu0 %v1716
    %v1809 = vpop.f32.mrf.mxu0
    %v1810 = vadd.f32 0.0, %v1809
    %v1811 = vpop.f32.mrf.mxu0
    %1812 = vmatprep.mubr.f32.mxu0 0.0
    %1813 = vmatmul.mubr.f32.gmra.mxu0 %v1719
    %v1814 = vpop.f32.mrf.mxu0
    %v1815 = vadd.f32 0.0, %v1814
    %v1816 = vpop.f32.mrf.mxu0
    %1817 = vmatprep.mubr.f32.mxu0 0.0
    %1818 = vmatmul.mubr.f32.gmra.mxu0 %v1722
    %v1819 = vpop.f32.mrf.mxu0
    %v1820 = vadd.f32 0.0, %v1819
    %v1821 = vpop.f32.mrf.mxu0
    %1822 = vmatprep.mubr.f32.mxu0 0.0
    %1823 = vmatmul.mubr.f32.gmra.mxu0 %v1725
    %v1824 = vpop.f32.mrf.mxu0
    %v1825 = vadd.f32 0.0, %v1824
    %v1826 = vpop.f32.mrf.mxu0
    %1827 = vmatprep.mubr.f32.mxu0 0.0
    %1828 = vmatmul.mubr.f32.gmra.mxu0 %v1728
    %v1829 = vpop.f32.mrf.mxu0
    %v1830 = vadd.f32 0.0, %v1829
    %v1831 = vpop.f32.mrf.mxu0
    %1832 = vmatprep.mubr.f32.mxu0 0.0
    %1833 = vmatmul.mubr.f32.gmra.mxu0 %v1731
    %v1834 = vpop.f32.mrf.mxu0
    %v1835 = vadd.f32 0.0, %v1834
    %v1836 = vpop.f32.mrf.mxu0
    %1837 = vdwg.mxu0
    %v1839 = vsel %vm671, %v1685, 0
    %v1842 = vsel %vm671, %v1686, 0
    %v1845 = vsel %vm671, %v1687, 0
    %v1848 = vsel %vm671, %v1688, 0
    %v1851 = vsel %vm671, %v1689, 0
    %v1854 = vsel %vm671, %v1690, 0
    %v1857 = vsel %vm671, %v1691, 0
    %v1860 = vsel %vm671, %v1692, 0
    %1862 = vmatprep.subr.mxu0 0.0
    %1863 = vmatpush1.msra.mxu0 0.0
    %1864 = vmatprep.subr.mxu0 0.0
    %1865 = vmatpush1.msra.mxu0 0.0
    %1866 = vmatprep.subr.mxu0 0.0
    %1867 = vmatpush1.msra.mxu0 0.0
    %1868 = vmatprep.subr.mxu0 0.0
    %1869 = vmatpush1.msra.mxu0 0.0
    %1870 = vmatprep.subr.mxu0 0.0
    %1871 = vmatpush1.msra.mxu0 0.0
    %1872 = vmatprep.subr.mxu0 0.0
    %1873 = vmatpush1.msra.mxu0 0.0
    %1874 = vmatprep.subr.mxu0 0.0
    %1875 = vmatpush1.msra.mxu0 0.0
    %1876 = vmatprep.subr.mxu0 0.0
    %1877 = vmatpush1.msra.mxu0 0.0
    %1878 = vmatprep.subr.mxu0 0.0
    %1879 = vmatpush1.msra.mxu0 0.0
    %1880 = vmatprep.subr.mxu0 0.0
    %1881 = vmatpush1.msra.mxu0 0.0
    %1882 = vmatprep.subr.mxu0 0.0
    %1883 = vmatpush1.msra.mxu0 0.0
    %1884 = vmatprep.subr.mxu0 0.0
    %1885 = vmatpush1.msra.mxu0 0.0
    %1886 = vmatprep.subr.mxu0 0.0
    %1887 = vmatpush1.msra.mxu0 %v1704
    %1888 = vmatprep.subr.mxu0 0.0
    %1889 = vmatpush1.msra.mxu0 %v1703
    %1890 = vmatprep.subr.mxu0 0.0
    %1891 = vmatpush1.msra.mxu0 %v1702
    %1892 = vmatprep.subr.mxu0 0.0
    %1893 = vmatpush1.msra.mxu0 %v1701
    %1894 = vmatprep.subr.mxu0 0.0
    %1895 = vmatpush2.msra.mxu0 0.0
    %1896 = vmatprep.subr.mxu0 0.0
    %1897 = vmatpush2.msra.mxu0 0.0
    %1898 = vmatprep.subr.mxu0 0.0
    %1899 = vmatpush2.msra.mxu0 0.0
    %1900 = vmatprep.subr.mxu0 0.0
    %1901 = vmatpush2.msra.mxu0 0.0
    %1902 = vmatprep.subr.mxu0 0.0
    %1903 = vmatpush2.msra.mxu0 0.0
    %1904 = vmatprep.subr.mxu0 0.0
    %1905 = vmatpush2.msra.mxu0 0.0
    %1906 = vmatprep.subr.mxu0 0.0
    %1907 = vmatpush2.msra.mxu0 0.0
    %1908 = vmatprep.subr.mxu0 0.0
    %1909 = vmatpush2.msra.mxu0 0.0
    %1910 = vmatprep.subr.mxu0 0.0
    %1911 = vmatpush2.msra.mxu0 0.0
    %1912 = vmatprep.subr.mxu0 0.0
    %1913 = vmatpush2.msra.mxu0 0.0
    %1914 = vmatprep.subr.mxu0 0.0
    %1915 = vmatpush2.msra.mxu0 0.0
    %1916 = vmatprep.subr.mxu0 0.0
    %1917 = vmatpush2.msra.mxu0 0.0
    %1918 = vmatprep.subr.mxu0 0.0
    %1919 = vmatpush2.msra.mxu0 0.0
    %1920 = vmatprep.subr.mxu0 0.0
    %1921 = vmatpush2.msra.mxu0 0.0
    %1922 = vmatprep.subr.mxu0 0.0
    %1923 = vmatpush2.msra.mxu0 0.0
    %1924 = vmatprep.subr.mxu0 0.0
    %1925 = vmatpush2.msra.mxu0 0.0
    %1926 = vmatprep.mubr.f32.mxu0 0.0
    %1927 = vmatmul.mubr.f32.gmra.mxu0 %v1839
    %v1928 = vpop.f32.mrf.mxu0
    %v1929 = vadd.f32 %v1800, %v1928
    %v1930 = vpop.f32.mrf.mxu0
    %1931 = vmatprep.mubr.f32.mxu0 0.0
    %1932 = vmatmul.mubr.f32.gmra.mxu0 %v1842
    %v1933 = vpop.f32.mrf.mxu0
    %v1934 = vadd.f32 %v1805, %v1933
    %v1935 = vpop.f32.mrf.mxu0
    %1936 = vmatprep.mubr.f32.mxu0 0.0
    %1937 = vmatmul.mubr.f32.gmra.mxu0 %v1845
    %v1938 = vpop.f32.mrf.mxu0
    %v1939 = vadd.f32 %v1810, %v1938
    %v1940 = vpop.f32.mrf.mxu0
    %1941 = vmatprep.mubr.f32.mxu0 0.0
    %1942 = vmatmul.mubr.f32.gmra.mxu0 %v1848
    %v1943 = vpop.f32.mrf.mxu0
    %v1944 = vadd.f32 %v1815, %v1943
    %v1945 = vpop.f32.mrf.mxu0
    %1946 = vmatprep.mubr.f32.mxu0 0.0
    %1947 = vmatmul.mubr.f32.gmra.mxu0 %v1851
    %v1948 = vpop.f32.mrf.mxu0
    %v1949 = vadd.f32 %v1820, %v1948
    %v1950 = vpop.f32.mrf.mxu0
    %1951 = vmatprep.mubr.f32.mxu0 0.0
    %1952 = vmatmul.mubr.f32.gmra.mxu0 %v1854
    %v1953 = vpop.f32.mrf.mxu0
    %v1954 = vadd.f32 %v1825, %v1953
    %v1955 = vpop.f32.mrf.mxu0
    %1956 = vmatprep.mubr.f32.mxu0 0.0
    %1957 = vmatmul.mubr.f32.gmra.mxu0 %v1857
    %v1958 = vpop.f32.mrf.mxu0
    %v1959 = vadd.f32 %v1830, %v1958
    %v1960 = vpop.f32.mrf.mxu0
    %1961 = vmatprep.mubr.f32.mxu0 0.0
    %1962 = vmatmul.mubr.f32.gmra.mxu0 %v1860
    %v1963 = vpop.f32.mrf.mxu0
    %v1964 = vadd.f32 %v1835, %v1963
    %v1965 = vpop.f32.mrf.mxu0
    %1966 = vdwg.mxu0
    %v1967 = vld [vmem:[#allocation22] sm:$0x1]
    %v1969 = vlaneseq
    %v1970 = vshrl.u32 %v1969, 7
    %v1971 = vsub.s32 0, %v1970
    %v1972 = vrot.slane %v1967, %v1971
    %v1974 = vadd.f32 %v1929, %v1972
    %v1975 = vadd.f32 %v1934, %v1972
    %v1976 = vadd.f32 %v1939, %v1972
    %v1977 = vadd.f32 %v1944, %v1972
    %v1978 = vadd.f32 %v1949, %v1972
    %v1979 = vadd.f32 %v1954, %v1972
    %v1980 = vadd.f32 %v1959, %v1972
    %v1981 = vadd.f32 %v1964, %v1972
    %v1982 = vld [vmem:[#allocation19] sm:$0xff]
    %v1983 = vld [vmem:[#allocation19 + $0x8] sm:$0xff]
    %v1984 = vld [vmem:[#allocation19 + $0x10] sm:$0xff]
    %v1985 = vld [vmem:[#allocation19 + $0x18] sm:$0xff]
    %v1986 = vld [vmem:[#allocation21] sm:$0xff]
    %v1987 = vld [vmem:[#allocation21 + $0x8] sm:$0xff]
    %v1988 = vld [vmem:[#allocation21 + $0x10] sm:$0xff]
    %v1989 = vld [vmem:[#allocation21 + $0x18] sm:$0xff]
    %1990 = vmatprep.subr.mxu0 0.0
    %1991 = vmatpush1.msra.mxu0 0.0
    %1992 = vmatprep.subr.mxu0 0.0
    %1993 = vmatpush1.msra.mxu0 0.0
    %1994 = vmatprep.subr.mxu0 0.0
    %1995 = vmatpush1.msra.mxu0 0.0
    %1996 = vmatprep.subr.mxu0 0.0
    %1997 = vmatpush1.msra.mxu0 0.0
    %1998 = vmatprep.subr.mxu0 0.0
    %1999 = vmatpush1.msra.mxu0 0.0
    %2000 = vmatprep.subr.mxu0 0.0
    %2001 = vmatpush1.msra.mxu0 0.0
    %2002 = vmatprep.subr.mxu0 0.0
    %2003 = vmatpush1.msra.mxu0 0.0
    %2004 = vmatprep.subr.mxu0 0.0
    %2005 = vmatpush1.msra.mxu0 0.0
    %2006 = vmatprep.subr.mxu0 0.0
    %2007 = vmatpush1.msra.mxu0 0.0
    %2008 = vmatprep.subr.mxu0 0.0
    %2009 = vmatpush1.msra.mxu0 0.0
    %2010 = vmatprep.subr.mxu0 0.0
    %2011 = vmatpush1.msra.mxu0 0.0
    %2012 = vmatprep.subr.mxu0 0.0
    %2013 = vmatpush1.msra.mxu0 0.0
    %2014 = vmatprep.subr.mxu0 0.0
    %2015 = vmatpush1.msra.mxu0 %v1989
    %2016 = vmatprep.subr.mxu0 0.0
    %2017 = vmatpush1.msra.mxu0 %v1988
    %2018 = vmatprep.subr.mxu0 0.0
    %2019 = vmatpush1.msra.mxu0 %v1987
    %2020 = vmatprep.subr.mxu0 0.0
    %2021 = vmatpush1.msra.mxu0 %v1986
    %2022 = vmatprep.subr.mxu0 0.0
    %2023 = vmatpush2.msra.mxu0 0.0
    %2024 = vmatprep.subr.mxu0 0.0
    %2025 = vmatpush2.msra.mxu0 0.0
    %2026 = vmatprep.subr.mxu0 0.0
    %2027 = vmatpush2.msra.mxu0 0.0
    %2028 = vmatprep.subr.mxu0 0.0
    %2029 = vmatpush2.msra.mxu0 0.0
    %2030 = vmatprep.subr.mxu0 0.0
    %2031 = vmatpush2.msra.mxu0 0.0
    %2032 = vmatprep.subr.mxu0 0.0
    %2033 = vmatpush2.msra.mxu0 0.0
    %2034 = vmatprep.subr.mxu0 0.0
    %2035 = vmatpush2.msra.mxu0 0.0
    %2036 = vmatprep.subr.mxu0 0.0
    %2037 = vmatpush2.msra.mxu0 0.0
    %2038 = vmatprep.subr.mxu0 0.0
    %2039 = vmatpush2.msra.mxu0 0.0
    %2040 = vmatprep.subr.mxu0 0.0
    %2041 = vmatpush2.msra.mxu0 0.0
    %2042 = vmatprep.subr.mxu0 0.0
    %2043 = vmatpush2.msra.mxu0 0.0
    %2044 = vmatprep.subr.mxu0 0.0
    %2045 = vmatpush2.msra.mxu0 0.0
    %2046 = vmatprep.subr.mxu0 0.0
    %2047 = vmatpush2.msra.mxu0 0.0
    %2048 = vmatprep.subr.mxu0 0.0
    %2049 = vmatpush2.msra.mxu0 0.0
    %2050 = vmatprep.subr.mxu0 0.0
    %2051 = vmatpush2.msra.mxu0 0.0
    %2052 = vmatprep.subr.mxu0 0.0
    %2053 = vmatpush2.msra.mxu0 0.0
    %2054 = vmatprep.mubr.f32.mxu0 0.0
    %2055 = vmatmul.mubr.f32.gmra.mxu0 %v1710
    %v2056 = vpop.f32.mrf.mxu0
    %v2057 = vadd.f32 0.0, %v2056
    %v2058 = vpop.f32.mrf.mxu0
    %2059 = vmatprep.mubr.f32.mxu0 0.0
    %2060 = vmatmul.mubr.f32.gmra.mxu0 %v1713
    %v2061 = vpop.f32.mrf.mxu0
    %v2062 = vadd.f32 0.0, %v2061
    %v2063 = vpop.f32.mrf.mxu0
    %2064 = vmatprep.mubr.f32.mxu0 0.0
    %2065 = vmatmul.mubr.f32.gmra.mxu0 %v1716
    %v2066 = vpop.f32.mrf.mxu0
    %v2067 = vadd.f32 0.0, %v2066
    %v2068 = vpop.f32.mrf.mxu0
    %2069 = vmatprep.mubr.f32.mxu0 0.0
    %2070 = vmatmul.mubr.f32.gmra.mxu0 %v1719
    %v2071 = vpop.f32.mrf.mxu0
    %v2072 = vadd.f32 0.0, %v2071
    %v2073 = vpop.f32.mrf.mxu0
    %2074 = vmatprep.mubr.f32.mxu0 0.0
    %2075 = vmatmul.mubr.f32.gmra.mxu0 %v1722
    %v2076 = vpop.f32.mrf.mxu0
    %v2077 = vadd.f32 0.0, %v2076
    %v2078 = vpop.f32.mrf.mxu0
    %2079 = vmatprep.mubr.f32.mxu0 0.0
    %2080 = vmatmul.mubr.f32.gmra.mxu0 %v1725
    %v2081 = vpop.f32.mrf.mxu0
    %v2082 = vadd.f32 0.0, %v2081
    %v2083 = vpop.f32.mrf.mxu0
    %2084 = vmatprep.mubr.f32.mxu0 0.0
    %2085 = vmatmul.mubr.f32.gmra.mxu0 %v1728
    %v2086 = vpop.f32.mrf.mxu0
    %v2087 = vadd.f32 0.0, %v2086
    %v2088 = vpop.f32.mrf.mxu0
    %2089 = vmatprep.mubr.f32.mxu0 0.0
    %2090 = vmatmul.mubr.f32.gmra.mxu0 %v1731
    %v2091 = vpop.f32.mrf.mxu0
    %v2092 = vadd.f32 0.0, %v2091
    %v2093 = vpop.f32.mrf.mxu0
    %2094 = vdwg.mxu0
    %2095 = vmatprep.subr.mxu0 0.0
    %2096 = vmatpush1.msra.mxu0 0.0
    %2097 = vmatprep.subr.mxu0 0.0
    %2098 = vmatpush1.msra.mxu0 0.0
    %2099 = vmatprep.subr.mxu0 0.0
    %2100 = vmatpush1.msra.mxu0 0.0
    %2101 = vmatprep.subr.mxu0 0.0
    %2102 = vmatpush1.msra.mxu0 0.0
    %2103 = vmatprep.subr.mxu0 0.0
    %2104 = vmatpush1.msra.mxu0 0.0
    %2105 = vmatprep.subr.mxu0 0.0
    %2106 = vmatpush1.msra.mxu0 0.0
    %2107 = vmatprep.subr.mxu0 0.0
    %2108 = vmatpush1.msra.mxu0 0.0
    %2109 = vmatprep.subr.mxu0 0.0
    %2110 = vmatpush1.msra.mxu0 0.0
    %2111 = vmatprep.subr.mxu0 0.0
    %2112 = vmatpush1.msra.mxu0 0.0
    %2113 = vmatprep.subr.mxu0 0.0
    %2114 = vmatpush1.msra.mxu0 0.0
    %2115 = vmatprep.subr.mxu0 0.0
    %2116 = vmatpush1.msra.mxu0 0.0
    %2117 = vmatprep.subr.mxu0 0.0
    %2118 = vmatpush1.msra.mxu0 0.0
    %2119 = vmatprep.subr.mxu0 0.0
    %2120 = vmatpush1.msra.mxu0 %v1985
    %2121 = vmatprep.subr.mxu0 0.0
    %2122 = vmatpush1.msra.mxu0 %v1984
    %2123 = vmatprep.subr.mxu0 0.0
    %2124 = vmatpush1.msra.mxu0 %v1983
    %2125 = vmatprep.subr.mxu0 0.0
    %2126 = vmatpush1.msra.mxu0 %v1982
    %2127 = vmatprep.subr.mxu0 0.0
    %2128 = vmatpush2.msra.mxu0 0.0
    %2129 = vmatprep.subr.mxu0 0.0
    %2130 = vmatpush2.msra.mxu0 0.0
    %2131 = vmatprep.subr.mxu0 0.0
    %2132 = vmatpush2.msra.mxu0 0.0
    %2133 = vmatprep.subr.mxu0 0.0
    %2134 = vmatpush2.msra.mxu0 0.0
    %2135 = vmatprep.subr.mxu0 0.0
    %2136 = vmatpush2.msra.mxu0 0.0
    %2137 = vmatprep.subr.mxu0 0.0
    %2138 = vmatpush2.msra.mxu0 0.0
    %2139 = vmatprep.subr.mxu0 0.0
    %2140 = vmatpush2.msra.mxu0 0.0
    %2141 = vmatprep.subr.mxu0 0.0
    %2142 = vmatpush2.msra.mxu0 0.0
    %2143 = vmatprep.subr.mxu0 0.0
    %2144 = vmatpush2.msra.mxu0 0.0
    %2145 = vmatprep.subr.mxu0 0.0
    %2146 = vmatpush2.msra.mxu0 0.0
    %2147 = vmatprep.subr.mxu0 0.0
    %2148 = vmatpush2.msra.mxu0 0.0
    %2149 = vmatprep.subr.mxu0 0.0
    %2150 = vmatpush2.msra.mxu0 0.0
    %2151 = vmatprep.subr.mxu0 0.0
    %2152 = vmatpush2.msra.mxu0 0.0
    %2153 = vmatprep.subr.mxu0 0.0
    %2154 = vmatpush2.msra.mxu0 0.0
    %2155 = vmatprep.subr.mxu0 0.0
    %2156 = vmatpush2.msra.mxu0 0.0
    %2157 = vmatprep.subr.mxu0 0.0
    %2158 = vmatpush2.msra.mxu0 0.0
    %2159 = vmatprep.mubr.f32.mxu0 0.0
    %2160 = vmatmul.mubr.f32.gmra.mxu0 %v1839
    %v2161 = vpop.f32.mrf.mxu0
    %v2162 = vadd.f32 %v2057, %v2161
    %v2163 = vpop.f32.mrf.mxu0
    %2164 = vmatprep.mubr.f32.mxu0 0.0
    %2165 = vmatmul.mubr.f32.gmra.mxu0 %v1842
    %v2166 = vpop.f32.mrf.mxu0
    %v2167 = vadd.f32 %v2062, %v2166
    %v2168 = vpop.f32.mrf.mxu0
    %2169 = vmatprep.mubr.f32.mxu0 0.0
    %2170 = vmatmul.mubr.f32.gmra.mxu0 %v1845
    %v2171 = vpop.f32.mrf.mxu0
    %v2172 = vadd.f32 %v2067, %v2171
    %v2173 = vpop.f32.mrf.mxu0
    %2174 = vmatprep.mubr.f32.mxu0 0.0
    %2175 = vmatmul.mubr.f32.gmra.mxu0 %v1848
    %v2176 = vpop.f32.mrf.mxu0
    %v2177 = vadd.f32 %v2072, %v2176
    %v2178 = vpop.f32.mrf.mxu0
    %2179 = vmatprep.mubr.f32.mxu0 0.0
    %2180 = vmatmul.mubr.f32.gmra.mxu0 %v1851
    %v2181 = vpop.f32.mrf.mxu0
    %v2182 = vadd.f32 %v2077, %v2181
    %v2183 = vpop.f32.mrf.mxu0
    %2184 = vmatprep.mubr.f32.mxu0 0.0
    %2185 = vmatmul.mubr.f32.gmra.mxu0 %v1854
    %v2186 = vpop.f32.mrf.mxu0
    %v2187 = vadd.f32 %v2082, %v2186
    %v2188 = vpop.f32.mrf.mxu0
    %2189 = vmatprep.mubr.f32.mxu0 0.0
    %2190 = vmatmul.mubr.f32.gmra.mxu0 %v1857
    %v2191 = vpop.f32.mrf.mxu0
    %v2192 = vadd.f32 %v2087, %v2191
    %v2193 = vpop.f32.mrf.mxu0
    %2194 = vmatprep.mubr.f32.mxu0 0.0
    %2195 = vmatmul.mubr.f32.gmra.mxu0 %v1860
    %v2196 = vpop.f32.mrf.mxu0
    %v2197 = vadd.f32 %v2092, %v2196
    %v2198 = vpop.f32.mrf.mxu0
    %2199 = vdwg.mxu0
    %v2200 = vld [vmem:[#allocation24] sm:$0x1]
    %v2202 = vlaneseq
    %v2203 = vshrl.u32 %v2202, 7
    %v2204 = vsub.s32 0, %v2203
    %v2205 = vrot.slane %v2200, %v2204
    %v2207 = vadd.f32 %v2162, %v2205
    %v2208 = vadd.f32 %v2167, %v2205
    %v2209 = vadd.f32 %v2172, %v2205
    %v2210 = vadd.f32 %v2177, %v2205
    %v2211 = vadd.f32 %v2182, %v2205
    %v2212 = vadd.f32 %v2187, %v2205
    %v2213 = vadd.f32 %v2192, %v2205
    %v2214 = vadd.f32 %v2197, %v2205
    %2215 = vst.msk [vmem:[#allocation6] sm:$0xff] %vm253, %v1974
    %2216 = vst.msk [vmem:[#allocation6 + $0x8] sm:$0xff] %vm253, %v1975
    %2217 = vst.msk [vmem:[#allocation6 + $0x10] sm:$0xff] %vm253, %v1976
    %2218 = vst.msk [vmem:[#allocation6 + $0x18] sm:$0xff] %vm253, %v1977
    %2219 = vst.msk [vmem:[#allocation6 + $0x20] sm:$0xff] %vm253, %v1978
    %2220 = vst.msk [vmem:[#allocation6 + $0x28] sm:$0xff] %vm253, %v1979
    %2221 = vst.msk [vmem:[#allocation6 + $0x30] sm:$0xff] %vm253, %v1980
    %2222 = vst.msk [vmem:[#allocation6 + $0x38] sm:$0xff] %vm253, %v1981
    %2223 = vst.msk [vmem:[#allocation7] sm:$0xff] %vm253, %v2207
    %2224 = vst.msk [vmem:[#allocation7 + $0x8] sm:$0xff] %vm253, %v2208
    %2225 = vst.msk [vmem:[#allocation7 + $0x10] sm:$0xff] %vm253, %v2209
    %2226 = vst.msk [vmem:[#allocation7 + $0x18] sm:$0xff] %vm253, %v2210
    %2227 = vst.msk [vmem:[#allocation7 + $0x20] sm:$0xff] %vm253, %v2211
    %2228 = vst.msk [vmem:[#allocation7 + $0x28] sm:$0xff] %vm253, %v2212
    %2229 = vst.msk [vmem:[#allocation7 + $0x30] sm:$0xff] %vm253, %v2213
    %2230 = vst.msk [vmem:[#allocation7 + $0x38] sm:$0xff] %vm253, %v2214
    %v2231 = vld [vmem:[#allocation6] sm:$0xff]
    %s2232 = scalar_lea.vmem [#allocation7], 56
    %v2233 = vld [vmem:[%s2232] sm:$0xff]
    %v2234 = vsel %vm671, 0.0, 0
    %2236 = vmatprep.subr.mxu0 0.0
    %2237 = vmatpush1.msra.mxu0 0.0
    %2238 = vmatprep.subr.mxu0 0.0
    %2239 = vmatpush1.msra.mxu0 0.0
    %2240 = vmatprep.subr.mxu0 0.0
    %2241 = vmatpush1.msra.mxu0 0.0
    %2242 = vmatprep.subr.mxu0 0.0
    %2243 = vmatpush1.msra.mxu0 0.0
    %2244 = vmatprep.subr.mxu0 0.0
    %2245 = vmatpush1.msra.mxu0 0.0
    %2246 = vmatprep.subr.mxu0 0.0
    %2247 = vmatpush1.msra.mxu0 0.0
    %2248 = vmatprep.subr.mxu0 0.0
    %2249 = vmatpush1.msra.mxu0 0.0
    %2250 = vmatprep.subr.mxu0 0.0
    %2251 = vmatpush1.msra.mxu0 0.0
    %2252 = vmatprep.subr.mxu0 0.0
    %2253 = vmatpush1.msra.mxu0 0.0
    %2254 = vmatprep.subr.mxu0 0.0
    %2255 = vmatpush1.msra.mxu0 0.0
    %2256 = vmatprep.subr.mxu0 0.0
    %2257 = vmatpush1.msra.mxu0 0.0
    %2258 = vmatprep.subr.mxu0 0.0
    %2259 = vmatpush1.msra.mxu0 0.0
    %2260 = vmatprep.subr.mxu0 0.0
    %2261 = vmatpush1.msra.mxu0 %v539
    %2262 = vmatprep.subr.mxu0 0.0
    %2263 = vmatpush1.msra.mxu0 %v538
    %2264 = vmatprep.subr.mxu0 0.0
    %2265 = vmatpush1.msra.mxu0 %v537
    %2266 = vmatprep.subr.mxu0 0.0
    %2267 = vmatpush1.msra.mxu0 %v536
    %2268 = vmatprep.subr.mxu0 0.0
    %2269 = vmatpush2.msra.mxu0 0.0
    %2270 = vmatprep.subr.mxu0 0.0
    %2271 = vmatpush2.msra.mxu0 0.0
    %2272 = vmatprep.subr.mxu0 0.0
    %2273 = vmatpush2.msra.mxu0 0.0
    %2274 = vmatprep.subr.mxu0 0.0
    %2275 = vmatpush2.msra.mxu0 0.0
    %2276 = vmatprep.subr.mxu0 0.0
    %2277 = vmatpush2.msra.mxu0 0.0
    %2278 = vmatprep.subr.mxu0 0.0
    %2279 = vmatpush2.msra.mxu0 0.0
    %2280 = vmatprep.subr.mxu0 0.0
    %2281 = vmatpush2.msra.mxu0 0.0
    %2282 = vmatprep.subr.mxu0 0.0
    %2283 = vmatpush2.msra.mxu0 0.0
    %2284 = vmatprep.subr.mxu0 0.0
    %2285 = vmatpush2.msra.mxu0 0.0
    %2286 = vmatprep.subr.mxu0 0.0
    %2287 = vmatpush2.msra.mxu0 0.0
    %2288 = vmatprep.subr.mxu0 0.0
    %2289 = vmatpush2.msra.mxu0 0.0
    %2290 = vmatprep.subr.mxu0 0.0
    %2291 = vmatpush2.msra.mxu0 0.0
    %2292 = vmatprep.subr.mxu0 0.0
    %2293 = vmatpush2.msra.mxu0 0.0
    %2294 = vmatprep.subr.mxu0 0.0
    %2295 = vmatpush2.msra.mxu0 0.0
    %2296 = vmatprep.subr.mxu0 0.0
    %2297 = vmatpush2.msra.mxu0 0.0
    %2298 = vmatprep.subr.mxu0 0.0
    %2299 = vmatpush2.msra.mxu0 0.0
    %2300 = vmatprep.mubr.f32.mxu0 0.0
    %2301 = vmatmul.mubr.f32.gmra.mxu0 %v2234
    %v2302 = vpop.f32.mrf.mxu0
    %v2303 = vadd.f32 0.0, %v2302
    %v2304 = vpop.f32.mrf.mxu0
    %2305 = vdwg.mxu0
    %v2306 = vadd.f32 %v2303, %v2231
    %v2307 = vxor.u32 %v2306, 2147483648
    %v2308 = vmul.f32 %v2307, 1.442695
    %v2309 = vpow.pop %v2308
    %v2310 = vadd.f32 %v2309, 1.0
    %v2311 = vrcp.pop %v2310
    %v2312 = vmul.f32 1.0, %v2311
    %v2313 = vtanh.pop %v2306
    %v2314 = vmul.f32 %v2312, 0.0
    %2316 = vrot.lane.b32.xlu0 %v2313, 80
    %v2317 = vpop.permute.xlu0 %2316
    %v2319 = vmul.f32 %v2312, %v2317
    %2321 = vrot.lane.b32.xlu0 %v2319, 16
    %v2322 = vpop.permute.xlu0 %2321
    %v2324 = vadd.f32 %v2314, %v2322
    %v2325 = vtanh.pop %v2324
    %2327 = vrot.lane.b32.xlu0 %v2325, 16
    %v2328 = vpop.permute.xlu0 %2327
    %v2330 = vmul.f32 %v2312, %v2328
    %2332 = vrot.lane.b32.xlu0 %v2233, 64
    %v2333 = vpop.permute.xlu0 %2332
    %v2335 = vadd.f32 %v2303, %v2333
    %v2336 = vxor.u32 %v2335, 2147483648
    %v2337 = vmul.f32 %v2336, 1.442695
    %v2338 = vpow.pop %v2337
    %v2339 = vadd.f32 %v2338, 1.0
    %v2340 = vrcp.pop %v2339
    %v2341 = vmul.f32 1.0, %v2340
    %v2342 = vtanh.pop %v2335
    %v2343 = vmul.f32 %v2341, 0.0
    %2345 = vrot.lane.b32.xlu0 %v2342, 80
    %v2346 = vpop.permute.xlu0 %2345
    %v2348 = vmul.f32 %v2341, %v2346
    %2350 = vrot.lane.b32.xlu0 %v2348, 16
    %v2351 = vpop.permute.xlu0 %2350
    %v2353 = vadd.f32 %v2343, %v2351
    %v2354 = vtanh.pop %v2353
    %2356 = vrot.lane.b32.xlu0 %v2354, 16
    %v2357 = vpop.permute.xlu0 %2356
    %v2359 = vmul.f32 %v2341, %v2357
    %vm2360 = vcmp.gt.s32.totalorder %v519, 0
    %v2361 = vsel %vm2360, 1, 0
    %2362 = vset.pattern.permute.xlu0 0
    %2363 = vperm.xlu0 %2362, %v2361
    %v2364 = vpop.permute.xlu0 %2363
    %vm2365 = vcmp.eq.s32.totalorder %v2364, 1
    %v2366 = vsel %vm2365, %v2330, 0.0
    %vm2367 = vcmp.gt.s32.totalorder %v519, 7
    %v2368 = vsel %vm2367, 1, 0
    %2369 = vset.pattern.permute.xlu0 0
    %2370 = vperm.xlu0 %2369, %v2368
    %v2371 = vpop.permute.xlu0 %2370
    %vm2372 = vcmp.eq.s32.totalorder %v2371, 1
    %v2373 = vsel %vm2372, %v2359, 0.0
    %v2374 = vsel %vm2372, %v2353, 0.0
    %s2375 = scalar_lea.vmem [#allocation6], 8
    %v2376 = vld [vmem:[%s2375] sm:$0xff]
    %s2377 = scalar_lea.vmem [#allocation7], 48
    %v2378 = vld [vmem:[%s2377] sm:$0xff]
    %2380 = vrot.lane.b32.xlu0 %v2330, 96
    %v2381 = vpop.permute.xlu0 %2380
    %2384 = vrot.lane.b32.xlu0 %v2373, 48
    %v2385 = vpop.permute.xlu0 %2384
    %vm2387 = vcmask 130048
    %v2388 = vsel %vm2387, %v2381, %v2385
    %v2390 = vsel %vm671, %v2388, 0
    %2392 = vmatprep.subr.mxu0 0.0
    %2393 = vmatpush1.msra.mxu0 0.0
    %2394 = vmatprep.subr.mxu0 0.0
    %2395 = vmatpush1.msra.mxu0 0.0
    %2396 = vmatprep.subr.mxu0 0.0
    %2397 = vmatpush1.msra.mxu0 0.0
    %2398 = vmatprep.subr.mxu0 0.0
    %2399 = vmatpush1.msra.mxu0 0.0
    %2400 = vmatprep.subr.mxu0 0.0
    %2401 = vmatpush1.msra.mxu0 0.0
    %2402 = vmatprep.subr.mxu0 0.0
    %2403 = vmatpush1.msra.mxu0 0.0
    %2404 = vmatprep.subr.mxu0 0.0
    %2405 = vmatpush1.msra.mxu0 0.0
    %2406 = vmatprep.subr.mxu0 0.0
    %2407 = vmatpush1.msra.mxu0 0.0
    %2408 = vmatprep.subr.mxu0 0.0
    %2409 = vmatpush1.msra.mxu0 0.0
    %2410 = vmatprep.subr.mxu0 0.0
    %2411 = vmatpush1.msra.mxu0 0.0
    %2412 = vmatprep.subr.mxu0 0.0
    %2413 = vmatpush1.msra.mxu0 0.0
    %2414 = vmatprep.subr.mxu0 0.0
    %2415 = vmatpush1.msra.mxu0 0.0
    %2416 = vmatprep.subr.mxu0 0.0
    %2417 = vmatpush1.msra.mxu0 %v539
    %2418 = vmatprep.subr.mxu0 0.0
    %2419 = vmatpush1.msra.mxu0 %v538
    %2420 = vmatprep.subr.mxu0 0.0
    %2421 = vmatpush1.msra.mxu0 %v537
    %2422 = vmatprep.subr.mxu0 0.0
    %2423 = vmatpush1.msra.mxu0 %v536
    %2424 = vmatprep.subr.mxu0 0.0
    %2425 = vmatpush2.msra.mxu0 0.0
    %2426 = vmatprep.subr.mxu0 0.0
    %2427 = vmatpush2.msra.mxu0 0.0
    %2428 = vmatprep.subr.mxu0 0.0
    %2429 = vmatpush2.msra.mxu0 0.0
    %2430 = vmatprep.subr.mxu0 0.0
    %2431 = vmatpush2.msra.mxu0 0.0
    %2432 = vmatprep.subr.mxu0 0.0
    %2433 = vmatpush2.msra.mxu0 0.0
    %2434 = vmatprep.subr.mxu0 0.0
    %2435 = vmatpush2.msra.mxu0 0.0
    %2436 = vmatprep.subr.mxu0 0.0
    %2437 = vmatpush2.msra.mxu0 0.0
    %2438 = vmatprep.subr.mxu0 0.0
    %2439 = vmatpush2.msra.mxu0 0.0
    %2440 = vmatprep.subr.mxu0 0.0
    %2441 = vmatpush2.msra.mxu0 0.0
    %2442 = vmatprep.subr.mxu0 0.0
    %2443 = vmatpush2.msra.mxu0 0.0
    %2444 = vmatprep.subr.mxu0 0.0
    %2445 = vmatpush2.msra.mxu0 0.0
    %2446 = vmatprep.subr.mxu0 0.0
    %2447 = vmatpush2.msra.mxu0 0.0
    %2448 = vmatprep.subr.mxu0 0.0
    %2449 = vmatpush2.msra.mxu0 0.0
    %2450 = vmatprep.subr.mxu0 0.0
    %2451 = vmatpush2.msra.mxu0 0.0
    %2452 = vmatprep.subr.mxu0 0.0
    %2453 = vmatpush2.msra.mxu0 0.0
    %2454 = vmatprep.subr.mxu0 0.0
    %2455 = vmatpush2.msra.mxu0 0.0
    %2456 = vmatprep.mubr.f32.mxu0 0.0
    %2457 = vmatmul.mubr.f32.gmra.mxu0 %v2390
    %v2458 = vpop.f32.mrf.mxu0
    %v2459 = vadd.f32 0.0, %v2458
    %v2460 = vpop.f32.mrf.mxu0
    %2461 = vdwg.mxu0
    %v2462 = vadd.f32 %v2459, %v2376
    %v2463 = vxor.u32 %v2462, 2147483648
    %v2464 = vmul.f32 %v2463, 1.442695
    %v2465 = vpow.pop %v2464
    %v2466 = vadd.f32 %v2465, 1.0
    %v2467 = vrcp.pop %v2466
    %v2468 = vmul.f32 1.0, %v2467
    %v2469 = vtanh.pop %v2462
    %v2470 = vmul.f32 %v2468, %v2324
    %2472 = vrot.lane.b32.xlu0 %v2469, 80
    %v2473 = vpop.permute.xlu0 %2472
    %v2475 = vmul.f32 %v2468, %v2473
    %2477 = vrot.lane.b32.xlu0 %v2475, 16
    %v2478 = vpop.permute.xlu0 %2477
    %v2480 = vadd.f32 %v2470, %v2478
    %v2481 = vtanh.pop %v2480
    %2483 = vrot.lane.b32.xlu0 %v2481, 16
    %v2484 = vpop.permute.xlu0 %2483
    %v2486 = vmul.f32 %v2468, %v2484
    %2488 = vrot.lane.b32.xlu0 %v2378, 64
    %v2489 = vpop.permute.xlu0 %2488
    %v2491 = vadd.f32 %v2459, %v2489
    %v2492 = vxor.u32 %v2491, 2147483648
    %v2493 = vmul.f32 %v2492, 1.442695
    %v2494 = vpow.pop %v2493
    %v2495 = vadd.f32 %v2494, 1.0
    %v2496 = vrcp.pop %v2495
    %v2497 = vmul.f32 1.0, %v2496
    %v2498 = vtanh.pop %v2491
    %v2499 = vmul.f32 %v2497, %v2374
    %2501 = vrot.lane.b32.xlu0 %v2498, 80
    %v2502 = vpop.permute.xlu0 %2501
    %v2504 = vmul.f32 %v2497, %v2502
    %2506 = vrot.lane.b32.xlu0 %v2504, 16
    %v2507 = vpop.permute.xlu0 %2506
    %v2509 = vadd.f32 %v2499, %v2507
    %v2510 = vtanh.pop %v2509
    %2512 = vrot.lane.b32.xlu0 %v2510, 16
    %v2513 = vpop.permute.xlu0 %2512
    %v2515 = vmul.f32 %v2497, %v2513
    %vm2516 = vcmp.gt.s32.totalorder %v519, 1
    %v2517 = vsel %vm2516, 1, 0
    %2518 = vset.pattern.permute.xlu0 0
    %2519 = vperm.xlu0 %2518, %v2517
    %v2520 = vpop.permute.xlu0 %2519
    %vm2521 = vcmp.eq.s32.totalorder %v2520, 1
    %v2522 = vsel %vm2521, %v2486, %v2366
    %vm2523 = vcmp.gt.s32.totalorder %v519, 6
    %v2524 = vsel %vm2523, 1, 0
    %2525 = vset.pattern.permute.xlu0 0
    %2526 = vperm.xlu0 %2525, %v2524
    %v2527 = vpop.permute.xlu0 %2526
    %vm2528 = vcmp.eq.s32.totalorder %v2527, 1
    %v2529 = vsel %vm2528, %v2515, 0.0
    %v2530 = vsel %vm2528, %v2509, 0.0
    %s2531 = scalar_lea.vmem [#allocation6], 16
    %v2532 = vld [vmem:[%s2531] sm:$0xff]
    %s2533 = scalar_lea.vmem [#allocation7], 40
    %v2534 = vld [vmem:[%s2533] sm:$0xff]
    %2536 = vrot.lane.b32.xlu0 %v2486, 96
    %v2537 = vpop.permute.xlu0 %2536
    %2540 = vrot.lane.b32.xlu0 %v2529, 48
    %v2541 = vpop.permute.xlu0 %2540
    %v2543 = vsel %vm2387, %v2537, %v2541
    %v2545 = vsel %vm671, %v2543, 0
    %2547 = vmatprep.subr.mxu0 0.0
    %2548 = vmatpush1.msra.mxu0 0.0
    %2549 = vmatprep.subr.mxu0 0.0
    %2550 = vmatpush1.msra.mxu0 0.0
    %2551 = vmatprep.subr.mxu0 0.0
    %2552 = vmatpush1.msra.mxu0 0.0
    %2553 = vmatprep.subr.mxu0 0.0
    %2554 = vmatpush1.msra.mxu0 0.0
    %2555 = vmatprep.subr.mxu0 0.0
    %2556 = vmatpush1.msra.mxu0 0.0
    %2557 = vmatprep.subr.mxu0 0.0
    %2558 = vmatpush1.msra.mxu0 0.0
    %2559 = vmatprep.subr.mxu0 0.0
    %2560 = vmatpush1.msra.mxu0 0.0
    %2561 = vmatprep.subr.mxu0 0.0
    %2562 = vmatpush1.msra.mxu0 0.0
    %2563 = vmatprep.subr.mxu0 0.0
    %2564 = vmatpush1.msra.mxu0 0.0
    %2565 = vmatprep.subr.mxu0 0.0
    %2566 = vmatpush1.msra.mxu0 0.0
    %2567 = vmatprep.subr.mxu0 0.0
    %2568 = vmatpush1.msra.mxu0 0.0
    %2569 = vmatprep.subr.mxu0 0.0
    %2570 = vmatpush1.msra.mxu0 0.0
    %2571 = vmatprep.subr.mxu0 0.0
    %2572 = vmatpush1.msra.mxu0 %v539
    %2573 = vmatprep.subr.mxu0 0.0
    %2574 = vmatpush1.msra.mxu0 %v538
    %2575 = vmatprep.subr.mxu0 0.0
    %2576 = vmatpush1.msra.mxu0 %v537
    %2577 = vmatprep.subr.mxu0 0.0
    %2578 = vmatpush1.msra.mxu0 %v536
    %2579 = vmatprep.subr.mxu0 0.0
    %2580 = vmatpush2.msra.mxu0 0.0
    %2581 = vmatprep.subr.mxu0 0.0
    %2582 = vmatpush2.msra.mxu0 0.0
    %2583 = vmatprep.subr.mxu0 0.0
    %2584 = vmatpush2.msra.mxu0 0.0
    %2585 = vmatprep.subr.mxu0 0.0
    %2586 = vmatpush2.msra.mxu0 0.0
    %2587 = vmatprep.subr.mxu0 0.0
    %2588 = vmatpush2.msra.mxu0 0.0
    %2589 = vmatprep.subr.mxu0 0.0
    %2590 = vmatpush2.msra.mxu0 0.0
    %2591 = vmatprep.subr.mxu0 0.0
    %2592 = vmatpush2.msra.mxu0 0.0
    %2593 = vmatprep.subr.mxu0 0.0
    %2594 = vmatpush2.msra.mxu0 0.0
    %2595 = vmatprep.subr.mxu0 0.0
    %2596 = vmatpush2.msra.mxu0 0.0
    %2597 = vmatprep.subr.mxu0 0.0
    %2598 = vmatpush2.msra.mxu0 0.0
    %2599 = vmatprep.subr.mxu0 0.0
    %2600 = vmatpush2.msra.mxu0 0.0
    %2601 = vmatprep.subr.mxu0 0.0
    %2602 = vmatpush2.msra.mxu0 0.0
    %2603 = vmatprep.subr.mxu0 0.0
    %2604 = vmatpush2.msra.mxu0 0.0
    %2605 = vmatprep.subr.mxu0 0.0
    %2606 = vmatpush2.msra.mxu0 0.0
    %2607 = vmatprep.subr.mxu0 0.0
    %2608 = vmatpush2.msra.mxu0 0.0
    %2609 = vmatprep.subr.mxu0 0.0
    %2610 = vmatpush2.msra.mxu0 0.0
    %2611 = vmatprep.mubr.f32.mxu0 0.0
    %2612 = vmatmul.mubr.f32.gmra.mxu0 %v2545
    %v2613 = vpop.f32.mrf.mxu0
    %v2614 = vadd.f32 0.0, %v2613
    %v2615 = vpop.f32.mrf.mxu0
    %2616 = vdwg.mxu0
    %v2617 = vadd.f32 %v2614, %v2532
    %v2618 = vxor.u32 %v2617, 2147483648
    %v2619 = vmul.f32 %v2618, 1.442695
    %v2620 = vpow.pop %v2619
    %v2621 = vadd.f32 %v2620, 1.0
    %v2622 = vrcp.pop %v2621
    %v2623 = vmul.f32 1.0, %v2622
    %v2624 = vtanh.pop %v2617
    %v2625 = vmul.f32 %v2623, %v2480
    %2627 = vrot.lane.b32.xlu0 %v2624, 80
    %v2628 = vpop.permute.xlu0 %2627
    %v2630 = vmul.f32 %v2623, %v2628
    %2632 = vrot.lane.b32.xlu0 %v2630, 16
    %v2633 = vpop.permute.xlu0 %2632
    %v2635 = vadd.f32 %v2625, %v2633
    %v2636 = vtanh.pop %v2635
    %2638 = vrot.lane.b32.xlu0 %v2636, 16
    %v2639 = vpop.permute.xlu0 %2638
    %v2641 = vmul.f32 %v2623, %v2639
    %2643 = vrot.lane.b32.xlu0 %v2534, 64
    %v2644 = vpop.permute.xlu0 %2643
    %v2646 = vadd.f32 %v2614, %v2644
    %v2647 = vxor.u32 %v2646, 2147483648
    %v2648 = vmul.f32 %v2647, 1.442695
    %v2649 = vpow.pop %v2648
    %v2650 = vadd.f32 %v2649, 1.0
    %v2651 = vrcp.pop %v2650
    %v2652 = vmul.f32 1.0, %v2651
    %v2653 = vtanh.pop %v2646
    %v2654 = vmul.f32 %v2652, %v2530
    %2656 = vrot.lane.b32.xlu0 %v2653, 80
    %v2657 = vpop.permute.xlu0 %2656
    %v2659 = vmul.f32 %v2652, %v2657
    %2661 = vrot.lane.b32.xlu0 %v2659, 16
    %v2662 = vpop.permute.xlu0 %2661
    %v2664 = vadd.f32 %v2654, %v2662
    %v2665 = vtanh.pop %v2664
    %2667 = vrot.lane.b32.xlu0 %v2665, 16
    %v2668 = vpop.permute.xlu0 %2667
    %v2670 = vmul.f32 %v2652, %v2668
    %vm2671 = vcmp.gt.s32.totalorder %v519, 2
    %v2672 = vsel %vm2671, 1, 0
    %2673 = vset.pattern.permute.xlu0 0
    %2674 = vperm.xlu0 %2673, %v2672
    %v2675 = vpop.permute.xlu0 %2674
    %vm2676 = vcmp.eq.s32.totalorder %v2675, 1
    %v2677 = vsel %vm2676, %v2641, %v2522
    %vm2678 = vcmp.gt.s32.totalorder %v519, 5
    %v2679 = vsel %vm2678, 1, 0
    %2680 = vset.pattern.permute.xlu0 0
    %2681 = vperm.xlu0 %2680, %v2679
    %v2682 = vpop.permute.xlu0 %2681
    %vm2683 = vcmp.eq.s32.totalorder %v2682, 1
    %v2684 = vsel %vm2683, %v2670, 0.0
    %v2685 = vsel %vm2683, %v2664, 0.0
    %s2686 = scalar_lea.vmem [#allocation6], 24
    %v2687 = vld [vmem:[%s2686] sm:$0xff]
    %s2688 = scalar_lea.vmem [#allocation7], 32
    %v2689 = vld [vmem:[%s2688] sm:$0xff]
    %2691 = vrot.lane.b32.xlu0 %v2641, 96
    %v2692 = vpop.permute.xlu0 %2691
    %2695 = vrot.lane.b32.xlu0 %v2684, 48
    %v2696 = vpop.permute.xlu0 %2695
    %v2698 = vsel %vm2387, %v2692, %v2696
    %v2700 = vsel %vm671, %v2698, 0
    %2702 = vmatprep.subr.mxu0 0.0
    %2703 = vmatpush1.msra.mxu0 0.0
    %2704 = vmatprep.subr.mxu0 0.0
    %2705 = vmatpush1.msra.mxu0 0.0
    %2706 = vmatprep.subr.mxu0 0.0
    %2707 = vmatpush1.msra.mxu0 0.0
    %2708 = vmatprep.subr.mxu0 0.0
    %2709 = vmatpush1.msra.mxu0 0.0
    %2710 = vmatprep.subr.mxu0 0.0
    %2711 = vmatpush1.msra.mxu0 0.0
    %2712 = vmatprep.subr.mxu0 0.0
    %2713 = vmatpush1.msra.mxu0 0.0
    %2714 = vmatprep.subr.mxu0 0.0
    %2715 = vmatpush1.msra.mxu0 0.0
    %2716 = vmatprep.subr.mxu0 0.0
    %2717 = vmatpush1.msra.mxu0 0.0
    %2718 = vmatprep.subr.mxu0 0.0
    %2719 = vmatpush1.msra.mxu0 0.0
    %2720 = vmatprep.subr.mxu0 0.0
    %2721 = vmatpush1.msra.mxu0 0.0
    %2722 = vmatprep.subr.mxu0 0.0
    %2723 = vmatpush1.msra.mxu0 0.0
    %2724 = vmatprep.subr.mxu0 0.0
    %2725 = vmatpush1.msra.mxu0 0.0
    %2726 = vmatprep.subr.mxu0 0.0
    %2727 = vmatpush1.msra.mxu0 %v539
    %2728 = vmatprep.subr.mxu0 0.0
    %2729 = vmatpush1.msra.mxu0 %v538
    %2730 = vmatprep.subr.mxu0 0.0
    %2731 = vmatpush1.msra.mxu0 %v537
    %2732 = vmatprep.subr.mxu0 0.0
    %2733 = vmatpush1.msra.mxu0 %v536
    %2734 = vmatprep.subr.mxu0 0.0
    %2735 = vmatpush2.msra.mxu0 0.0
    %2736 = vmatprep.subr.mxu0 0.0
    %2737 = vmatpush2.msra.mxu0 0.0
    %2738 = vmatprep.subr.mxu0 0.0
    %2739 = vmatpush2.msra.mxu0 0.0
    %2740 = vmatprep.subr.mxu0 0.0
    %2741 = vmatpush2.msra.mxu0 0.0
    %2742 = vmatprep.subr.mxu0 0.0
    %2743 = vmatpush2.msra.mxu0 0.0
    %2744 = vmatprep.subr.mxu0 0.0
    %2745 = vmatpush2.msra.mxu0 0.0
    %2746 = vmatprep.subr.mxu0 0.0
    %2747 = vmatpush2.msra.mxu0 0.0
    %2748 = vmatprep.subr.mxu0 0.0
    %2749 = vmatpush2.msra.mxu0 0.0
    %2750 = vmatprep.subr.mxu0 0.0
    %2751 = vmatpush2.msra.mxu0 0.0
    %2752 = vmatprep.subr.mxu0 0.0
    %2753 = vmatpush2.msra.mxu0 0.0
    %2754 = vmatprep.subr.mxu0 0.0
    %2755 = vmatpush2.msra.mxu0 0.0
    %2756 = vmatprep.subr.mxu0 0.0
    %2757 = vmatpush2.msra.mxu0 0.0
    %2758 = vmatprep.subr.mxu0 0.0
    %2759 = vmatpush2.msra.mxu0 0.0
    %2760 = vmatprep.subr.mxu0 0.0
    %2761 = vmatpush2.msra.mxu0 0.0
    %2762 = vmatprep.subr.mxu0 0.0
    %2763 = vmatpush2.msra.mxu0 0.0
    %2764 = vmatprep.subr.mxu0 0.0
    %2765 = vmatpush2.msra.mxu0 0.0
    %2766 = vmatprep.mubr.f32.mxu0 0.0
    %2767 = vmatmul.mubr.f32.gmra.mxu0 %v2700
    %v2768 = vpop.f32.mrf.mxu0
    %v2769 = vadd.f32 0.0, %v2768
    %v2770 = vpop.f32.mrf.mxu0
    %2771 = vdwg.mxu0
    %v2772 = vadd.f32 %v2769, %v2687
    %v2773 = vxor.u32 %v2772, 2147483648
    %v2774 = vmul.f32 %v2773, 1.442695
    %v2775 = vpow.pop %v2774
    %v2776 = vadd.f32 %v2775, 1.0
    %v2777 = vrcp.pop %v2776
    %v2778 = vmul.f32 1.0, %v2777
    %v2779 = vtanh.pop %v2772
    %v2780 = vmul.f32 %v2778, %v2635
    %2782 = vrot.lane.b32.xlu0 %v2779, 80
    %v2783 = vpop.permute.xlu0 %2782
    %v2785 = vmul.f32 %v2778, %v2783
    %2787 = vrot.lane.b32.xlu0 %v2785, 16
    %v2788 = vpop.permute.xlu0 %2787
    %v2790 = vadd.f32 %v2780, %v2788
    %v2791 = vtanh.pop %v2790
    %2793 = vrot.lane.b32.xlu0 %v2791, 16
    %v2794 = vpop.permute.xlu0 %2793
    %v2796 = vmul.f32 %v2778, %v2794
    %2798 = vrot.lane.b32.xlu0 %v2689, 64
    %v2799 = vpop.permute.xlu0 %2798
    %v2801 = vadd.f32 %v2769, %v2799
    %v2802 = vxor.u32 %v2801, 2147483648
    %v2803 = vmul.f32 %v2802, 1.442695
    %v2804 = vpow.pop %v2803
    %v2805 = vadd.f32 %v2804, 1.0
    %v2806 = vrcp.pop %v2805
    %v2807 = vmul.f32 1.0, %v2806
    %v2808 = vtanh.pop %v2801
    %v2809 = vmul.f32 %v2807, %v2685
    %2811 = vrot.lane.b32.xlu0 %v2808, 80
    %v2812 = vpop.permute.xlu0 %2811
    %v2814 = vmul.f32 %v2807, %v2812
    %2816 = vrot.lane.b32.xlu0 %v2814, 16
    %v2817 = vpop.permute.xlu0 %2816
    %v2819 = vadd.f32 %v2809, %v2817
    %v2820 = vtanh.pop %v2819
    %2822 = vrot.lane.b32.xlu0 %v2820, 16
    %v2823 = vpop.permute.xlu0 %2822
    %v2825 = vmul.f32 %v2807, %v2823
    %vm2826 = vcmp.gt.s32.totalorder %v519, 3
    %v2827 = vsel %vm2826, 1, 0
    %2828 = vset.pattern.permute.xlu0 0
    %2829 = vperm.xlu0 %2828, %v2827
    %v2830 = vpop.permute.xlu0 %2829
    %vm2831 = vcmp.eq.s32.totalorder %v2830, 1
    %v2832 = vsel %vm2831, %v2796, %v2677
    %vm2833 = vcmp.gt.s32.totalorder %v519, 4
    %v2834 = vsel %vm2833, 1, 0
    %2835 = vset.pattern.permute.xlu0 0
    %2836 = vperm.xlu0 %2835, %v2834
    %v2837 = vpop.permute.xlu0 %2836
    %vm2838 = vcmp.eq.s32.totalorder %v2837, 1
    %v2839 = vsel %vm2838, %v2825, 0.0
    %v2840 = vsel %vm2838, %v2819, 0.0
    %s2841 = scalar_lea.vmem [#allocation6], 32
    %v2842 = vld [vmem:[%s2841] sm:$0xff]
    %s2843 = scalar_lea.vmem [#allocation7], 24
    %v2844 = vld [vmem:[%s2843] sm:$0xff]
    %2846 = vrot.lane.b32.xlu0 %v2796, 96
    %v2847 = vpop.permute.xlu0 %2846
    %2850 = vrot.lane.b32.xlu0 %v2839, 48
    %v2851 = vpop.permute.xlu0 %2850
    %v2853 = vsel %vm2387, %v2847, %v2851
    %v2855 = vsel %vm671, %v2853, 0
    %2857 = vmatprep.subr.mxu0 0.0
    %2858 = vmatpush1.msra.mxu0 0.0
    %2859 = vmatprep.subr.mxu0 0.0
    %2860 = vmatpush1.msra.mxu0 0.0
    %2861 = vmatprep.subr.mxu0 0.0
    %2862 = vmatpush1.msra.mxu0 0.0
    %2863 = vmatprep.subr.mxu0 0.0
    %2864 = vmatpush1.msra.mxu0 0.0
    %2865 = vmatprep.subr.mxu0 0.0
    %2866 = vmatpush1.msra.mxu0 0.0
    %2867 = vmatprep.subr.mxu0 0.0
    %2868 = vmatpush1.msra.mxu0 0.0
    %2869 = vmatprep.subr.mxu0 0.0
    %2870 = vmatpush1.msra.mxu0 0.0
    %2871 = vmatprep.subr.mxu0 0.0
    %2872 = vmatpush1.msra.mxu0 0.0
    %2873 = vmatprep.subr.mxu0 0.0
    %2874 = vmatpush1.msra.mxu0 0.0
    %2875 = vmatprep.subr.mxu0 0.0
    %2876 = vmatpush1.msra.mxu0 0.0
    %2877 = vmatprep.subr.mxu0 0.0
    %2878 = vmatpush1.msra.mxu0 0.0
    %2879 = vmatprep.subr.mxu0 0.0
    %2880 = vmatpush1.msra.mxu0 0.0
    %2881 = vmatprep.subr.mxu0 0.0
    %2882 = vmatpush1.msra.mxu0 %v539
    %2883 = vmatprep.subr.mxu0 0.0
    %2884 = vmatpush1.msra.mxu0 %v538
    %2885 = vmatprep.subr.mxu0 0.0
    %2886 = vmatpush1.msra.mxu0 %v537
    %2887 = vmatprep.subr.mxu0 0.0
    %2888 = vmatpush1.msra.mxu0 %v536
    %2889 = vmatprep.subr.mxu0 0.0
    %2890 = vmatpush2.msra.mxu0 0.0
    %2891 = vmatprep.subr.mxu0 0.0
    %2892 = vmatpush2.msra.mxu0 0.0
    %2893 = vmatprep.subr.mxu0 0.0
    %2894 = vmatpush2.msra.mxu0 0.0
    %2895 = vmatprep.subr.mxu0 0.0
    %2896 = vmatpush2.msra.mxu0 0.0
    %2897 = vmatprep.subr.mxu0 0.0
    %2898 = vmatpush2.msra.mxu0 0.0
    %2899 = vmatprep.subr.mxu0 0.0
    %2900 = vmatpush2.msra.mxu0 0.0
    %2901 = vmatprep.subr.mxu0 0.0
    %2902 = vmatpush2.msra.mxu0 0.0
    %2903 = vmatprep.subr.mxu0 0.0
    %2904 = vmatpush2.msra.mxu0 0.0
    %2905 = vmatprep.subr.mxu0 0.0
    %2906 = vmatpush2.msra.mxu0 0.0
    %2907 = vmatprep.subr.mxu0 0.0
    %2908 = vmatpush2.msra.mxu0 0.0
    %2909 = vmatprep.subr.mxu0 0.0
    %2910 = vmatpush2.msra.mxu0 0.0
    %2911 = vmatprep.subr.mxu0 0.0
    %2912 = vmatpush2.msra.mxu0 0.0
    %2913 = vmatprep.subr.mxu0 0.0
    %2914 = vmatpush2.msra.mxu0 0.0
    %2915 = vmatprep.subr.mxu0 0.0
    %2916 = vmatpush2.msra.mxu0 0.0
    %2917 = vmatprep.subr.mxu0 0.0
    %2918 = vmatpush2.msra.mxu0 0.0
    %2919 = vmatprep.subr.mxu0 0.0
    %2920 = vmatpush2.msra.mxu0 0.0
    %2921 = vmatprep.mubr.f32.mxu0 0.0
    %2922 = vmatmul.mubr.f32.gmra.mxu0 %v2855
    %v2923 = vpop.f32.mrf.mxu0
    %v2924 = vadd.f32 0.0, %v2923
    %v2925 = vpop.f32.mrf.mxu0
    %2926 = vdwg.mxu0
    %v2927 = vadd.f32 %v2924, %v2842
    %v2928 = vxor.u32 %v2927, 2147483648
    %v2929 = vmul.f32 %v2928, 1.442695
    %v2930 = vpow.pop %v2929
    %v2931 = vadd.f32 %v2930, 1.0
    %v2932 = vrcp.pop %v2931
    %v2933 = vmul.f32 1.0, %v2932
    %v2934 = vtanh.pop %v2927
    %v2935 = vmul.f32 %v2933, %v2790
    %2937 = vrot.lane.b32.xlu0 %v2934, 80
    %v2938 = vpop.permute.xlu0 %2937
    %v2940 = vmul.f32 %v2933, %v2938
    %2942 = vrot.lane.b32.xlu0 %v2940, 16
    %v2943 = vpop.permute.xlu0 %2942
    %v2945 = vadd.f32 %v2935, %v2943
    %v2946 = vtanh.pop %v2945
    %2948 = vrot.lane.b32.xlu0 %v2946, 16
    %v2949 = vpop.permute.xlu0 %2948
    %v2951 = vmul.f32 %v2933, %v2949
    %2953 = vrot.lane.b32.xlu0 %v2844, 64
    %v2954 = vpop.permute.xlu0 %2953
    %v2956 = vadd.f32 %v2924, %v2954
    %v2957 = vxor.u32 %v2956, 2147483648
    %v2958 = vmul.f32 %v2957, 1.442695
    %v2959 = vpow.pop %v2958
    %v2960 = vadd.f32 %v2959, 1.0
    %v2961 = vrcp.pop %v2960
    %v2962 = vmul.f32 1.0, %v2961
    %v2963 = vtanh.pop %v2956
    %v2964 = vmul.f32 %v2962, %v2840
    %2966 = vrot.lane.b32.xlu0 %v2963, 80
    %v2967 = vpop.permute.xlu0 %2966
    %v2969 = vmul.f32 %v2962, %v2967
    %2971 = vrot.lane.b32.xlu0 %v2969, 16
    %v2972 = vpop.permute.xlu0 %2971
    %v2974 = vadd.f32 %v2964, %v2972
    %v2975 = vtanh.pop %v2974
    %2977 = vrot.lane.b32.xlu0 %v2975, 16
    %v2978 = vpop.permute.xlu0 %2977
    %v2980 = vmul.f32 %v2962, %v2978
    %v2981 = vsel %vm2838, %v2951, %v2832
    %v2982 = vsel %vm2831, %v2980, 0.0
    %v2983 = vsel %vm2831, %v2974, 0.0
    %s2984 = scalar_lea.vmem [#allocation6], 40
    %v2985 = vld [vmem:[%s2984] sm:$0xff]
    %s2986 = scalar_lea.vmem [#allocation7], 16
    %v2987 = vld [vmem:[%s2986] sm:$0xff]
    %2989 = vrot.lane.b32.xlu0 %v2951, 96
    %v2990 = vpop.permute.xlu0 %2989
    %2993 = vrot.lane.b32.xlu0 %v2982, 48
    %v2994 = vpop.permute.xlu0 %2993
    %v2996 = vsel %vm2387, %v2990, %v2994
    %v2998 = vsel %vm671, %v2996, 0
    %3000 = vmatprep.subr.mxu0 0.0
    %3001 = vmatpush1.msra.mxu0 0.0
    %3002 = vmatprep.subr.mxu0 0.0
    %3003 = vmatpush1.msra.mxu0 0.0
    %3004 = vmatprep.subr.mxu0 0.0
    %3005 = vmatpush1.msra.mxu0 0.0
    %3006 = vmatprep.subr.mxu0 0.0
    %3007 = vmatpush1.msra.mxu0 0.0
    %3008 = vmatprep.subr.mxu0 0.0
    %3009 = vmatpush1.msra.mxu0 0.0
    %3010 = vmatprep.subr.mxu0 0.0
    %3011 = vmatpush1.msra.mxu0 0.0
    %3012 = vmatprep.subr.mxu0 0.0
    %3013 = vmatpush1.msra.mxu0 0.0
    %3014 = vmatprep.subr.mxu0 0.0
    %3015 = vmatpush1.msra.mxu0 0.0
    %3016 = vmatprep.subr.mxu0 0.0
    %3017 = vmatpush1.msra.mxu0 0.0
    %3018 = vmatprep.subr.mxu0 0.0
    %3019 = vmatpush1.msra.mxu0 0.0
    %3020 = vmatprep.subr.mxu0 0.0
    %3021 = vmatpush1.msra.mxu0 0.0
    %3022 = vmatprep.subr.mxu0 0.0
    %3023 = vmatpush1.msra.mxu0 0.0
    %3024 = vmatprep.subr.mxu0 0.0
    %3025 = vmatpush1.msra.mxu0 %v539
    %3026 = vmatprep.subr.mxu0 0.0
    %3027 = vmatpush1.msra.mxu0 %v538
    %3028 = vmatprep.subr.mxu0 0.0
    %3029 = vmatpush1.msra.mxu0 %v537
    %3030 = vmatprep.subr.mxu0 0.0
    %3031 = vmatpush1.msra.mxu0 %v536
    %3032 = vmatprep.subr.mxu0 0.0
    %3033 = vmatpush2.msra.mxu0 0.0
    %3034 = vmatprep.subr.mxu0 0.0
    %3035 = vmatpush2.msra.mxu0 0.0
    %3036 = vmatprep.subr.mxu0 0.0
    %3037 = vmatpush2.msra.mxu0 0.0
    %3038 = vmatprep.subr.mxu0 0.0
    %3039 = vmatpush2.msra.mxu0 0.0
    %3040 = vmatprep.subr.mxu0 0.0
    %3041 = vmatpush2.msra.mxu0 0.0
    %3042 = vmatprep.subr.mxu0 0.0
    %3043 = vmatpush2.msra.mxu0 0.0
    %3044 = vmatprep.subr.mxu0 0.0
    %3045 = vmatpush2.msra.mxu0 0.0
    %3046 = vmatprep.subr.mxu0 0.0
    %3047 = vmatpush2.msra.mxu0 0.0
    %3048 = vmatprep.subr.mxu0 0.0
    %3049 = vmatpush2.msra.mxu0 0.0
    %3050 = vmatprep.subr.mxu0 0.0
    %3051 = vmatpush2.msra.mxu0 0.0
    %3052 = vmatprep.subr.mxu0 0.0
    %3053 = vmatpush2.msra.mxu0 0.0
    %3054 = vmatprep.subr.mxu0 0.0
    %3055 = vmatpush2.msra.mxu0 0.0
    %3056 = vmatprep.subr.mxu0 0.0
    %3057 = vmatpush2.msra.mxu0 0.0
    %3058 = vmatprep.subr.mxu0 0.0
    %3059 = vmatpush2.msra.mxu0 0.0
    %3060 = vmatprep.subr.mxu0 0.0
    %3061 = vmatpush2.msra.mxu0 0.0
    %3062 = vmatprep.subr.mxu0 0.0
    %3063 = vmatpush2.msra.mxu0 0.0
    %3064 = vmatprep.mubr.f32.mxu0 0.0
    %3065 = vmatmul.mubr.f32.gmra.mxu0 %v2998
    %v3066 = vpop.f32.mrf.mxu0
    %v3067 = vadd.f32 0.0, %v3066
    %v3068 = vpop.f32.mrf.mxu0
    %3069 = vdwg.mxu0
    %v3070 = vadd.f32 %v3067, %v2985
    %v3071 = vxor.u32 %v3070, 2147483648
    %v3072 = vmul.f32 %v3071, 1.442695
    %v3073 = vpow.pop %v3072
    %v3074 = vadd.f32 %v3073, 1.0
    %v3075 = vrcp.pop %v3074
    %v3076 = vmul.f32 1.0, %v3075
    %v3077 = vtanh.pop %v3070
    %v3078 = vmul.f32 %v3076, %v2945
    %3080 = vrot.lane.b32.xlu0 %v3077, 80
    %v3081 = vpop.permute.xlu0 %3080
    %v3083 = vmul.f32 %v3076, %v3081
    %3085 = vrot.lane.b32.xlu0 %v3083, 16
    %v3086 = vpop.permute.xlu0 %3085
    %v3088 = vadd.f32 %v3078, %v3086
    %v3089 = vtanh.pop %v3088
    %3091 = vrot.lane.b32.xlu0 %v3089, 16
    %v3092 = vpop.permute.xlu0 %3091
    %v3094 = vmul.f32 %v3076, %v3092
    %3096 = vrot.lane.b32.xlu0 %v2987, 64
    %v3097 = vpop.permute.xlu0 %3096
    %v3099 = vadd.f32 %v3067, %v3097
    %v3100 = vxor.u32 %v3099, 2147483648
    %v3101 = vmul.f32 %v3100, 1.442695
    %v3102 = vpow.pop %v3101
    %v3103 = vadd.f32 %v3102, 1.0
    %v3104 = vrcp.pop %v3103
    %v3105 = vmul.f32 1.0, %v3104
    %v3106 = vtanh.pop %v3099
    %v3107 = vmul.f32 %v3105, %v2983
    %3109 = vrot.lane.b32.xlu0 %v3106, 80
    %v3110 = vpop.permute.xlu0 %3109
    %v3112 = vmul.f32 %v3105, %v3110
    %3114 = vrot.lane.b32.xlu0 %v3112, 16
    %v3115 = vpop.permute.xlu0 %3114
    %v3117 = vadd.f32 %v3107, %v3115
    %v3118 = vtanh.pop %v3117
    %3120 = vrot.lane.b32.xlu0 %v3118, 16
    %v3121 = vpop.permute.xlu0 %3120
    %v3123 = vmul.f32 %v3105, %v3121
    %v3124 = vsel %vm2683, %v3094, %v2981
    %v3125 = vsel %vm2676, %v3123, 0.0
    %v3126 = vsel %vm2676, %v3117, 0.0
    %s3127 = scalar_lea.vmem [#allocation6], 48
    %v3128 = vld [vmem:[%s3127] sm:$0xff]
    %s3129 = scalar_lea.vmem [#allocation7], 8
    %v3130 = vld [vmem:[%s3129] sm:$0xff]
    %3132 = vrot.lane.b32.xlu0 %v3094, 96
    %v3133 = vpop.permute.xlu0 %3132
    %3136 = vrot.lane.b32.xlu0 %v3125, 48
    %v3137 = vpop.permute.xlu0 %3136
    %v3139 = vsel %vm2387, %v3133, %v3137
    %v3141 = vsel %vm671, %v3139, 0
    %3143 = vmatprep.subr.mxu0 0.0
    %3144 = vmatpush1.msra.mxu0 0.0
    %3145 = vmatprep.subr.mxu0 0.0
    %3146 = vmatpush1.msra.mxu0 0.0
    %3147 = vmatprep.subr.mxu0 0.0
    %3148 = vmatpush1.msra.mxu0 0.0
    %3149 = vmatprep.subr.mxu0 0.0
    %3150 = vmatpush1.msra.mxu0 0.0
    %3151 = vmatprep.subr.mxu0 0.0
    %3152 = vmatpush1.msra.mxu0 0.0
    %3153 = vmatprep.subr.mxu0 0.0
    %3154 = vmatpush1.msra.mxu0 0.0
    %3155 = vmatprep.subr.mxu0 0.0
    %3156 = vmatpush1.msra.mxu0 0.0
    %3157 = vmatprep.subr.mxu0 0.0
    %3158 = vmatpush1.msra.mxu0 0.0
    %3159 = vmatprep.subr.mxu0 0.0
    %3160 = vmatpush1.msra.mxu0 0.0
    %3161 = vmatprep.subr.mxu0 0.0
    %3162 = vmatpush1.msra.mxu0 0.0
    %3163 = vmatprep.subr.mxu0 0.0
    %3164 = vmatpush1.msra.mxu0 0.0
    %3165 = vmatprep.subr.mxu0 0.0
    %3166 = vmatpush1.msra.mxu0 0.0
    %3167 = vmatprep.subr.mxu0 0.0
    %3168 = vmatpush1.msra.mxu0 %v539
    %3169 = vmatprep.subr.mxu0 0.0
    %3170 = vmatpush1.msra.mxu0 %v538
    %3171 = vmatprep.subr.mxu0 0.0
    %3172 = vmatpush1.msra.mxu0 %v537
    %3173 = vmatprep.subr.mxu0 0.0
    %3174 = vmatpush1.msra.mxu0 %v536
    %3175 = vmatprep.subr.mxu0 0.0
    %3176 = vmatpush2.msra.mxu0 0.0
    %3177 = vmatprep.subr.mxu0 0.0
    %3178 = vmatpush2.msra.mxu0 0.0
    %3179 = vmatprep.subr.mxu0 0.0
    %3180 = vmatpush2.msra.mxu0 0.0
    %3181 = vmatprep.subr.mxu0 0.0
    %3182 = vmatpush2.msra.mxu0 0.0
    %3183 = vmatprep.subr.mxu0 0.0
    %3184 = vmatpush2.msra.mxu0 0.0
    %3185 = vmatprep.subr.mxu0 0.0
    %3186 = vmatpush2.msra.mxu0 0.0
    %3187 = vmatprep.subr.mxu0 0.0
    %3188 = vmatpush2.msra.mxu0 0.0
    %3189 = vmatprep.subr.mxu0 0.0
    %3190 = vmatpush2.msra.mxu0 0.0
    %3191 = vmatprep.subr.mxu0 0.0
    %3192 = vmatpush2.msra.mxu0 0.0
    %3193 = vmatprep.subr.mxu0 0.0
    %3194 = vmatpush2.msra.mxu0 0.0
    %3195 = vmatprep.subr.mxu0 0.0
    %3196 = vmatpush2.msra.mxu0 0.0
    %3197 = vmatprep.subr.mxu0 0.0
    %3198 = vmatpush2.msra.mxu0 0.0
    %3199 = vmatprep.subr.mxu0 0.0
    %3200 = vmatpush2.msra.mxu0 0.0
    %3201 = vmatprep.subr.mxu0 0.0
    %3202 = vmatpush2.msra.mxu0 0.0
    %3203 = vmatprep.subr.mxu0 0.0
    %3204 = vmatpush2.msra.mxu0 0.0
    %3205 = vmatprep.subr.mxu0 0.0
    %3206 = vmatpush2.msra.mxu0 0.0
    %3207 = vmatprep.mubr.f32.mxu0 0.0
    %3208 = vmatmul.mubr.f32.gmra.mxu0 %v3141
    %v3209 = vpop.f32.mrf.mxu0
    %v3210 = vadd.f32 0.0, %v3209
    %v3211 = vpop.f32.mrf.mxu0
    %3212 = vdwg.mxu0
    %v3213 = vadd.f32 %v3210, %v3128
    %v3214 = vxor.u32 %v3213, 2147483648
    %v3215 = vmul.f32 %v3214, 1.442695
    %v3216 = vpow.pop %v3215
    %v3217 = vadd.f32 %v3216, 1.0
    %v3218 = vrcp.pop %v3217
    %v3219 = vmul.f32 1.0, %v3218
    %v3220 = vtanh.pop %v3213
    %v3221 = vmul.f32 %v3219, %v3088
    %3223 = vrot.lane.b32.xlu0 %v3220, 80
    %v3224 = vpop.permute.xlu0 %3223
    %v3226 = vmul.f32 %v3219, %v3224
    %3228 = vrot.lane.b32.xlu0 %v3226, 16
    %v3229 = vpop.permute.xlu0 %3228
    %v3231 = vadd.f32 %v3221, %v3229
    %v3232 = vtanh.pop %v3231
    %3234 = vrot.lane.b32.xlu0 %v3232, 16
    %v3235 = vpop.permute.xlu0 %3234
    %v3237 = vmul.f32 %v3219, %v3235
    %3239 = vrot.lane.b32.xlu0 %v3130, 64
    %v3240 = vpop.permute.xlu0 %3239
    %v3242 = vadd.f32 %v3210, %v3240
    %v3243 = vxor.u32 %v3242, 2147483648
    %v3244 = vmul.f32 %v3243, 1.442695
    %v3245 = vpow.pop %v3244
    %v3246 = vadd.f32 %v3245, 1.0
    %v3247 = vrcp.pop %v3246
    %v3248 = vmul.f32 1.0, %v3247
    %v3249 = vtanh.pop %v3242
    %v3250 = vmul.f32 %v3248, %v3126
    %3252 = vrot.lane.b32.xlu0 %v3249, 80
    %v3253 = vpop.permute.xlu0 %3252
    %v3255 = vmul.f32 %v3248, %v3253
    %3257 = vrot.lane.b32.xlu0 %v3255, 16
    %v3258 = vpop.permute.xlu0 %3257
    %v3260 = vadd.f32 %v3250, %v3258
    %v3261 = vtanh.pop %v3260
    %3263 = vrot.lane.b32.xlu0 %v3261, 16
    %v3264 = vpop.permute.xlu0 %3263
    %v3266 = vmul.f32 %v3248, %v3264
    %v3267 = vsel %vm2528, %v3237, %v3124
    %v3268 = vsel %vm2521, %v3266, 0.0
    %v3269 = vsel %vm2521, %v3260, 0.0
    %s3270 = scalar_lea.vmem [#allocation6], 56
    %v3271 = vld [vmem:[%s3270] sm:$0xff]
    %v3272 = vld [vmem:[#allocation7] sm:$0xff]
    %3274 = vrot.lane.b32.xlu0 %v3237, 96
    %v3275 = vpop.permute.xlu0 %3274
    %3278 = vrot.lane.b32.xlu0 %v3268, 48
    %v3279 = vpop.permute.xlu0 %3278
    %v3281 = vsel %vm2387, %v3275, %v3279
    %v3283 = vsel %vm671, %v3281, 0
    %3285 = vmatprep.subr.mxu0 0.0
    %3286 = vmatpush1.msra.mxu0 0.0
    %3287 = vmatprep.subr.mxu0 0.0
    %3288 = vmatpush1.msra.mxu0 0.0
    %3289 = vmatprep.subr.mxu0 0.0
    %3290 = vmatpush1.msra.mxu0 0.0
    %3291 = vmatprep.subr.mxu0 0.0
    %3292 = vmatpush1.msra.mxu0 0.0
    %3293 = vmatprep.subr.mxu0 0.0
    %3294 = vmatpush1.msra.mxu0 0.0
    %3295 = vmatprep.subr.mxu0 0.0
    %3296 = vmatpush1.msra.mxu0 0.0
    %3297 = vmatprep.subr.mxu0 0.0
    %3298 = vmatpush1.msra.mxu0 0.0
    %3299 = vmatprep.subr.mxu0 0.0
    %3300 = vmatpush1.msra.mxu0 0.0
    %3301 = vmatprep.subr.mxu0 0.0
    %3302 = vmatpush1.msra.mxu0 0.0
    %3303 = vmatprep.subr.mxu0 0.0
    %3304 = vmatpush1.msra.mxu0 0.0
    %3305 = vmatprep.subr.mxu0 0.0
    %3306 = vmatpush1.msra.mxu0 0.0
    %3307 = vmatprep.subr.mxu0 0.0
    %3308 = vmatpush1.msra.mxu0 0.0
    %3309 = vmatprep.subr.mxu0 0.0
    %3310 = vmatpush1.msra.mxu0 %v539
    %3311 = vmatprep.subr.mxu0 0.0
    %3312 = vmatpush1.msra.mxu0 %v538
    %3313 = vmatprep.subr.mxu0 0.0
    %3314 = vmatpush1.msra.mxu0 %v537
    %3315 = vmatprep.subr.mxu0 0.0
    %3316 = vmatpush1.msra.mxu0 %v536
    %3317 = vmatprep.subr.mxu0 0.0
    %3318 = vmatpush2.msra.mxu0 0.0
    %3319 = vmatprep.subr.mxu0 0.0
    %3320 = vmatpush2.msra.mxu0 0.0
    %3321 = vmatprep.subr.mxu0 0.0
    %3322 = vmatpush2.msra.mxu0 0.0
    %3323 = vmatprep.subr.mxu0 0.0
    %3324 = vmatpush2.msra.mxu0 0.0
    %3325 = vmatprep.subr.mxu0 0.0
    %3326 = vmatpush2.msra.mxu0 0.0
    %3327 = vmatprep.subr.mxu0 0.0
    %3328 = vmatpush2.msra.mxu0 0.0
    %3329 = vmatprep.subr.mxu0 0.0
    %3330 = vmatpush2.msra.mxu0 0.0
    %3331 = vmatprep.subr.mxu0 0.0
    %3332 = vmatpush2.msra.mxu0 0.0
    %3333 = vmatprep.subr.mxu0 0.0
    %3334 = vmatpush2.msra.mxu0 0.0
    %3335 = vmatprep.subr.mxu0 0.0
    %3336 = vmatpush2.msra.mxu0 0.0
    %3337 = vmatprep.subr.mxu0 0.0
    %3338 = vmatpush2.msra.mxu0 0.0
    %3339 = vmatprep.subr.mxu0 0.0
    %3340 = vmatpush2.msra.mxu0 0.0
    %3341 = vmatprep.subr.mxu0 0.0
    %3342 = vmatpush2.msra.mxu0 0.0
    %3343 = vmatprep.subr.mxu0 0.0
    %3344 = vmatpush2.msra.mxu0 0.0
    %3345 = vmatprep.subr.mxu0 0.0
    %3346 = vmatpush2.msra.mxu0 0.0
    %3347 = vmatprep.subr.mxu0 0.0
    %3348 = vmatpush2.msra.mxu0 0.0
    %3349 = vmatprep.mubr.f32.mxu0 0.0
    %3350 = vmatmul.mubr.f32.gmra.mxu0 %v3283
    %v3351 = vpop.f32.mrf.mxu0
    %v3352 = vadd.f32 0.0, %v3351
    %v3353 = vpop.f32.mrf.mxu0
    %3354 = vdwg.mxu0
    %v3355 = vadd.f32 %v3352, %v3271
    %v3356 = vxor.u32 %v3355, 2147483648
    %v3357 = vmul.f32 %v3356, 1.442695
    %v3358 = vpow.pop %v3357
    %v3359 = vadd.f32 %v3358, 1.0
    %v3360 = vrcp.pop %v3359
    %v3361 = vmul.f32 1.0, %v3360
    %v3362 = vtanh.pop %v3355
    %v3363 = vmul.f32 %v3361, %v3231
    %3365 = vrot.lane.b32.xlu0 %v3362, 80
    %v3366 = vpop.permute.xlu0 %3365
    %v3368 = vmul.f32 %v3361, %v3366
    %3370 = vrot.lane.b32.xlu0 %v3368, 16
    %v3371 = vpop.permute.xlu0 %3370
    %v3373 = vadd.f32 %v3363, %v3371
    %v3374 = vtanh.pop %v3373
    %3376 = vrot.lane.b32.xlu0 %v3374, 16
    %v3377 = vpop.permute.xlu0 %3376
    %v3379 = vmul.f32 %v3361, %v3377
    %3381 = vrot.lane.b32.xlu0 %v3272, 64
    %v3382 = vpop.permute.xlu0 %3381
    %v3384 = vadd.f32 %v3352, %v3382
    %v3385 = vxor.u32 %v3384, 2147483648
    %v3386 = vmul.f32 %v3385, 1.442695
    %v3387 = vpow.pop %v3386
    %v3388 = vadd.f32 %v3387, 1.0
    %v3389 = vrcp.pop %v3388
    %v3390 = vmul.f32 1.0, %v3389
    %v3391 = vtanh.pop %v3384
    %v3392 = vmul.f32 %v3390, %v3269
    %3394 = vrot.lane.b32.xlu0 %v3391, 80
    %v3395 = vpop.permute.xlu0 %3394
    %v3397 = vmul.f32 %v3390, %v3395
    %3399 = vrot.lane.b32.xlu0 %v3397, 16
    %v3400 = vpop.permute.xlu0 %3399
    %v3402 = vadd.f32 %v3392, %v3400
    %v3403 = vtanh.pop %v3402
    %3405 = vrot.lane.b32.xlu0 %v3403, 16
    %v3406 = vpop.permute.xlu0 %3405
    %v3408 = vmul.f32 %v3390, %v3406
    %v3409 = vsel %vm2372, %v3379, %v3267
    %v3410 = vsel %vm2365, %v3408, 0.0
    %v3411 = vld [vmem:[%s14] sm:$0xff]
    %v3412 = vld [vmem:[%s14 + $0x8] sm:$0xff]
    %v3413 = vld [vmem:[#allocation27] sm:$0xff]
    %v3414 = vld [vmem:[#allocation27 + $0x8] sm:$0xff]
    %3416 = vrot.lane.b32.xlu0 %v3410, 32
    %v3417 = vpop.permute.xlu0 %3416
    %v3418 = vsel %vm2387, %v3417, 0
    %3420 = vmatprep.subr.mxu0 0.0
    %3421 = vmatpush1.msra.mxu0 0.0
    %3422 = vmatprep.subr.mxu0 0.0
    %3423 = vmatpush1.msra.mxu0 0.0
    %3424 = vmatprep.subr.mxu0 0.0
    %3425 = vmatpush1.msra.mxu0 0.0
    %3426 = vmatprep.subr.mxu0 0.0
    %3427 = vmatpush1.msra.mxu0 0.0
    %3428 = vmatprep.subr.mxu0 0.0
    %3429 = vmatpush1.msra.mxu0 0.0
    %3430 = vmatprep.subr.mxu0 0.0
    %3431 = vmatpush1.msra.mxu0 0.0
    %3432 = vmatprep.subr.mxu0 0.0
    %3433 = vmatpush1.msra.mxu0 0.0
    %3434 = vmatprep.subr.mxu0 0.0
    %3435 = vmatpush1.msra.mxu0 0.0
    %3436 = vmatprep.subr.mxu0 0.0
    %3437 = vmatpush1.msra.mxu0 0.0
    %3438 = vmatprep.subr.mxu0 0.0
    %3439 = vmatpush1.msra.mxu0 0.0
    %3440 = vmatprep.subr.mxu0 0.0
    %3441 = vmatpush1.msra.mxu0 0.0
    %3442 = vmatprep.subr.mxu0 0.0
    %3443 = vmatpush1.msra.mxu0 0.0
    %3444 = vmatprep.subr.mxu0 0.0
    %3445 = vmatpush1.msra.mxu0 0.0
    %3446 = vmatprep.subr.mxu0 0.0
    %3447 = vmatpush1.msra.mxu0 0.0
    %3448 = vmatprep.subr.mxu0 0.0
    %3449 = vmatpush1.msra.mxu0 %v3414
    %3450 = vmatprep.subr.mxu0 0.0
    %3451 = vmatpush1.msra.mxu0 %v3413
    %3452 = vmatprep.subr.mxu0 0.0
    %3453 = vmatpush2.msra.mxu0 0.0
    %3454 = vmatprep.subr.mxu0 0.0
    %3455 = vmatpush2.msra.mxu0 0.0
    %3456 = vmatprep.subr.mxu0 0.0
    %3457 = vmatpush2.msra.mxu0 0.0
    %3458 = vmatprep.subr.mxu0 0.0
    %3459 = vmatpush2.msra.mxu0 0.0
    %3460 = vmatprep.subr.mxu0 0.0
    %3461 = vmatpush2.msra.mxu0 0.0
    %3462 = vmatprep.subr.mxu0 0.0
    %3463 = vmatpush2.msra.mxu0 0.0
    %3464 = vmatprep.subr.mxu0 0.0
    %3465 = vmatpush2.msra.mxu0 0.0
    %3466 = vmatprep.subr.mxu0 0.0
    %3467 = vmatpush2.msra.mxu0 0.0
    %3468 = vmatprep.subr.mxu0 0.0
    %3469 = vmatpush2.msra.mxu0 0.0
    %3470 = vmatprep.subr.mxu0 0.0
    %3471 = vmatpush2.msra.mxu0 0.0
    %3472 = vmatprep.subr.mxu0 0.0
    %3473 = vmatpush2.msra.mxu0 0.0
    %3474 = vmatprep.subr.mxu0 0.0
    %3475 = vmatpush2.msra.mxu0 0.0
    %3476 = vmatprep.subr.mxu0 0.0
    %3477 = vmatpush2.msra.mxu0 0.0
    %3478 = vmatprep.subr.mxu0 0.0
    %3479 = vmatpush2.msra.mxu0 0.0
    %3480 = vmatprep.subr.mxu0 0.0
    %3481 = vmatpush2.msra.mxu0 0.0
    %3482 = vmatprep.subr.mxu0 0.0
    %3483 = vmatpush2.msra.mxu0 0.0
    %3484 = vmatprep.mubr.f32.mxu0 0.0
    %3485 = vmatmul.mubr.f32.gmra.mxu0 %v3418
    %v3486 = vpop.f32.mrf.mxu0
    %v3487 = vadd.f32 0.0, %v3486
    %v3488 = vpop.f32.mrf.mxu0
    %3489 = vdwg.mxu0
    %3491 = vrot.lane.b32.xlu0 %v3409, 96
    %v3492 = vpop.permute.xlu0 %3491
    %v3493 = vsel %vm2387, %v3492, 0
    %3495 = vmatprep.subr.mxu0 0.0
    %3496 = vmatpush1.msra.mxu0 0.0
    %3497 = vmatprep.subr.mxu0 0.0
    %3498 = vmatpush1.msra.mxu0 0.0
    %3499 = vmatprep.subr.mxu0 0.0
    %3500 = vmatpush1.msra.mxu0 0.0
    %3501 = vmatprep.subr.mxu0 0.0
    %3502 = vmatpush1.msra.mxu0 0.0
    %3503 = vmatprep.subr.mxu0 0.0
    %3504 = vmatpush1.msra.mxu0 0.0
    %3505 = vmatprep.subr.mxu0 0.0
    %3506 = vmatpush1.msra.mxu0 0.0
    %3507 = vmatprep.subr.mxu0 0.0
    %3508 = vmatpush1.msra.mxu0 0.0
    %3509 = vmatprep.subr.mxu0 0.0
    %3510 = vmatpush1.msra.mxu0 0.0
    %3511 = vmatprep.subr.mxu0 0.0
    %3512 = vmatpush1.msra.mxu0 0.0
    %3513 = vmatprep.subr.mxu0 0.0
    %3514 = vmatpush1.msra.mxu0 0.0
    %3515 = vmatprep.subr.mxu0 0.0
    %3516 = vmatpush1.msra.mxu0 0.0
    %3517 = vmatprep.subr.mxu0 0.0
    %3518 = vmatpush1.msra.mxu0 0.0
    %3519 = vmatprep.subr.mxu0 0.0
    %3520 = vmatpush1.msra.mxu0 0.0
    %3521 = vmatprep.subr.mxu0 0.0
    %3522 = vmatpush1.msra.mxu0 0.0
    %3523 = vmatprep.subr.mxu0 0.0
    %3524 = vmatpush1.msra.mxu0 %v3412
    %3525 = vmatprep.subr.mxu0 0.0
    %3526 = vmatpush1.msra.mxu0 %v3411
    %3527 = vmatprep.subr.mxu0 0.0
    %3528 = vmatpush2.msra.mxu0 0.0
    %3529 = vmatprep.subr.mxu0 0.0
    %3530 = vmatpush2.msra.mxu0 0.0
    %3531 = vmatprep.subr.mxu0 0.0
    %3532 = vmatpush2.msra.mxu0 0.0
    %3533 = vmatprep.subr.mxu0 0.0
    %3534 = vmatpush2.msra.mxu0 0.0
    %3535 = vmatprep.subr.mxu0 0.0
    %3536 = vmatpush2.msra.mxu0 0.0
    %3537 = vmatprep.subr.mxu0 0.0
    %3538 = vmatpush2.msra.mxu0 0.0
    %3539 = vmatprep.subr.mxu0 0.0
    %3540 = vmatpush2.msra.mxu0 0.0
    %3541 = vmatprep.subr.mxu0 0.0
    %3542 = vmatpush2.msra.mxu0 0.0
    %3543 = vmatprep.subr.mxu0 0.0
    %3544 = vmatpush2.msra.mxu0 0.0
    %3545 = vmatprep.subr.mxu0 0.0
    %3546 = vmatpush2.msra.mxu0 0.0
    %3547 = vmatprep.subr.mxu0 0.0
    %3548 = vmatpush2.msra.mxu0 0.0
    %3549 = vmatprep.subr.mxu0 0.0
    %3550 = vmatpush2.msra.mxu0 0.0
    %3551 = vmatprep.subr.mxu0 0.0
    %3552 = vmatpush2.msra.mxu0 0.0
    %3553 = vmatprep.subr.mxu0 0.0
    %3554 = vmatpush2.msra.mxu0 0.0
    %3555 = vmatprep.subr.mxu0 0.0
    %3556 = vmatpush2.msra.mxu0 0.0
    %3557 = vmatprep.subr.mxu0 0.0
    %3558 = vmatpush2.msra.mxu0 0.0
    %3559 = vmatprep.mubr.f32.mxu0 0.0
    %3560 = vmatmul.mubr.f32.gmra.mxu0 %v3493
    %v3561 = vpop.f32.mrf.mxu0
    %v3562 = vadd.f32 %v3487, %v3561
    %v3563 = vpop.f32.mrf.mxu0
    %3564 = vdwg.mxu0
    %v3565 = vld [vmem:[%s16] sm:$0x1]
    %v3567 = vlaneseq
    %v3568 = vshrl.u32 %v3567, 7
    %v3569 = vsub.s32 0, %v3568
    %v3570 = vrot.slane %v3565, %v3569
    %v3572 = vadd.f32 %v3562, %v3570
    %v3573 = vmax.f32 %v3572, 0.0
    %v3574 = vld [vmem:[%s17] sm:$0xff]
    %v3575 = vld [vmem:[%s17 + $0x8] sm:$0xff]
    %v3576 = vld [vmem:[%s18] sm:$0x1]
    %v3578 = vlaneseq
    %v3579 = vshrl.u32 %v3578, 7
    %v3580 = vsub.s32 0, %v3579
    %v3581 = vrot.slane %v3576, %v3580
    %v3584 = vsel %vm2387, %v3573, 0
    %3586 = vmatprep.subr.mxu0 0.0
    %3587 = vmatpush1.msra.mxu0 0.0
    %3588 = vmatprep.subr.mxu0 0.0
    %3589 = vmatpush1.msra.mxu0 0.0
    %3590 = vmatprep.subr.mxu0 0.0
    %3591 = vmatpush1.msra.mxu0 0.0
    %3592 = vmatprep.subr.mxu0 0.0
    %3593 = vmatpush1.msra.mxu0 0.0
    %3594 = vmatprep.subr.mxu0 0.0
    %3595 = vmatpush1.msra.mxu0 0.0
    %3596 = vmatprep.subr.mxu0 0.0
    %3597 = vmatpush1.msra.mxu0 0.0
    %3598 = vmatprep.subr.mxu0 0.0
    %3599 = vmatpush1.msra.mxu0 0.0
    %3600 = vmatprep.subr.mxu0 0.0
    %3601 = vmatpush1.msra.mxu0 0.0
    %3602 = vmatprep.subr.mxu0 0.0
    %3603 = vmatpush1.msra.mxu0 0.0
    %3604 = vmatprep.subr.mxu0 0.0
    %3605 = vmatpush1.msra.mxu0 0.0
    %3606 = vmatprep.subr.mxu0 0.0
    %3607 = vmatpush1.msra.mxu0 0.0
    %3608 = vmatprep.subr.mxu0 0.0
    %3609 = vmatpush1.msra.mxu0 0.0
    %3610 = vmatprep.subr.mxu0 0.0
    %3611 = vmatpush1.msra.mxu0 0.0
    %3612 = vmatprep.subr.mxu0 0.0
    %3613 = vmatpush1.msra.mxu0 0.0
    %3614 = vmatprep.subr.mxu0 0.0
    %3615 = vmatpush1.msra.mxu0 %v3575
    %3616 = vmatprep.subr.mxu0 0.0
    %3617 = vmatpush1.msra.mxu0 %v3574
    %3618 = vmatprep.subr.mxu0 0.0
    %3619 = vmatpush2.msra.mxu0 0.0
    %3620 = vmatprep.subr.mxu0 0.0
    %3621 = vmatpush2.msra.mxu0 0.0
    %3622 = vmatprep.subr.mxu0 0.0
    %3623 = vmatpush2.msra.mxu0 0.0
    %3624 = vmatprep.subr.mxu0 0.0
    %3625 = vmatpush2.msra.mxu0 0.0
    %3626 = vmatprep.subr.mxu0 0.0
    %3627 = vmatpush2.msra.mxu0 0.0
    %3628 = vmatprep.subr.mxu0 0.0
    %3629 = vmatpush2.msra.mxu0 0.0
    %3630 = vmatprep.subr.mxu0 0.0
    %3631 = vmatpush2.msra.mxu0 0.0
    %3632 = vmatprep.subr.mxu0 0.0
    %3633 = vmatpush2.msra.mxu0 0.0
    %3634 = vmatprep.subr.mxu0 0.0
    %3635 = vmatpush2.msra.mxu0 0.0
    %3636 = vmatprep.subr.mxu0 0.0
    %3637 = vmatpush2.msra.mxu0 0.0
    %3638 = vmatprep.subr.mxu0 0.0
    %3639 = vmatpush2.msra.mxu0 0.0
    %3640 = vmatprep.subr.mxu0 0.0
    %3641 = vmatpush2.msra.mxu0 0.0
    %3642 = vmatprep.subr.mxu0 0.0
    %3643 = vmatpush2.msra.mxu0 0.0
    %3644 = vmatprep.subr.mxu0 0.0
    %3645 = vmatpush2.msra.mxu0 0.0
    %3646 = vmatprep.subr.mxu0 0.0
    %3647 = vmatpush2.msra.mxu0 0.0
    %3648 = vmatprep.subr.mxu0 0.0
    %3649 = vmatpush2.msra.mxu0 0.0
    %3650 = vmatprep.mubr.f32.mxu0 0.0
    %3651 = vmatmul.mubr.f32.gmra.mxu0 %v3584
    %v3652 = vpop.f32.mrf.mxu0
    %v3653 = vadd.f32 %v3581, %v3652
    %v3654 = vpop.f32.mrf.mxu0
    %3655 = vdwg.mxu0
    %vm3656 = vcmask 23552
    %v3657 = vsel %vm3656, %v3653, -inf
    %3658 = vmax.xlane.f32.xlu0 %v3657
    %v3659 = vpop.xlane.xlu0 %3658
    %v3660 = vsub.f32 %v3653, %v3659
    %v3661 = vmul.f32 %v3660, 1.442695
    %v3662 = vpow.pop %v3661
    %v3663 = vsel %vm3656, %v3662, 0.0
    %3664 = vadd.xlane.f32.xlu0 %v3663
    %v3665 = vpop.xlane.xlu0 %3664
    %v3666 = vrcp.pop %v3665
    %v3667 = vmul.f32 %v3662, %v3666
    %3668 = vst.msk [vmem:[%s19] sm:$0xff] %vm3656, %v3667
    // Predicated region
    $region130: #{tpu_custom_call.1} parent=1 // pred_check
      _
    $region131: #{tpu_custom_call.1} parent=1 // pred_check_branch
      %3670 = sbr.rel (0) target = $region133
    $region132: #{tpu_custom_call.1} parent=1 // pred_region
      _
    $region133: #{tpu_custom_call.1} parent=1 // pred_fallthru
      _
    // Predicated region
    $region134: #{tpu_custom_call.1} parent=1 // pred_check
      _
    $region135: #{tpu_custom_call.1} parent=1 // pred_check_branch
      %3672 = sbr.rel (0) target = $region137
    $region136: #{tpu_custom_call.1} parent=1 // pred_region
      _
    $region137: #{tpu_custom_call.1} parent=1 // pred_fallthru
      _
    %3673 = vsyncpa [#allocation9], 1
    %3674 = vsyncpa [#allocation11], 1
    %3675 = vsyncpa [#allocation14], 1
    %3676 = vsyncpa [#allocation17], 1
    %3677 = vsyncpa [#allocation20], 1
    %3678 = vsyncpa [#allocation23], 1
    %3679 = vsyncpa [#allocation26], 1

</llo_original>
